<compile_context>
chip_gen: v7x
topology: tpu7x:2x2x1
jax: 0.10.0
libtpu: 0.0.40
codegen_flags: <defaults>
</compile_context>

<pallas_src>
import functools

import jax
import jax.numpy as jnp
from jax.experimental import pallas as pl
from jax.experimental.pallas import tpu as pltpu


# ---------------------------------------------------------------------------
# Pallas kernel: all LSTM layers + final FC, grid = (batch blocks, time chunks)
# ---------------------------------------------------------------------------

def _fused_lstm_kernel(x_ref, wih0_ref, wihs_ref, whh_ref, b_ref,
                       wfc_ref, bfc_ref, out_ref,
                       h_sc, c_sc, act_sc, gx_sc,
                       *, n_layers, t_blk, b_blk, seq_len, has_tail):
    """One time chunk through all LSTM layers (wavefront), FC on the last step.

    x_ref:    (t_blk, B, D)  bf16   time-major input chunk (batch block)
    wih0_ref: (D, 4M)        bf16   layer-0 fused input weights (gates i,f,o,g)
    wihs_ref: (max(L-1,1), M, 4M) bf16  fused input weights for layers 1..L-1
    whh_ref:  (L, M, 4M)     bf16   fused hidden weights
    b_ref:    (L, 1, 4M)     f32    fused bias (b_ih + b_hh)
    wfc_ref:  (M, K) bf16, bfc_ref: (1, K) f32   final linear layer
    out_ref:  (B, K)         f32    written only on the last time chunk
    h_sc/c_sc:(L, B, M)      f32    recurrent state, persists across time chunks
    act_sc:   (max(L-1,1), B, M) f32  single-step inter-layer handoff buffers
    gx_sc:    (t_blk*B, 4M)  f32    hoisted layer-0 input projection (+ bias)
    """
    L = n_layers
    B = b_blk
    M = h_sc.shape[2]

    k = pl.program_id(1)                      # time-chunk index (innermost axis)
    n_chunks = pl.num_programs(1)

    # h0 = c0 = 0 (as in the PyTorch module) at the start of each batch block's sweep.
    @pl.when(k == 0)
    def _():
        h_sc[...] = jnp.zeros_like(h_sc)
        c_sc[...] = jnp.zeros_like(c_sc)

    # Hoisted layer-0 input projection for the whole chunk: one dense bf16 matmul
    # (the only consumer of x), bias folded in, stored lane-dense (t_blk*B, 4M).
    x_flat = x_ref[...].reshape(t_blk * B, x_ref.shape[-1])       # bf16
    gx_sc[...] = (jnp.dot(x_flat, wih0_ref[...],
                          preferred_element_type=jnp.float32) + b_ref[0])

    # TODO(synk): pin W_hh in MXU weight registers across the unrolled steps via
    # pltpu.matmul_push_rhs / matmul_acc_lhs (the RHS is identical every step).
    def cell(layer, t):
        """One LSTM cell update (layer `layer`, static local time `t`)."""
        h_bf = h_sc[layer].astype(jnp.bfloat16)                   # (B, M)
        if layer == 0:
            gates = gx_sc[t * B:(t + 1) * B, :]                   # f32, bias included
        else:
            xin = act_sc[layer - 1].astype(jnp.bfloat16)          # (B, M)
            gates = (jnp.dot(xin, wihs_ref[layer - 1],
                             preferred_element_type=jnp.float32) + b_ref[layer])
        gates = gates + jnp.dot(h_bf, whh_ref[layer],
                                preferred_element_type=jnp.float32)
        # Fused gate order (i, f, o, g): one sigmoid slab + one tanh slab (2 EUP ops).
        sig = jax.nn.sigmoid(gates[:, :3 * M])
        g_g = jnp.tanh(gates[:, 3 * M:])
        i_g = sig[:, 0 * M:1 * M]
        f_g = sig[:, 1 * M:2 * M]
        o_g = sig[:, 2 * M:3 * M]
        c_new = f_g * c_sc[layer] + i_g * g_g                     # f32 elementwise
        h_new = o_g * jnp.tanh(c_new)

        def commit():
            c_sc[layer] = c_new
            h_sc[layer] = h_new
            if layer < L - 1:
                act_sc[layer] = h_new                             # next layer's input

        if has_tail:
            pl.when(k * t_blk + t < seq_len)(commit)              # freeze past T-1
        else:
            commit()

    # Wavefront over the chunk: at diagonal s, layer l handles local time t = s - l,
    # so up to L independent matmul -> sigmoid/tanh -> update chains are in flight
    # per diagonal.  Layers run in decreasing order so layer l reads act_sc[l-1]
    # (previous diagonal's value) before layer l-1 overwrites it.
    for s in range(t_blk + L - 1):
        for layer in range(L - 1, -1, -1):
            t = s - layer
            if 0 <= t < t_blk:
                cell(layer, t)

    # Final FC on the last hidden state of the top layer == fc(out[:, -1, :]).
    @pl.when(k == n_chunks - 1)
    def _():
        out_ref[...] = (jnp.dot(h_sc[L - 1].astype(jnp.bfloat16), wfc_ref[...],
                                preferred_element_type=jnp.float32) + bfc_ref[...])


# ---------------------------------------------------------------------------
# Wrapper
# ---------------------------------------------------------------------------

def _round_up(x, m):
    return ((x + m - 1) // m) * m


def _vmem_capacity_bytes():
    try:
        cap = getattr(pltpu.get_tpu_info(), "vmem_capacity_bytes", None)
        if cap:
            return int(cap)
    except Exception:
        pass
    return 64 << 20        # conservative fallback (v7x-sized)


def _choose_time_tiling(T, cap):
    """Split T into n_chunks equal chunks of t_blk steps with minimal padding."""
    n_chunks = pl.cdiv(T, cap)
    t_blk = pl.cdiv(T, n_chunks)
    return t_blk, n_chunks, n_chunks * t_blk


def my_lstm_forward(X, params, *, t_blk_cap=32, num_batch_blocks=1):
    """X: (B, T, D) batch-first like the PyTorch module. Returns (B, K) f32."""
    B, T, D = X.shape
    whh = params["whh"]
    L, M = whh.shape[0], whh.shape[1]
    G = 4 * M
    K = params["fc_w_t"].shape[1]

    # ---- tiling ------------------------------------------------------------
    t_blk, n_chunks, T_pad = _choose_time_tiling(T, t_blk_cap)
    has_tail = (T_pad != T)
    nb = max(int(num_batch_blocks), 1)
    # TODO(synk): auto-set num_batch_blocks=2 on v7x (2 TensorCores/chip) when the
    # padded batch is big enough to split; 1 is optimal on single-TC v5e/v6e.
    B_pad = _round_up(B, 8 * nb)            # full f32 sublane tiles per batch block
    B_blk = B_pad // nb

    # ---- operand prep: bf16 matmul operands, f32 biases ----------------------
    x_tm = jnp.transpose(X, (1, 0, 2)).astype(jnp.bfloat16)        # time-major
    if T_pad != T or B_pad != B:
        x_tm = jnp.pad(x_tm, ((0, T_pad - T), (0, B_pad - B), (0, 0)))
    wih0 = params["wih0"].astype(jnp.bfloat16)
    wihs = params["wihs"].astype(jnp.bfloat16)
    whh_b = whh.astype(jnp.bfloat16)
    bias = params["bias"].astype(jnp.float32)
    wfc = params["fc_w_t"].astype(jnp.bfloat16)
    bfc = params["fc_b"].astype(jnp.float32)

    # ---- VMEM budget (default pipelining double-buffers every BlockSpec'd operand)
    n_specd = 2 * ((D * G + max(L - 1, 1) * M * G + L * M * G + M * K) * 2   # bf16 weights
                   + (L * G + K) * 4                                         # f32 biases
                   + t_blk * B_blk * D * 2                                   # bf16 x chunk
                   + B_blk * K * 4)                                          # out block
    n_scratch = (2 * L * B_blk * M + max(L - 1, 1) * B_blk * M
                 + t_blk * B_blk * G) * 4
    vmem_limit = int(min(max(2 * (n_specd + n_scratch), 8 << 20),
                         int(0.75 * _vmem_capacity_bytes())))

    kernel = functools.partial(_fused_lstm_kernel, n_layers=L, t_blk=t_blk,
                               b_blk=B_blk, seq_len=T, has_tail=has_tail)

    grid_spec = pltpu.PrefetchScalarGridSpec(
        num_scalar_prefetch=0,
        grid=(nb, n_chunks),                                    # (batch blocks, time)
        in_specs=[
            pl.BlockSpec((t_blk, B_blk, D), lambda b, k: (k, b, 0)),   # x: streamed
            pl.BlockSpec(wih0.shape, lambda b, k: (0, 0)),             # weights resident
            pl.BlockSpec(wihs.shape, lambda b, k: (0, 0, 0)),
            pl.BlockSpec(whh_b.shape, lambda b, k: (0, 0, 0)),
            pl.BlockSpec(bias.shape, lambda b, k: (0, 0, 0)),
            pl.BlockSpec(wfc.shape, lambda b, k: (0, 0)),
            pl.BlockSpec(bfc.shape, lambda b, k: (0, 0)),
        ],
        out_specs=pl.BlockSpec((B_blk, K), lambda b, k: (b, 0)),
        scratch_shapes=[
            pltpu.VMEM((L, B_blk, M), jnp.float32),                 # h state
            pltpu.VMEM((L, B_blk, M), jnp.float32),                 # c state
            pltpu.VMEM((max(L - 1, 1), B_blk, M), jnp.float32),     # layer handoff buf
            pltpu.VMEM((t_blk * B_blk, G), jnp.float32),            # hoisted layer-0 proj
        ],
    )

    out_pad = pl.pallas_call(
        kernel,
        out_shape=jax.ShapeDtypeStruct((B_pad, K), jnp.float32),
        grid_spec=grid_spec,
        compiler_params=pltpu.CompilerParams(
            dimension_semantics=("parallel", "arbitrary"),          # batch ∥, time serial
            vmem_limit_bytes=vmem_limit,
        ),
    )(x_tm, wih0, wihs, whh_b, bias, wfc, bfc)
    return out_pad[:B]


# ---------------------------------------------------------------------------
# Parameter init (fused gate layout, matches nn.LSTM / nn.Linear math)
# ---------------------------------------------------------------------------

def init_params(key, D, M, L, K):
    """f32 master parameters.  The fused lane layout stores the gates in order
    (i, f, o, g) — a pure relabeling of nn.LSTM's (i, f, g, o) block order — so the
    kernel can apply one sigmoid over [0,3M) and one tanh over [3M,4M)."""
    k_lstm = 1.0 / jnp.sqrt(jnp.float32(M))
    wih_list, whh_list, b_list = [], [], []
    for layer in range(L):
        d_in = D if layer == 0 else M
        key, k1, k2, k3, k4 = jax.random.split(key, 5)
        w_ih = jax.random.uniform(k1, (4, M, d_in), jnp.float32, -k_lstm, k_lstm)
        w_hh = jax.random.uniform(k2, (4, M, M), jnp.float32, -k_lstm, k_lstm)
        b_ih = jax.random.uniform(k3, (4, M), jnp.float32, -k_lstm, k_lstm)
        b_hh = jax.random.uniform(k4, (4, M), jnp.float32, -k_lstm, k_lstm)
        # fused[:, j*M:(j+1)*M] == W_j^T, so x @ fused == concat_j(x @ W_j^T);
        # gate blocks j = 0..3 are interpreted as (i, f, o, g).
        wih_list.append(jnp.transpose(w_ih, (2, 0, 1)).reshape(d_in, 4 * M))
        whh_list.append(jnp.transpose(w_hh, (2, 0, 1)).reshape(M, 4 * M))
        b_list.append((b_ih + b_hh).reshape(1, 4 * M))
    key, k5, k6 = jax.random.split(key, 3)
    k_fc = 1.0 / jnp.sqrt(jnp.float32(M))
    fc_w = jax.random.uniform(k5, (K, M), jnp.float32, -k_fc, k_fc)
    fc_b = jax.random.uniform(k6, (K,), jnp.float32, -k_fc, k_fc)
    return {
        "wih0": wih_list[0],                                            # (D, 4M)
        "wihs": (jnp.stack(wih_list[1:]) if L > 1
                 else jnp.zeros((1, M, 4 * M), jnp.float32)),           # (max(L-1,1), M, 4M)
        "whh": jnp.stack(whh_list),                                     # (L, M, 4M)
        "bias": jnp.stack(b_list),                                      # (L, 1, 4M)
        "fc_w_t": fc_w.T,                                               # (M, K)
        "fc_b": fc_b[None, :],                                          # (1, K)
    }


# ---------------------------------------------------------------------------
# Pure-JAX f32 reference (PyTorch semantics; gate blocks interpreted as i,f,o,g)
# ---------------------------------------------------------------------------

def reference_forward(X, params):
    x = jnp.transpose(X, (1, 0, 2)).astype(jnp.float32)                 # (T, B, D)
    L, M = params["whh"].shape[0], params["whh"].shape[1]
    T, B, _ = x.shape
    for layer in range(L):
        w_ih = params["wih0"] if layer == 0 else params["wihs"][layer - 1]
        w_hh = params["whh"][layer]
        b = params["bias"][layer]
        h = jnp.zeros((B, M), jnp.float32)
        c = jnp.zeros((B, M), jnp.float32)
        outs = []
        for t in range(T):
            gates = x[t] @ w_ih + h @ w_hh + b
            i_g = jax.nn.sigmoid(gates[:, 0 * M:1 * M])
            f_g = jax.nn.sigmoid(gates[:, 1 * M:2 * M])
            o_g = jax.nn.sigmoid(gates[:, 2 * M:3 * M])
            g_g = jnp.tanh(gates[:, 3 * M:4 * M])
            c = f_g * c + i_g * g_g
            h = o_g * jnp.tanh(c)
            outs.append(h)
        x = jnp.stack(outs, axis=0)
    return x[-1] @ params["fc_w_t"] + params["fc_b"]


if __name__ == "__main__":
    # Small shapes consistent with the module: B=2, T=8, D=4, M=32, L=2, K=3
    B, T, D, M, L, K = 2, 8, 4, 32, 2, 3

    key = jax.random.PRNGKey(0)
    key, kx, kp = jax.random.split(key, 3)
    X = jax.random.normal(kx, (B, T, D), jnp.float32)
    params = init_params(kp, D, M, L, K)

    out = my_lstm_forward(X, params)
    out = jax.block_until_ready(out)

    ref = reference_forward(X, params)
    assert out.shape == (B, K), out.shape
    # bf16 matmul operands with f32 accumulation -> loose-ish tolerance vs f32 ref.
    assert jnp.allclose(out, ref, atol=2e-2, rtol=2e-2), (out, ref)

    print("KERNEL_OK")
</pallas_src>

<mosaic_0001>
module attributes {stable_mosaic.version = 11 : i64} {
  func.func @_fused_lstm_kernel(%arg0: i32, %arg1: i32, %arg2: memref<8x8x4xbf16, #tpu.memory_space<vmem>>, %arg3: memref<4x128xbf16, #tpu.memory_space<vmem>>, %arg4: memref<1x32x128xbf16, #tpu.memory_space<vmem>>, %arg5: memref<2x32x128xbf16, #tpu.memory_space<vmem>>, %arg6: memref<2x1x128xf32, #tpu.memory_space<vmem>>, %arg7: memref<32x3xbf16, #tpu.memory_space<vmem>>, %arg8: memref<1x3xf32, #tpu.memory_space<vmem>>, %arg9: memref<8x3xf32, #tpu.memory_space<vmem>>, %arg10: memref<2x8x32xf32, #tpu.memory_space<vmem>>, %arg11: memref<2x8x32xf32, #tpu.memory_space<vmem>>, %arg12: memref<1x8x32xf32, #tpu.memory_space<vmem>>, %arg13: memref<64x128xf32, #tpu.memory_space<vmem>>) attributes {dimension_semantics = [#tpu.dimension_semantics<parallel>, #tpu.dimension_semantics<arbitrary>], iteration_bounds = array<i64: 1, 1>, scalar_prefetch = 0 : i64, scratch_operands = 4 : i64, tpu.core_type = #tpu.core_type<tc>, window_params = [{transform_indices = @transform_0, window_bounds = array<i64: 8, 8, 4>}, {pipeline_mode = #tpu.pipeline_mode<synchronous>, transform_indices = @transform_1, window_bounds = array<i64: 4, 128>}, {pipeline_mode = #tpu.pipeline_mode<synchronous>, transform_indices = @transform_2, window_bounds = array<i64: 1, 32, 128>}, {pipeline_mode = #tpu.pipeline_mode<synchronous>, transform_indices = @transform_3, window_bounds = array<i64: 2, 32, 128>}, {pipeline_mode = #tpu.pipeline_mode<synchronous>, transform_indices = @transform_4, window_bounds = array<i64: 2, 1, 128>}, {pipeline_mode = #tpu.pipeline_mode<synchronous>, transform_indices = @transform_5, window_bounds = array<i64: 32, 3>}, {pipeline_mode = #tpu.pipeline_mode<synchronous>, transform_indices = @transform_6, window_bounds = array<i64: 1, 3>}, {transform_indices = @transform_7, window_bounds = array<i64: 8, 3>}]} {
    %c0_i32 = arith.constant 0 : i32
    %0 = arith.cmpi eq, %arg1, %c0_i32 : i32
    %1 = arith.extui %0 : i1 to i32
    %c0_i32_0 = arith.constant 0 : i32
    %2 = arith.cmpi ne, %1, %c0_i32_0 : i32
    scf.if %2 {
      %cst_396 = arith.constant 0.000000e+00 : f32
      %623 = vector.broadcast %cst_396 : f32 to vector<2x8x32xf32>
      %c0_397 = arith.constant 0 : index
      %c0_398 = arith.constant 0 : index
      %c0_399 = arith.constant 0 : index
      %624 = vector.load %arg10[%c0_397, %c0_398, %c0_399] : memref<2x8x32xf32, #tpu.memory_space<vmem>>, vector<2x8x32xf32>
      tpu.vector_store %arg10[%c0_397, %c0_398, %c0_399], %623 {strides = array<i32>} : memref<2x8x32xf32, #tpu.memory_space<vmem>>, vector<2x8x32xf32>,
      %cst_400 = arith.constant 0.000000e+00 : f32
      %625 = vector.broadcast %cst_400 : f32 to vector<2x8x32xf32>
      %c0_401 = arith.constant 0 : index
      %c0_402 = arith.constant 0 : index
      %c0_403 = arith.constant 0 : index
      %626 = vector.load %arg11[%c0_401, %c0_402, %c0_403] : memref<2x8x32xf32, #tpu.memory_space<vmem>>, vector<2x8x32xf32>
      tpu.vector_store %arg11[%c0_401, %c0_402, %c0_403], %625 {strides = array<i32>} : memref<2x8x32xf32, #tpu.memory_space<vmem>>, vector<2x8x32xf32>,
    } else {
    }
    %c0 = arith.constant 0 : index
    %c0_1 = arith.constant 0 : index
    %c0_2 = arith.constant 0 : index
    %3 = vector.load %arg2[%c0, %c0_1, %c0_2] : memref<8x8x4xbf16, #tpu.memory_space<vmem>>, vector<8x8x4xbf16>
    %4 = vector.shape_cast %3 : vector<8x8x4xbf16> to vector<64x4xbf16>
    %c0_3 = arith.constant 0 : index
    %c0_4 = arith.constant 0 : index
    %5 = vector.load %arg3[%c0_3, %c0_4] : memref<4x128xbf16, #tpu.memory_space<vmem>>, vector<4x128xbf16>
    %cst = arith.constant dense<0.000000e+00> : vector<64x128xf32>
    %6 = tpu.matmul %4, %5, %cst {dimension_numbers = #tpu.dot_dimension_numbers<[1], [0], [0], [1], [0, 0, 1, 1], [], []>} : vector<64x4xbf16>, vector<4x128xbf16>, vector<64x128xf32> -> vector<64x128xf32>
    %c0_5 = arith.constant 0 : index
    %c0_6 = arith.constant 0 : index
    %c0_7 = arith.constant 0 : index
    %7 = vector.load %arg6[%c0_5, %c0_6, %c0_7] : memref<2x1x128xf32, #tpu.memory_space<vmem>>, vector<1x1x128xf32>
    %8 = vector.shape_cast %7 : vector<1x1x128xf32> to vector<1x128xf32>
    %9 = vector.broadcast %8 : vector<1x128xf32> to vector<64x128xf32>
    %10 = arith.addf %6, %9 : vector<64x128xf32>
    %c0_8 = arith.constant 0 : index
    %c0_9 = arith.constant 0 : index
    %11 = vector.load %arg13[%c0_8, %c0_9] : memref<64x128xf32, #tpu.memory_space<vmem>>, vector<64x128xf32>
    tpu.vector_store %arg13[%c0_8, %c0_9], %10 {strides = array<i32>} : memref<64x128xf32, #tpu.memory_space<vmem>>, vector<64x128xf32>,
    %c0_10 = arith.constant 0 : index
    %c0_11 = arith.constant 0 : index
    %c0_12 = arith.constant 0 : index
    %12 = vector.load %arg10[%c0_10, %c0_11, %c0_12] : memref<2x8x32xf32, #tpu.memory_space<vmem>>, vector<1x8x32xf32>
    %13 = vector.shape_cast %12 : vector<1x8x32xf32> to vector<8x32xf32>
    %14 = arith.truncf %13 : vector<8x32xf32> to vector<8x32xbf16>
    %c0_13 = arith.constant 0 : index
    %c0_14 = arith.constant 0 : index
    %15 = vector.load %arg13[%c0_13, %c0_14] : memref<64x128xf32, #tpu.memory_space<vmem>>, vector<8x128xf32>
    %c0_15 = arith.constant 0 : index
    %c0_16 = arith.constant 0 : index
    %c0_17 = arith.constant 0 : index
    %16 = vector.load %arg5[%c0_15, %c0_16, %c0_17] : memref<2x32x128xbf16, #tpu.memory_space<vmem>>, vector<1x32x128xbf16>
    %17 = vector.shape_cast %16 : vector<1x32x128xbf16> to vector<32x128xbf16>
    %cst_18 = arith.constant dense<0.000000e+00> : vector<8x128xf32>
    %18 = tpu.matmul %14, %17, %cst_18 {dimension_numbers = #tpu.dot_dimension_numbers<[1], [0], [0], [1], [0, 0, 1, 1], [], []>} : vector<8x32xbf16>, vector<32x128xbf16>, vector<8x128xf32> -> vector<8x128xf32>
    %19 = arith.addf %15, %18 : vector<8x128xf32>
    %20 = vector.extract_strided_slice %19 {offsets = [0, 0], sizes = [8, 96], strides = [1, 1]} : vector<8x128xf32> to vector<8x96xf32>
    %21 = arith.negf %20 : vector<8x96xf32>
    %22 = math.exp %21 : vector<8x96xf32>
    %cst_19 = arith.constant 1.000000e+00 : f32
    %23 = vector.broadcast %cst_19 : f32 to vector<8x96xf32>
    %24 = arith.addf %23, %22 : vector<8x96xf32>
    %25 = arith.divf %23, %24 : vector<8x96xf32>
    %26 = vector.extract_strided_slice %19 {offsets = [0, 96], sizes = [8, 32], strides = [1, 1]} : vector<8x128xf32> to vector<8x32xf32>
    %27 = math.tanh %26 : vector<8x32xf32>
    %28 = vector.extract_strided_slice %25 {offsets = [0, 0], sizes = [8, 32], strides = [1, 1]} : vector<8x96xf32> to vector<8x32xf32>
    %29 = vector.extract_strided_slice %25 {offsets = [0, 32], sizes = [8, 32], strides = [1, 1]} : vector<8x96xf32> to vector<8x32xf32>
    %30 = vector.extract_strided_slice %25 {offsets = [0, 64], sizes = [8, 32], strides = [1, 1]} : vector<8x96xf32> to vector<8x32xf32>
    %c0_20 = arith.constant 0 : index
    %c0_21 = arith.constant 0 : index
    %c0_22 = arith.constant 0 : index
    %31 = vector.load %arg11[%c0_20, %c0_21, %c0_22] : memref<2x8x32xf32, #tpu.memory_space<vmem>>, vector<1x8x32xf32>
    %32 = vector.shape_cast %31 : vector<1x8x32xf32> to vector<8x32xf32>
    %33 = arith.mulf %29, %32 : vector<8x32xf32>
    %34 = arith.mulf %28, %27 : vector<8x32xf32>
    %35 = arith.addf %33, %34 : vector<8x32xf32>
    %36 = math.tanh %35 : vector<8x32xf32>
    %37 = arith.mulf %30, %36 : vector<8x32xf32>
    %c0_23 = arith.constant 0 : index
    %c0_24 = arith.constant 0 : index
    %c0_25 = arith.constant 0 : index
    %38 = vector.load %arg11[%c0_23, %c0_24, %c0_25] : memref<2x8x32xf32, #tpu.memory_space<vmem>>, vector<1x8x32xf32>
    %39 = vector.shape_cast %38 : vector<1x8x32xf32> to vector<8x32xf32>
    %40 = vector.shape_cast %35 : vector<8x32xf32> to vector<1x8x32xf32>
    tpu.vector_store %arg11[%c0_23, %c0_24, %c0_25], %40 {strides = array<i32>} : memref<2x8x32xf32, #tpu.memory_space<vmem>>, vector<1x8x32xf32>,
    %c0_26 = arith.constant 0 : index
    %c0_27 = arith.constant 0 : index
    %c0_28 = arith.constant 0 : index
    %41 = vector.load %arg10[%c0_26, %c0_27, %c0_28] : memref<2x8x32xf32, #tpu.memory_space<vmem>>, vector<1x8x32xf32>
    %42 = vector.shape_cast %41 : vector<1x8x32xf32> to vector<8x32xf32>
    %43 = vector.shape_cast %37 : vector<8x32xf32> to vector<1x8x32xf32>
    tpu.vector_store %arg10[%c0_26, %c0_27, %c0_28], %43 {strides = array<i32>} : memref<2x8x32xf32, #tpu.memory_space<vmem>>, vector<1x8x32xf32>,
    %c0_29 = arith.constant 0 : index
    %c0_30 = arith.constant 0 : index
    %c0_31 = arith.constant 0 : index
    %44 = vector.load %arg12[%c0_29, %c0_30, %c0_31] : memref<1x8x32xf32, #tpu.memory_space<vmem>>, vector<1x8x32xf32>
    %45 = vector.shape_cast %44 : vector<1x8x32xf32> to vector<8x32xf32>
    %46 = vector.shape_cast %37 : vector<8x32xf32> to vector<1x8x32xf32>
    tpu.vector_store %arg12[%c0_29, %c0_30, %c0_31], %46 {strides = array<i32>} : memref<1x8x32xf32, #tpu.memory_space<vmem>>, vector<1x8x32xf32>,
    %c1 = arith.constant 1 : index
    %c0_32 = arith.constant 0 : index
    %c0_33 = arith.constant 0 : index
    %47 = vector.load %arg10[%c1, %c0_32, %c0_33] : memref<2x8x32xf32, #tpu.memory_space<vmem>>, vector<1x8x32xf32>
    %48 = vector.shape_cast %47 : vector<1x8x32xf32> to vector<8x32xf32>
    %49 = arith.truncf %48 : vector<8x32xf32> to vector<8x32xbf16>
    %c0_34 = arith.constant 0 : index
    %c0_35 = arith.constant 0 : index
    %c0_36 = arith.constant 0 : index
    %50 = vector.load %arg12[%c0_34, %c0_35, %c0_36] : memref<1x8x32xf32, #tpu.memory_space<vmem>>, vector<1x8x32xf32>
    %51 = vector.shape_cast %50 : vector<1x8x32xf32> to vector<8x32xf32>
    %52 = arith.truncf %51 : vector<8x32xf32> to vector<8x32xbf16>
    %c0_37 = arith.constant 0 : index
    %c0_38 = arith.constant 0 : index
    %c0_39 = arith.constant 0 : index
    %53 = vector.load %arg4[%c0_37, %c0_38, %c0_39] : memref<1x32x128xbf16, #tpu.memory_space<vmem>>, vector<1x32x128xbf16>
    %54 = vector.shape_cast %53 : vector<1x32x128xbf16> to vector<32x128xbf16>
    %cst_40 = arith.constant dense<0.000000e+00> : vector<8x128xf32>
    %55 = tpu.matmul %52, %54, %cst_40 {dimension_numbers = #tpu.dot_dimension_numbers<[1], [0], [0], [1], [0, 0, 1, 1], [], []>} : vector<8x32xbf16>, vector<32x128xbf16>, vector<8x128xf32> -> vector<8x128xf32>
    %c1_41 = arith.constant 1 : index
    %c0_42 = arith.constant 0 : index
    %c0_43 = arith.constant 0 : index
    %56 = vector.load %arg6[%c1_41, %c0_42, %c0_43] : memref<2x1x128xf32, #tpu.memory_space<vmem>>, vector<1x1x128xf32>
    %57 = vector.shape_cast %56 : vector<1x1x128xf32> to vector<1x128xf32>
    %58 = vector.broadcast %57 : vector<1x128xf32> to vector<8x128xf32>
    %59 = arith.addf %55, %58 : vector<8x128xf32>
    %c1_44 = arith.constant 1 : index
    %c0_45 = arith.constant 0 : index
    %c0_46 = arith.constant 0 : index
    %60 = vector.load %arg5[%c1_44, %c0_45, %c0_46] : memref<2x32x128xbf16, #tpu.memory_space<vmem>>, vector<1x32x128xbf16>
    %61 = vector.shape_cast %60 : vector<1x32x128xbf16> to vector<32x128xbf16>
    %cst_47 = arith.constant dense<0.000000e+00> : vector<8x128xf32>
    %62 = tpu.matmul %49, %61, %cst_47 {dimension_numbers = #tpu.dot_dimension_numbers<[1], [0], [0], [1], [0, 0, 1, 1], [], []>} : vector<8x32xbf16>, vector<32x128xbf16>, vector<8x128xf32> -> vector<8x128xf32>
    %63 = arith.addf %59, %62 : vector<8x128xf32>
    %64 = vector.extract_strided_slice %63 {offsets = [0, 0], sizes = [8, 96], strides = [1, 1]} : vector<8x128xf32> to vector<8x96xf32>
    %65 = arith.negf %64 : vector<8x96xf32>
    %66 = math.exp %65 : vector<8x96xf32>
    %cst_48 = arith.constant 1.000000e+00 : f32
    %67 = vector.broadcast %cst_48 : f32 to vector<8x96xf32>
    %68 = arith.addf %67, %66 : vector<8x96xf32>
    %69 = arith.divf %67, %68 : vector<8x96xf32>
    %70 = vector.extract_strided_slice %63 {offsets = [0, 96], sizes = [8, 32], strides = [1, 1]} : vector<8x128xf32> to vector<8x32xf32>
    %71 = math.tanh %70 : vector<8x32xf32>
    %72 = vector.extract_strided_slice %69 {offsets = [0, 0], sizes = [8, 32], strides = [1, 1]} : vector<8x96xf32> to vector<8x32xf32>
    %73 = vector.extract_strided_slice %69 {offsets = [0, 32], sizes = [8, 32], strides = [1, 1]} : vector<8x96xf32> to vector<8x32xf32>
    %74 = vector.extract_strided_slice %69 {offsets = [0, 64], sizes = [8, 32], strides = [1, 1]} : vector<8x96xf32> to vector<8x32xf32>
    %c1_49 = arith.constant 1 : index
    %c0_50 = arith.constant 0 : index
    %c0_51 = arith.constant 0 : index
    %75 = vector.load %arg11[%c1_49, %c0_50, %c0_51] : memref<2x8x32xf32, #tpu.memory_space<vmem>>, vector<1x8x32xf32>
    %76 = vector.shape_cast %75 : vector<1x8x32xf32> to vector<8x32xf32>
    %77 = arith.mulf %73, %76 : vector<8x32xf32>
    %78 = arith.mulf %72, %71 : vector<8x32xf32>
    %79 = arith.addf %77, %78 : vector<8x32xf32>
    %80 = math.tanh %79 : vector<8x32xf32>
    %81 = arith.mulf %74, %80 : vector<8x32xf32>
    %c1_52 = arith.constant 1 : index
    %c0_53 = arith.constant 0 : index
    %c0_54 = arith.constant 0 : index
    %82 = vector.load %arg11[%c1_52, %c0_53, %c0_54] : memref<2x8x32xf32, #tpu.memory_space<vmem>>, vector<1x8x32xf32>
    %83 = vector.shape_cast %82 : vector<1x8x32xf32> to vector<8x32xf32>
    %84 = vector.shape_cast %79 : vector<8x32xf32> to vector<1x8x32xf32>
    tpu.vector_store %arg11[%c1_52, %c0_53, %c0_54], %84 {strides = array<i32>} : memref<2x8x32xf32, #tpu.memory_space<vmem>>, vector<1x8x32xf32>,
    %c1_55 = arith.constant 1 : index
    %c0_56 = arith.constant 0 : index
    %c0_57 = arith.constant 0 : index
    %85 = vector.load %arg10[%c1_55, %c0_56, %c0_57] : memref<2x8x32xf32, #tpu.memory_space<vmem>>, vector<1x8x32xf32>
    %86 = vector.shape_cast %85 : vector<1x8x32xf32> to vector<8x32xf32>
    %87 = vector.shape_cast %81 : vector<8x32xf32> to vector<1x8x32xf32>
    tpu.vector_store %arg10[%c1_55, %c0_56, %c0_57], %87 {strides = array<i32>} : memref<2x8x32xf32, #tpu.memory_space<vmem>>, vector<1x8x32xf32>,
    %c0_58 = arith.constant 0 : index
    %c0_59 = arith.constant 0 : index
    %c0_60 = arith.constant 0 : index
    %88 = vector.load %arg10[%c0_58, %c0_59, %c0_60] : memref<2x8x32xf32, #tpu.memory_space<vmem>>, vector<1x8x32xf32>
    %89 = vector.shape_cast %88 : vector<1x8x32xf32> to vector<8x32xf32>
    %90 = arith.truncf %89 : vector<8x32xf32> to vector<8x32xbf16>
    %c8 = arith.constant 8 : index
    %c0_61 = arith.constant 0 : index
    %91 = vector.load %arg13[%c8, %c0_61] : memref<64x128xf32, #tpu.memory_space<vmem>>, vector<8x128xf32>
    %c0_62 = arith.constant 0 : index
    %c0_63 = arith.constant 0 : index
    %c0_64 = arith.constant 0 : index
    %92 = vector.load %arg5[%c0_62, %c0_63, %c0_64] : memref<2x32x128xbf16, #tpu.memory_space<vmem>>, vector<1x32x128xbf16>
    %93 = vector.shape_cast %92 : vector<1x32x128xbf16> to vector<32x128xbf16>
    %cst_65 = arith.constant dense<0.000000e+00> : vector<8x128xf32>
    %94 = tpu.matmul %90, %93, %cst_65 {dimension_numbers = #tpu.dot_dimension_numbers<[1], [0], [0], [1], [0, 0, 1, 1], [], []>} : vector<8x32xbf16>, vector<32x128xbf16>, vector<8x128xf32> -> vector<8x128xf32>
    %95 = arith.addf %91, %94 : vector<8x128xf32>
    %96 = vector.extract_strided_slice %95 {offsets = [0, 0], sizes = [8, 96], strides = [1, 1]} : vector<8x128xf32> to vector<8x96xf32>
    %97 = arith.negf %96 : vector<8x96xf32>
    %98 = math.exp %97 : vector<8x96xf32>
    %cst_66 = arith.constant 1.000000e+00 : f32
    %99 = vector.broadcast %cst_66 : f32 to vector<8x96xf32>
    %100 = arith.addf %99, %98 : vector<8x96xf32>
    %101 = arith.divf %99, %100 : vector<8x96xf32>
    %102 = vector.extract_strided_slice %95 {offsets = [0, 96], sizes = [8, 32], strides = [1, 1]} : vector<8x128xf32> to vector<8x32xf32>
    %103 = math.tanh %102 : vector<8x32xf32>
    %104 = vector.extract_strided_slice %101 {offsets = [0, 0], sizes = [8, 32], strides = [1, 1]} : vector<8x96xf32> to vector<8x32xf32>
    %105 = vector.extract_strided_slice %101 {offsets = [0, 32], sizes = [8, 32], strides = [1, 1]} : vector<8x96xf32> to vector<8x32xf32>
    %106 = vector.extract_strided_slice %101 {offsets = [0, 64], sizes = [8, 32], strides = [1, 1]} : vector<8x96xf32> to vector<8x32xf32>
    %c0_67 = arith.constant 0 : index
    %c0_68 = arith.constant 0 : index
    %c0_69 = arith.constant 0 : index
    %107 = vector.load %arg11[%c0_67, %c0_68, %c0_69] : memref<2x8x32xf32, #tpu.memory_space<vmem>>, vector<1x8x32xf32>
    %108 = vector.shape_cast %107 : vector<1x8x32xf32> to vector<8x32xf32>
    %109 = arith.mulf %105, %108 : vector<8x32xf32>
    %110 = arith.mulf %104, %103 : vector<8x32xf32>
    %111 = arith.addf %109, %110 : vector<8x32xf32>
    %112 = math.tanh %111 : vector<8x32xf32>
    %113 = arith.mulf %106, %112 : vector<8x32xf32>
    %c0_70 = arith.constant 0 : index
    %c0_71 = arith.constant 0 : index
    %c0_72 = arith.constant 0 : index
    %114 = vector.load %arg11[%c0_70, %c0_71, %c0_72] : memref<2x8x32xf32, #tpu.memory_space<vmem>>, vector<1x8x32xf32>
    %115 = vector.shape_cast %114 : vector<1x8x32xf32> to vector<8x32xf32>
    %116 = vector.shape_cast %111 : vector<8x32xf32> to vector<1x8x32xf32>
    tpu.vector_store %arg11[%c0_70, %c0_71, %c0_72], %116 {strides = array<i32>} : memref<2x8x32xf32, #tpu.memory_space<vmem>>, vector<1x8x32xf32>,
    %c0_73 = arith.constant 0 : index
    %c0_74 = arith.constant 0 : index
    %c0_75 = arith.constant 0 : index
    %117 = vector.load %arg10[%c0_73, %c0_74, %c0_75] : memref<2x8x32xf32, #tpu.memory_space<vmem>>, vector<1x8x32xf32>
    %118 = vector.shape_cast %117 : vector<1x8x32xf32> to vector<8x32xf32>
    %119 = vector.shape_cast %113 : vector<8x32xf32> to vector<1x8x32xf32>
    tpu.vector_store %arg10[%c0_73, %c0_74, %c0_75], %119 {strides = array<i32>} : memref<2x8x32xf32, #tpu.memory_space<vmem>>, vector<1x8x32xf32>,
    %c0_76 = arith.constant 0 : index
    %c0_77 = arith.constant 0 : index
    %c0_78 = arith.constant 0 : index
    %120 = vector.load %arg12[%c0_76, %c0_77, %c0_78] : memref<1x8x32xf32, #tpu.memory_space<vmem>>, vector<1x8x32xf32>
    %121 = vector.shape_cast %120 : vector<1x8x32xf32> to vector<8x32xf32>
    %122 = vector.shape_cast %113 : vector<8x32xf32> to vector<1x8x32xf32>
    tpu.vector_store %arg12[%c0_76, %c0_77, %c0_78], %122 {strides = array<i32>} : memref<1x8x32xf32, #tpu.memory_space<vmem>>, vector<1x8x32xf32>,
    %c1_79 = arith.constant 1 : index
    %c0_80 = arith.constant 0 : index
    %c0_81 = arith.constant 0 : index
    %123 = vector.load %arg10[%c1_79, %c0_80, %c0_81] : memref<2x8x32xf32, #tpu.memory_space<vmem>>, vector<1x8x32xf32>
    %124 = vector.shape_cast %123 : vector<1x8x32xf32> to vector<8x32xf32>
    %125 = arith.truncf %124 : vector<8x32xf32> to vector<8x32xbf16>
    %c0_82 = arith.constant 0 : index
    %c0_83 = arith.constant 0 : index
    %c0_84 = arith.constant 0 : index
    %126 = vector.load %arg12[%c0_82, %c0_83, %c0_84] : memref<1x8x32xf32, #tpu.memory_space<vmem>>, vector<1x8x32xf32>
    %127 = vector.shape_cast %126 : vector<1x8x32xf32> to vector<8x32xf32>
    %128 = arith.truncf %127 : vector<8x32xf32> to vector<8x32xbf16>
    %c0_85 = arith.constant 0 : index
    %c0_86 = arith.constant 0 : index
    %c0_87 = arith.constant 0 : index
    %129 = vector.load %arg4[%c0_85, %c0_86, %c0_87] : memref<1x32x128xbf16, #tpu.memory_space<vmem>>, vector<1x32x128xbf16>
    %130 = vector.shape_cast %129 : vector<1x32x128xbf16> to vector<32x128xbf16>
    %cst_88 = arith.constant dense<0.000000e+00> : vector<8x128xf32>
    %131 = tpu.matmul %128, %130, %cst_88 {dimension_numbers = #tpu.dot_dimension_numbers<[1], [0], [0], [1], [0, 0, 1, 1], [], []>} : vector<8x32xbf16>, vector<32x128xbf16>, vector<8x128xf32> -> vector<8x128xf32>
    %c1_89 = arith.constant 1 : index
    %c0_90 = arith.constant 0 : index
    %c0_91 = arith.constant 0 : index
    %132 = vector.load %arg6[%c1_89, %c0_90, %c0_91] : memref<2x1x128xf32, #tpu.memory_space<vmem>>, vector<1x1x128xf32>
    %133 = vector.shape_cast %132 : vector<1x1x128xf32> to vector<1x128xf32>
    %134 = vector.broadcast %133 : vector<1x128xf32> to vector<8x128xf32>
    %135 = arith.addf %131, %134 : vector<8x128xf32>
    %c1_92 = arith.constant 1 : index
    %c0_93 = arith.constant 0 : index
    %c0_94 = arith.constant 0 : index
    %136 = vector.load %arg5[%c1_92, %c0_93, %c0_94] : memref<2x32x128xbf16, #tpu.memory_space<vmem>>, vector<1x32x128xbf16>
    %137 = vector.shape_cast %136 : vector<1x32x128xbf16> to vector<32x128xbf16>
    %cst_95 = arith.constant dense<0.000000e+00> : vector<8x128xf32>
    %138 = tpu.matmul %125, %137, %cst_95 {dimension_numbers = #tpu.dot_dimension_numbers<[1], [0], [0], [1], [0, 0, 1, 1], [], []>} : vector<8x32xbf16>, vector<32x128xbf16>, vector<8x128xf32> -> vector<8x128xf32>
    %139 = arith.addf %135, %138 : vector<8x128xf32>
    %140 = vector.extract_strided_slice %139 {offsets = [0, 0], sizes = [8, 96], strides = [1, 1]} : vector<8x128xf32> to vector<8x96xf32>
    %141 = arith.negf %140 : vector<8x96xf32>
    %142 = math.exp %141 : vector<8x96xf32>
    %cst_96 = arith.constant 1.000000e+00 : f32
    %143 = vector.broadcast %cst_96 : f32 to vector<8x96xf32>
    %144 = arith.addf %143, %142 : vector<8x96xf32>
    %145 = arith.divf %143, %144 : vector<8x96xf32>
    %146 = vector.extract_strided_slice %139 {offsets = [0, 96], sizes = [8, 32], strides = [1, 1]} : vector<8x128xf32> to vector<8x32xf32>
    %147 = math.tanh %146 : vector<8x32xf32>
    %148 = vector.extract_strided_slice %145 {offsets = [0, 0], sizes = [8, 32], strides = [1, 1]} : vector<8x96xf32> to vector<8x32xf32>
    %149 = vector.extract_strided_slice %145 {offsets = [0, 32], sizes = [8, 32], strides = [1, 1]} : vector<8x96xf32> to vector<8x32xf32>
    %150 = vector.extract_strided_slice %145 {offsets = [0, 64], sizes = [8, 32], strides = [1, 1]} : vector<8x96xf32> to vector<8x32xf32>
    %c1_97 = arith.constant 1 : index
    %c0_98 = arith.constant 0 : index
    %c0_99 = arith.constant 0 : index
    %151 = vector.load %arg11[%c1_97, %c0_98, %c0_99] : memref<2x8x32xf32, #tpu.memory_space<vmem>>, vector<1x8x32xf32>
    %152 = vector.shape_cast %151 : vector<1x8x32xf32> to vector<8x32xf32>
    %153 = arith.mulf %149, %152 : vector<8x32xf32>
    %154 = arith.mulf %148, %147 : vector<8x32xf32>
    %155 = arith.addf %153, %154 : vector<8x32xf32>
    %156 = math.tanh %155 : vector<8x32xf32>
    %157 = arith.mulf %150, %156 : vector<8x32xf32>
    %c1_100 = arith.constant 1 : index
    %c0_101 = arith.constant 0 : index
    %c0_102 = arith.constant 0 : index
    %158 = vector.load %arg11[%c1_100, %c0_101, %c0_102] : memref<2x8x32xf32, #tpu.memory_space<vmem>>, vector<1x8x32xf32>
    %159 = vector.shape_cast %158 : vector<1x8x32xf32> to vector<8x32xf32>
    %160 = vector.shape_cast %155 : vector<8x32xf32> to vector<1x8x32xf32>
    tpu.vector_store %arg11[%c1_100, %c0_101, %c0_102], %160 {strides = array<i32>} : memref<2x8x32xf32, #tpu.memory_space<vmem>>, vector<1x8x32xf32>,
    %c1_103 = arith.constant 1 : index
    %c0_104 = arith.constant 0 : index
    %c0_105 = arith.constant 0 : index
    %161 = vector.load %arg10[%c1_103, %c0_104, %c0_105] : memref<2x8x32xf32, #tpu.memory_space<vmem>>, vector<1x8x32xf32>
    %162 = vector.shape_cast %161 : vector<1x8x32xf32> to vector<8x32xf32>
    %163 = vector.shape_cast %157 : vector<8x32xf32> to vector<1x8x32xf32>
    tpu.vector_store %arg10[%c1_103, %c0_104, %c0_105], %163 {strides = array<i32>} : memref<2x8x32xf32, #tpu.memory_space<vmem>>, vector<1x8x32xf32>,
    %c0_106 = arith.constant 0 : index
    %c0_107 = arith.constant 0 : index
    %c0_108 = arith.constant 0 : index
    %164 = vector.load %arg10[%c0_106, %c0_107, %c0_108] : memref<2x8x32xf32, #tpu.memory_space<vmem>>, vector<1x8x32xf32>
    %165 = vector.shape_cast %164 : vector<1x8x32xf32> to vector<8x32xf32>
    %166 = arith.truncf %165 : vector<8x32xf32> to vector<8x32xbf16>
    %c16 = arith.constant 16 : index
    %c0_109 = arith.constant 0 : index
    %167 = vector.load %arg13[%c16, %c0_109] : memref<64x128xf32, #tpu.memory_space<vmem>>, vector<8x128xf32>
    %c0_110 = arith.constant 0 : index
    %c0_111 = arith.constant 0 : index
    %c0_112 = arith.constant 0 : index
    %168 = vector.load %arg5[%c0_110, %c0_111, %c0_112] : memref<2x32x128xbf16, #tpu.memory_space<vmem>>, vector<1x32x128xbf16>
    %169 = vector.shape_cast %168 : vector<1x32x128xbf16> to vector<32x128xbf16>
    %cst_113 = arith.constant dense<0.000000e+00> : vector<8x128xf32>
    %170 = tpu.matmul %166, %169, %cst_113 {dimension_numbers = #tpu.dot_dimension_numbers<[1], [0], [0], [1], [0, 0, 1, 1], [], []>} : vector<8x32xbf16>, vector<32x128xbf16>, vector<8x128xf32> -> vector<8x128xf32>
    %171 = arith.addf %167, %170 : vector<8x128xf32>
    %172 = vector.extract_strided_slice %171 {offsets = [0, 0], sizes = [8, 96], strides = [1, 1]} : vector<8x128xf32> to vector<8x96xf32>
    %173 = arith.negf %172 : vector<8x96xf32>
    %174 = math.exp %173 : vector<8x96xf32>
    %cst_114 = arith.constant 1.000000e+00 : f32
    %175 = vector.broadcast %cst_114 : f32 to vector<8x96xf32>
    %176 = arith.addf %175, %174 : vector<8x96xf32>
    %177 = arith.divf %175, %176 : vector<8x96xf32>
    %178 = vector.extract_strided_slice %171 {offsets = [0, 96], sizes = [8, 32], strides = [1, 1]} : vector<8x128xf32> to vector<8x32xf32>
    %179 = math.tanh %178 : vector<8x32xf32>
    %180 = vector.extract_strided_slice %177 {offsets = [0, 0], sizes = [8, 32], strides = [1, 1]} : vector<8x96xf32> to vector<8x32xf32>
    %181 = vector.extract_strided_slice %177 {offsets = [0, 32], sizes = [8, 32], strides = [1, 1]} : vector<8x96xf32> to vector<8x32xf32>
    %182 = vector.extract_strided_slice %177 {offsets = [0, 64], sizes = [8, 32], strides = [1, 1]} : vector<8x96xf32> to vector<8x32xf32>
    %c0_115 = arith.constant 0 : index
    %c0_116 = arith.constant 0 : index
    %c0_117 = arith.constant 0 : index
    %183 = vector.load %arg11[%c0_115, %c0_116, %c0_117] : memref<2x8x32xf32, #tpu.memory_space<vmem>>, vector<1x8x32xf32>
    %184 = vector.shape_cast %183 : vector<1x8x32xf32> to vector<8x32xf32>
    %185 = arith.mulf %181, %184 : vector<8x32xf32>
    %186 = arith.mulf %180, %179 : vector<8x32xf32>
    %187 = arith.addf %185, %186 : vector<8x32xf32>
    %188 = math.tanh %187 : vector<8x32xf32>
    %189 = arith.mulf %182, %188 : vector<8x32xf32>
    %c0_118 = arith.constant 0 : index
    %c0_119 = arith.constant 0 : index
    %c0_120 = arith.constant 0 : index
    %190 = vector.load %arg11[%c0_118, %c0_119, %c0_120] : memref<2x8x32xf32, #tpu.memory_space<vmem>>, vector<1x8x32xf32>
    %191 = vector.shape_cast %190 : vector<1x8x32xf32> to vector<8x32xf32>
    %192 = vector.shape_cast %187 : vector<8x32xf32> to vector<1x8x32xf32>
    tpu.vector_store %arg11[%c0_118, %c0_119, %c0_120], %192 {strides = array<i32>} : memref<2x8x32xf32, #tpu.memory_space<vmem>>, vector<1x8x32xf32>,
    %c0_121 = arith.constant 0 : index
    %c0_122 = arith.constant 0 : index
    %c0_123 = arith.constant 0 : index
    %193 = vector.load %arg10[%c0_121, %c0_122, %c0_123] : memref<2x8x32xf32, #tpu.memory_space<vmem>>, vector<1x8x32xf32>
    %194 = vector.shape_cast %193 : vector<1x8x32xf32> to vector<8x32xf32>
    %195 = vector.shape_cast %189 : vector<8x32xf32> to vector<1x8x32xf32>
    tpu.vector_store %arg10[%c0_121, %c0_122, %c0_123], %195 {strides = array<i32>} : memref<2x8x32xf32, #tpu.memory_space<vmem>>, vector<1x8x32xf32>,
    %c0_124 = arith.constant 0 : index
    %c0_125 = arith.constant 0 : index
    %c0_126 = arith.constant 0 : index
    %196 = vector.load %arg12[%c0_124, %c0_125, %c0_126] : memref<1x8x32xf32, #tpu.memory_space<vmem>>, vector<1x8x32xf32>
    %197 = vector.shape_cast %196 : vector<1x8x32xf32> to vector<8x32xf32>
    %198 = vector.shape_cast %189 : vector<8x32xf32> to vector<1x8x32xf32>
    tpu.vector_store %arg12[%c0_124, %c0_125, %c0_126], %198 {strides = array<i32>} : memref<1x8x32xf32, #tpu.memory_space<vmem>>, vector<1x8x32xf32>,
    %c1_127 = arith.constant 1 : index
    %c0_128 = arith.constant 0 : index
    %c0_129 = arith.constant 0 : index
    %199 = vector.load %arg10[%c1_127, %c0_128, %c0_129] : memref<2x8x32xf32, #tpu.memory_space<vmem>>, vector<1x8x32xf32>
    %200 = vector.shape_cast %199 : vector<1x8x32xf32> to vector<8x32xf32>
    %201 = arith.truncf %200 : vector<8x32xf32> to vector<8x32xbf16>
    %c0_130 = arith.constant 0 : index
    %c0_131 = arith.constant 0 : index
    %c0_132 = arith.constant 0 : index
    %202 = vector.load %arg12[%c0_130, %c0_131, %c0_132] : memref<1x8x32xf32, #tpu.memory_space<vmem>>, vector<1x8x32xf32>
    %203 = vector.shape_cast %202 : vector<1x8x32xf32> to vector<8x32xf32>
    %204 = arith.truncf %203 : vector<8x32xf32> to vector<8x32xbf16>
    %c0_133 = arith.constant 0 : index
    %c0_134 = arith.constant 0 : index
    %c0_135 = arith.constant 0 : index
    %205 = vector.load %arg4[%c0_133, %c0_134, %c0_135] : memref<1x32x128xbf16, #tpu.memory_space<vmem>>, vector<1x32x128xbf16>
    %206 = vector.shape_cast %205 : vector<1x32x128xbf16> to vector<32x128xbf16>
    %cst_136 = arith.constant dense<0.000000e+00> : vector<8x128xf32>
    %207 = tpu.matmul %204, %206, %cst_136 {dimension_numbers = #tpu.dot_dimension_numbers<[1], [0], [0], [1], [0, 0, 1, 1], [], []>} : vector<8x32xbf16>, vector<32x128xbf16>, vector<8x128xf32> -> vector<8x128xf32>
    %c1_137 = arith.constant 1 : index
    %c0_138 = arith.constant 0 : index
    %c0_139 = arith.constant 0 : index
    %208 = vector.load %arg6[%c1_137, %c0_138, %c0_139] : memref<2x1x128xf32, #tpu.memory_space<vmem>>, vector<1x1x128xf32>
    %209 = vector.shape_cast %208 : vector<1x1x128xf32> to vector<1x128xf32>
    %210 = vector.broadcast %209 : vector<1x128xf32> to vector<8x128xf32>
    %211 = arith.addf %207, %210 : vector<8x128xf32>
    %c1_140 = arith.constant 1 : index
    %c0_141 = arith.constant 0 : index
    %c0_142 = arith.constant 0 : index
    %212 = vector.load %arg5[%c1_140, %c0_141, %c0_142] : memref<2x32x128xbf16, #tpu.memory_space<vmem>>, vector<1x32x128xbf16>
    %213 = vector.shape_cast %212 : vector<1x32x128xbf16> to vector<32x128xbf16>
    %cst_143 = arith.constant dense<0.000000e+00> : vector<8x128xf32>
    %214 = tpu.matmul %201, %213, %cst_143 {dimension_numbers = #tpu.dot_dimension_numbers<[1], [0], [0], [1], [0, 0, 1, 1], [], []>} : vector<8x32xbf16>, vector<32x128xbf16>, vector<8x128xf32> -> vector<8x128xf32>
    %215 = arith.addf %211, %214 : vector<8x128xf32>
    %216 = vector.extract_strided_slice %215 {offsets = [0, 0], sizes = [8, 96], strides = [1, 1]} : vector<8x128xf32> to vector<8x96xf32>
    %217 = arith.negf %216 : vector<8x96xf32>
    %218 = math.exp %217 : vector<8x96xf32>
    %cst_144 = arith.constant 1.000000e+00 : f32
    %219 = vector.broadcast %cst_144 : f32 to vector<8x96xf32>
    %220 = arith.addf %219, %218 : vector<8x96xf32>
    %221 = arith.divf %219, %220 : vector<8x96xf32>
    %222 = vector.extract_strided_slice %215 {offsets = [0, 96], sizes = [8, 32], strides = [1, 1]} : vector<8x128xf32> to vector<8x32xf32>
    %223 = math.tanh %222 : vector<8x32xf32>
    %224 = vector.extract_strided_slice %221 {offsets = [0, 0], sizes = [8, 32], strides = [1, 1]} : vector<8x96xf32> to vector<8x32xf32>
    %225 = vector.extract_strided_slice %221 {offsets = [0, 32], sizes = [8, 32], strides = [1, 1]} : vector<8x96xf32> to vector<8x32xf32>
    %226 = vector.extract_strided_slice %221 {offsets = [0, 64], sizes = [8, 32], strides = [1, 1]} : vector<8x96xf32> to vector<8x32xf32>
    %c1_145 = arith.constant 1 : index
    %c0_146 = arith.constant 0 : index
    %c0_147 = arith.constant 0 : index
    %227 = vector.load %arg11[%c1_145, %c0_146, %c0_147] : memref<2x8x32xf32, #tpu.memory_space<vmem>>, vector<1x8x32xf32>
    %228 = vector.shape_cast %227 : vector<1x8x32xf32> to vector<8x32xf32>
    %229 = arith.mulf %225, %228 : vector<8x32xf32>
    %230 = arith.mulf %224, %223 : vector<8x32xf32>
    %231 = arith.addf %229, %230 : vector<8x32xf32>
    %232 = math.tanh %231 : vector<8x32xf32>
    %233 = arith.mulf %226, %232 : vector<8x32xf32>
    %c1_148 = arith.constant 1 : index
    %c0_149 = arith.constant 0 : index
    %c0_150 = arith.constant 0 : index
    %234 = vector.load %arg11[%c1_148, %c0_149, %c0_150] : memref<2x8x32xf32, #tpu.memory_space<vmem>>, vector<1x8x32xf32>
    %235 = vector.shape_cast %234 : vector<1x8x32xf32> to vector<8x32xf32>
    %236 = vector.shape_cast %231 : vector<8x32xf32> to vector<1x8x32xf32>
    tpu.vector_store %arg11[%c1_148, %c0_149, %c0_150], %236 {strides = array<i32>} : memref<2x8x32xf32, #tpu.memory_space<vmem>>, vector<1x8x32xf32>,
    %c1_151 = arith.constant 1 : index
    %c0_152 = arith.constant 0 : index
    %c0_153 = arith.constant 0 : index
    %237 = vector.load %arg10[%c1_151, %c0_152, %c0_153] : memref<2x8x32xf32, #tpu.memory_space<vmem>>, vector<1x8x32xf32>
    %238 = vector.shape_cast %237 : vector<1x8x32xf32> to vector<8x32xf32>
    %239 = vector.shape_cast %233 : vector<8x32xf32> to vector<1x8x32xf32>
    tpu.vector_store %arg10[%c1_151, %c0_152, %c0_153], %239 {strides = array<i32>} : memref<2x8x32xf32, #tpu.memory_space<vmem>>, vector<1x8x32xf32>,
    %c0_154 = arith.constant 0 : index
    %c0_155 = arith.constant 0 : index
    %c0_156 = arith.constant 0 : index
    %240 = vector.load %arg10[%c0_154, %c0_155, %c0_156] : memref<2x8x32xf32, #tpu.memory_space<vmem>>, vector<1x8x32xf32>
    %241 = vector.shape_cast %240 : vector<1x8x32xf32> to vector<8x32xf32>
    %242 = arith.truncf %241 : vector<8x32xf32> to vector<8x32xbf16>
    %c24 = arith.constant 24 : index
    %c0_157 = arith.constant 0 : index
    %243 = vector.load %arg13[%c24, %c0_157] : memref<64x128xf32, #tpu.memory_space<vmem>>, vector<8x128xf32>
    %c0_158 = arith.constant 0 : index
    %c0_159 = arith.constant 0 : index
    %c0_160 = arith.constant 0 : index
    %244 = vector.load %arg5[%c0_158, %c0_159, %c0_160] : memref<2x32x128xbf16, #tpu.memory_space<vmem>>, vector<1x32x128xbf16>
    %245 = vector.shape_cast %244 : vector<1x32x128xbf16> to vector<32x128xbf16>
    %cst_161 = arith.constant dense<0.000000e+00> : vector<8x128xf32>
    %246 = tpu.matmul %242, %245, %cst_161 {dimension_numbers = #tpu.dot_dimension_numbers<[1], [0], [0], [1], [0, 0, 1, 1], [], []>} : vector<8x32xbf16>, vector<32x128xbf16>, vector<8x128xf32> -> vector<8x128xf32>
    %247 = arith.addf %243, %246 : vector<8x128xf32>
    %248 = vector.extract_strided_slice %247 {offsets = [0, 0], sizes = [8, 96], strides = [1, 1]} : vector<8x128xf32> to vector<8x96xf32>
    %249 = arith.negf %248 : vector<8x96xf32>
    %250 = math.exp %249 : vector<8x96xf32>
    %cst_162 = arith.constant 1.000000e+00 : f32
    %251 = vector.broadcast %cst_162 : f32 to vector<8x96xf32>
    %252 = arith.addf %251, %250 : vector<8x96xf32>
    %253 = arith.divf %251, %252 : vector<8x96xf32>
    %254 = vector.extract_strided_slice %247 {offsets = [0, 96], sizes = [8, 32], strides = [1, 1]} : vector<8x128xf32> to vector<8x32xf32>
    %255 = math.tanh %254 : vector<8x32xf32>
    %256 = vector.extract_strided_slice %253 {offsets = [0, 0], sizes = [8, 32], strides = [1, 1]} : vector<8x96xf32> to vector<8x32xf32>
    %257 = vector.extract_strided_slice %253 {offsets = [0, 32], sizes = [8, 32], strides = [1, 1]} : vector<8x96xf32> to vector<8x32xf32>
    %258 = vector.extract_strided_slice %253 {offsets = [0, 64], sizes = [8, 32], strides = [1, 1]} : vector<8x96xf32> to vector<8x32xf32>
    %c0_163 = arith.constant 0 : index
    %c0_164 = arith.constant 0 : index
    %c0_165 = arith.constant 0 : index
    %259 = vector.load %arg11[%c0_163, %c0_164, %c0_165] : memref<2x8x32xf32, #tpu.memory_space<vmem>>, vector<1x8x32xf32>
    %260 = vector.shape_cast %259 : vector<1x8x32xf32> to vector<8x32xf32>
    %261 = arith.mulf %257, %260 : vector<8x32xf32>
    %262 = arith.mulf %256, %255 : vector<8x32xf32>
    %263 = arith.addf %261, %262 : vector<8x32xf32>
    %264 = math.tanh %263 : vector<8x32xf32>
    %265 = arith.mulf %258, %264 : vector<8x32xf32>
    %c0_166 = arith.constant 0 : index
    %c0_167 = arith.constant 0 : index
    %c0_168 = arith.constant 0 : index
    %266 = vector.load %arg11[%c0_166, %c0_167, %c0_168] : memref<2x8x32xf32, #tpu.memory_space<vmem>>, vector<1x8x32xf32>
    %267 = vector.shape_cast %266 : vector<1x8x32xf32> to vector<8x32xf32>
    %268 = vector.shape_cast %263 : vector<8x32xf32> to vector<1x8x32xf32>
    tpu.vector_store %arg11[%c0_166, %c0_167, %c0_168], %268 {strides = array<i32>} : memref<2x8x32xf32, #tpu.memory_space<vmem>>, vector<1x8x32xf32>,
    %c0_169 = arith.constant 0 : index
    %c0_170 = arith.constant 0 : index
    %c0_171 = arith.constant 0 : index
    %269 = vector.load %arg10[%c0_169, %c0_170, %c0_171] : memref<2x8x32xf32, #tpu.memory_space<vmem>>, vector<1x8x32xf32>
    %270 = vector.shape_cast %269 : vector<1x8x32xf32> to vector<8x32xf32>
    %271 = vector.shape_cast %265 : vector<8x32xf32> to vector<1x8x32xf32>
    tpu.vector_store %arg10[%c0_169, %c0_170, %c0_171], %271 {strides = array<i32>} : memref<2x8x32xf32, #tpu.memory_space<vmem>>, vector<1x8x32xf32>,
    %c0_172 = arith.constant 0 : index
    %c0_173 = arith.constant 0 : index
    %c0_174 = arith.constant 0 : index
    %272 = vector.load %arg12[%c0_172, %c0_173, %c0_174] : memref<1x8x32xf32, #tpu.memory_space<vmem>>, vector<1x8x32xf32>
    %273 = vector.shape_cast %272 : vector<1x8x32xf32> to vector<8x32xf32>
    %274 = vector.shape_cast %265 : vector<8x32xf32> to vector<1x8x32xf32>
    tpu.vector_store %arg12[%c0_172, %c0_173, %c0_174], %274 {strides = array<i32>} : memref<1x8x32xf32, #tpu.memory_space<vmem>>, vector<1x8x32xf32>,
    %c1_175 = arith.constant 1 : index
    %c0_176 = arith.constant 0 : index
    %c0_177 = arith.constant 0 : index
    %275 = vector.load %arg10[%c1_175, %c0_176, %c0_177] : memref<2x8x32xf32, #tpu.memory_space<vmem>>, vector<1x8x32xf32>
    %276 = vector.shape_cast %275 : vector<1x8x32xf32> to vector<8x32xf32>
    %277 = arith.truncf %276 : vector<8x32xf32> to vector<8x32xbf16>
    %c0_178 = arith.constant 0 : index
    %c0_179 = arith.constant 0 : index
    %c0_180 = arith.constant 0 : index
    %278 = vector.load %arg12[%c0_178, %c0_179, %c0_180] : memref<1x8x32xf32, #tpu.memory_space<vmem>>, vector<1x8x32xf32>
    %279 = vector.shape_cast %278 : vector<1x8x32xf32> to vector<8x32xf32>
    %280 = arith.truncf %279 : vector<8x32xf32> to vector<8x32xbf16>
    %c0_181 = arith.constant 0 : index
    %c0_182 = arith.constant 0 : index
    %c0_183 = arith.constant 0 : index
    %281 = vector.load %arg4[%c0_181, %c0_182, %c0_183] : memref<1x32x128xbf16, #tpu.memory_space<vmem>>, vector<1x32x128xbf16>
    %282 = vector.shape_cast %281 : vector<1x32x128xbf16> to vector<32x128xbf16>
    %cst_184 = arith.constant dense<0.000000e+00> : vector<8x128xf32>
    %283 = tpu.matmul %280, %282, %cst_184 {dimension_numbers = #tpu.dot_dimension_numbers<[1], [0], [0], [1], [0, 0, 1, 1], [], []>} : vector<8x32xbf16>, vector<32x128xbf16>, vector<8x128xf32> -> vector<8x128xf32>
    %c1_185 = arith.constant 1 : index
    %c0_186 = arith.constant 0 : index
    %c0_187 = arith.constant 0 : index
    %284 = vector.load %arg6[%c1_185, %c0_186, %c0_187] : memref<2x1x128xf32, #tpu.memory_space<vmem>>, vector<1x1x128xf32>
    %285 = vector.shape_cast %284 : vector<1x1x128xf32> to vector<1x128xf32>
    %286 = vector.broadcast %285 : vector<1x128xf32> to vector<8x128xf32>
    %287 = arith.addf %283, %286 : vector<8x128xf32>
    %c1_188 = arith.constant 1 : index
    %c0_189 = arith.constant 0 : index
    %c0_190 = arith.constant 0 : index
    %288 = vector.load %arg5[%c1_188, %c0_189, %c0_190] : memref<2x32x128xbf16, #tpu.memory_space<vmem>>, vector<1x32x128xbf16>
    %289 = vector.shape_cast %288 : vector<1x32x128xbf16> to vector<32x128xbf16>
    %cst_191 = arith.constant dense<0.000000e+00> : vector<8x128xf32>
    %290 = tpu.matmul %277, %289, %cst_191 {dimension_numbers = #tpu.dot_dimension_numbers<[1], [0], [0], [1], [0, 0, 1, 1], [], []>} : vector<8x32xbf16>, vector<32x128xbf16>, vector<8x128xf32> -> vector<8x128xf32>
    %291 = arith.addf %287, %290 : vector<8x128xf32>
    %292 = vector.extract_strided_slice %291 {offsets = [0, 0], sizes = [8, 96], strides = [1, 1]} : vector<8x128xf32> to vector<8x96xf32>
    %293 = arith.negf %292 : vector<8x96xf32>
    %294 = math.exp %293 : vector<8x96xf32>
    %cst_192 = arith.constant 1.000000e+00 : f32
    %295 = vector.broadcast %cst_192 : f32 to vector<8x96xf32>
    %296 = arith.addf %295, %294 : vector<8x96xf32>
    %297 = arith.divf %295, %296 : vector<8x96xf32>
    %298 = vector.extract_strided_slice %291 {offsets = [0, 96], sizes = [8, 32], strides = [1, 1]} : vector<8x128xf32> to vector<8x32xf32>
    %299 = math.tanh %298 : vector<8x32xf32>
    %300 = vector.extract_strided_slice %297 {offsets = [0, 0], sizes = [8, 32], strides = [1, 1]} : vector<8x96xf32> to vector<8x32xf32>
    %301 = vector.extract_strided_slice %297 {offsets = [0, 32], sizes = [8, 32], strides = [1, 1]} : vector<8x96xf32> to vector<8x32xf32>
    %302 = vector.extract_strided_slice %297 {offsets = [0, 64], sizes = [8, 32], strides = [1, 1]} : vector<8x96xf32> to vector<8x32xf32>
    %c1_193 = arith.constant 1 : index
    %c0_194 = arith.constant 0 : index
    %c0_195 = arith.constant 0 : index
    %303 = vector.load %arg11[%c1_193, %c0_194, %c0_195] : memref<2x8x32xf32, #tpu.memory_space<vmem>>, vector<1x8x32xf32>
    %304 = vector.shape_cast %303 : vector<1x8x32xf32> to vector<8x32xf32>
    %305 = arith.mulf %301, %304 : vector<8x32xf32>
    %306 = arith.mulf %300, %299 : vector<8x32xf32>
    %307 = arith.addf %305, %306 : vector<8x32xf32>
    %308 = math.tanh %307 : vector<8x32xf32>
    %309 = arith.mulf %302, %308 : vector<8x32xf32>
    %c1_196 = arith.constant 1 : index
    %c0_197 = arith.constant 0 : index
    %c0_198 = arith.constant 0 : index
    %310 = vector.load %arg11[%c1_196, %c0_197, %c0_198] : memref<2x8x32xf32, #tpu.memory_space<vmem>>, vector<1x8x32xf32>
    %311 = vector.shape_cast %310 : vector<1x8x32xf32> to vector<8x32xf32>
    %312 = vector.shape_cast %307 : vector<8x32xf32> to vector<1x8x32xf32>
    tpu.vector_store %arg11[%c1_196, %c0_197, %c0_198], %312 {strides = array<i32>} : memref<2x8x32xf32, #tpu.memory_space<vmem>>, vector<1x8x32xf32>,
    %c1_199 = arith.constant 1 : index
    %c0_200 = arith.constant 0 : index
    %c0_201 = arith.constant 0 : index
    %313 = vector.load %arg10[%c1_199, %c0_200, %c0_201] : memref<2x8x32xf32, #tpu.memory_space<vmem>>, vector<1x8x32xf32>
    %314 = vector.shape_cast %313 : vector<1x8x32xf32> to vector<8x32xf32>
    %315 = vector.shape_cast %309 : vector<8x32xf32> to vector<1x8x32xf32>
    tpu.vector_store %arg10[%c1_199, %c0_200, %c0_201], %315 {strides = array<i32>} : memref<2x8x32xf32, #tpu.memory_space<vmem>>, vector<1x8x32xf32>,
    %c0_202 = arith.constant 0 : index
    %c0_203 = arith.constant 0 : index
    %c0_204 = arith.constant 0 : index
    %316 = vector.load %arg10[%c0_202, %c0_203, %c0_204] : memref<2x8x32xf32, #tpu.memory_space<vmem>>, vector<1x8x32xf32>
    %317 = vector.shape_cast %316 : vector<1x8x32xf32> to vector<8x32xf32>
    %318 = arith.truncf %317 : vector<8x32xf32> to vector<8x32xbf16>
    %c32 = arith.constant 32 : index
    %c0_205 = arith.constant 0 : index
    %319 = vector.load %arg13[%c32, %c0_205] : memref<64x128xf32, #tpu.memory_space<vmem>>, vector<8x128xf32>
    %c0_206 = arith.constant 0 : index
    %c0_207 = arith.constant 0 : index
    %c0_208 = arith.constant 0 : index
    %320 = vector.load %arg5[%c0_206, %c0_207, %c0_208] : memref<2x32x128xbf16, #tpu.memory_space<vmem>>, vector<1x32x128xbf16>
    %321 = vector.shape_cast %320 : vector<1x32x128xbf16> to vector<32x128xbf16>
    %cst_209 = arith.constant dense<0.000000e+00> : vector<8x128xf32>
    %322 = tpu.matmul %318, %321, %cst_209 {dimension_numbers = #tpu.dot_dimension_numbers<[1], [0], [0], [1], [0, 0, 1, 1], [], []>} : vector<8x32xbf16>, vector<32x128xbf16>, vector<8x128xf32> -> vector<8x128xf32>
    %323 = arith.addf %319, %322 : vector<8x128xf32>
    %324 = vector.extract_strided_slice %323 {offsets = [0, 0], sizes = [8, 96], strides = [1, 1]} : vector<8x128xf32> to vector<8x96xf32>
    %325 = arith.negf %324 : vector<8x96xf32>
    %326 = math.exp %325 : vector<8x96xf32>
    %cst_210 = arith.constant 1.000000e+00 : f32
    %327 = vector.broadcast %cst_210 : f32 to vector<8x96xf32>
    %328 = arith.addf %327, %326 : vector<8x96xf32>
    %329 = arith.divf %327, %328 : vector<8x96xf32>
    %330 = vector.extract_strided_slice %323 {offsets = [0, 96], sizes = [8, 32], strides = [1, 1]} : vector<8x128xf32> to vector<8x32xf32>
    %331 = math.tanh %330 : vector<8x32xf32>
    %332 = vector.extract_strided_slice %329 {offsets = [0, 0], sizes = [8, 32], strides = [1, 1]} : vector<8x96xf32> to vector<8x32xf32>
    %333 = vector.extract_strided_slice %329 {offsets = [0, 32], sizes = [8, 32], strides = [1, 1]} : vector<8x96xf32> to vector<8x32xf32>
    %334 = vector.extract_strided_slice %329 {offsets = [0, 64], sizes = [8, 32], strides = [1, 1]} : vector<8x96xf32> to vector<8x32xf32>
    %c0_211 = arith.constant 0 : index
    %c0_212 = arith.constant 0 : index
    %c0_213 = arith.constant 0 : index
    %335 = vector.load %arg11[%c0_211, %c0_212, %c0_213] : memref<2x8x32xf32, #tpu.memory_space<vmem>>, vector<1x8x32xf32>
    %336 = vector.shape_cast %335 : vector<1x8x32xf32> to vector<8x32xf32>
    %337 = arith.mulf %333, %336 : vector<8x32xf32>
    %338 = arith.mulf %332, %331 : vector<8x32xf32>
    %339 = arith.addf %337, %338 : vector<8x32xf32>
    %340 = math.tanh %339 : vector<8x32xf32>
    %341 = arith.mulf %334, %340 : vector<8x32xf32>
    %c0_214 = arith.constant 0 : index
    %c0_215 = arith.constant 0 : index
    %c0_216 = arith.constant 0 : index
    %342 = vector.load %arg11[%c0_214, %c0_215, %c0_216] : memref<2x8x32xf32, #tpu.memory_space<vmem>>, vector<1x8x32xf32>
    %343 = vector.shape_cast %342 : vector<1x8x32xf32> to vector<8x32xf32>
    %344 = vector.shape_cast %339 : vector<8x32xf32> to vector<1x8x32xf32>
    tpu.vector_store %arg11[%c0_214, %c0_215, %c0_216], %344 {strides = array<i32>} : memref<2x8x32xf32, #tpu.memory_space<vmem>>, vector<1x8x32xf32>,
    %c0_217 = arith.constant 0 : index
    %c0_218 = arith.constant 0 : index
    %c0_219 = arith.constant 0 : index
    %345 = vector.load %arg10[%c0_217, %c0_218, %c0_219] : memref<2x8x32xf32, #tpu.memory_space<vmem>>, vector<1x8x32xf32>
    %346 = vector.shape_cast %345 : vector<1x8x32xf32> to vector<8x32xf32>
    %347 = vector.shape_cast %341 : vector<8x32xf32> to vector<1x8x32xf32>
    tpu.vector_store %arg10[%c0_217, %c0_218, %c0_219], %347 {strides = array<i32>} : memref<2x8x32xf32, #tpu.memory_space<vmem>>, vector<1x8x32xf32>,
    %c0_220 = arith.constant 0 : index
    %c0_221 = arith.constant 0 : index
    %c0_222 = arith.constant 0 : index
    %348 = vector.load %arg12[%c0_220, %c0_221, %c0_222] : memref<1x8x32xf32, #tpu.memory_space<vmem>>, vector<1x8x32xf32>
    %349 = vector.shape_cast %348 : vector<1x8x32xf32> to vector<8x32xf32>
    %350 = vector.shape_cast %341 : vector<8x32xf32> to vector<1x8x32xf32>
    tpu.vector_store %arg12[%c0_220, %c0_221, %c0_222], %350 {strides = array<i32>} : memref<1x8x32xf32, #tpu.memory_space<vmem>>, vector<1x8x32xf32>,
    %c1_223 = arith.constant 1 : index
    %c0_224 = arith.constant 0 : index
    %c0_225 = arith.constant 0 : index
    %351 = vector.load %arg10[%c1_223, %c0_224, %c0_225] : memref<2x8x32xf32, #tpu.memory_space<vmem>>, vector<1x8x32xf32>
    %352 = vector.shape_cast %351 : vector<1x8x32xf32> to vector<8x32xf32>
    %353 = arith.truncf %352 : vector<8x32xf32> to vector<8x32xbf16>
    %c0_226 = arith.constant 0 : index
    %c0_227 = arith.constant 0 : index
    %c0_228 = arith.constant 0 : index
    %354 = vector.load %arg12[%c0_226, %c0_227, %c0_228] : memref<1x8x32xf32, #tpu.memory_space<vmem>>, vector<1x8x32xf32>
    %355 = vector.shape_cast %354 : vector<1x8x32xf32> to vector<8x32xf32>
    %356 = arith.truncf %355 : vector<8x32xf32> to vector<8x32xbf16>
    %c0_229 = arith.constant 0 : index
    %c0_230 = arith.constant 0 : index
    %c0_231 = arith.constant 0 : index
    %357 = vector.load %arg4[%c0_229, %c0_230, %c0_231] : memref<1x32x128xbf16, #tpu.memory_space<vmem>>, vector<1x32x128xbf16>
    %358 = vector.shape_cast %357 : vector<1x32x128xbf16> to vector<32x128xbf16>
    %cst_232 = arith.constant dense<0.000000e+00> : vector<8x128xf32>
    %359 = tpu.matmul %356, %358, %cst_232 {dimension_numbers = #tpu.dot_dimension_numbers<[1], [0], [0], [1], [0, 0, 1, 1], [], []>} : vector<8x32xbf16>, vector<32x128xbf16>, vector<8x128xf32> -> vector<8x128xf32>
    %c1_233 = arith.constant 1 : index
    %c0_234 = arith.constant 0 : index
    %c0_235 = arith.constant 0 : index
    %360 = vector.load %arg6[%c1_233, %c0_234, %c0_235] : memref<2x1x128xf32, #tpu.memory_space<vmem>>, vector<1x1x128xf32>
    %361 = vector.shape_cast %360 : vector<1x1x128xf32> to vector<1x128xf32>
    %362 = vector.broadcast %361 : vector<1x128xf32> to vector<8x128xf32>
    %363 = arith.addf %359, %362 : vector<8x128xf32>
    %c1_236 = arith.constant 1 : index
    %c0_237 = arith.constant 0 : index
    %c0_238 = arith.constant 0 : index
    %364 = vector.load %arg5[%c1_236, %c0_237, %c0_238] : memref<2x32x128xbf16, #tpu.memory_space<vmem>>, vector<1x32x128xbf16>
    %365 = vector.shape_cast %364 : vector<1x32x128xbf16> to vector<32x128xbf16>
    %cst_239 = arith.constant dense<0.000000e+00> : vector<8x128xf32>
    %366 = tpu.matmul %353, %365, %cst_239 {dimension_numbers = #tpu.dot_dimension_numbers<[1], [0], [0], [1], [0, 0, 1, 1], [], []>} : vector<8x32xbf16>, vector<32x128xbf16>, vector<8x128xf32> -> vector<8x128xf32>
    %367 = arith.addf %363, %366 : vector<8x128xf32>
    %368 = vector.extract_strided_slice %367 {offsets = [0, 0], sizes = [8, 96], strides = [1, 1]} : vector<8x128xf32> to vector<8x96xf32>
    %369 = arith.negf %368 : vector<8x96xf32>
    %370 = math.exp %369 : vector<8x96xf32>
    %cst_240 = arith.constant 1.000000e+00 : f32
    %371 = vector.broadcast %cst_240 : f32 to vector<8x96xf32>
    %372 = arith.addf %371, %370 : vector<8x96xf32>
    %373 = arith.divf %371, %372 : vector<8x96xf32>
    %374 = vector.extract_strided_slice %367 {offsets = [0, 96], sizes = [8, 32], strides = [1, 1]} : vector<8x128xf32> to vector<8x32xf32>
    %375 = math.tanh %374 : vector<8x32xf32>
    %376 = vector.extract_strided_slice %373 {offsets = [0, 0], sizes = [8, 32], strides = [1, 1]} : vector<8x96xf32> to vector<8x32xf32>
    %377 = vector.extract_strided_slice %373 {offsets = [0, 32], sizes = [8, 32], strides = [1, 1]} : vector<8x96xf32> to vector<8x32xf32>
    %378 = vector.extract_strided_slice %373 {offsets = [0, 64], sizes = [8, 32], strides = [1, 1]} : vector<8x96xf32> to vector<8x32xf32>
    %c1_241 = arith.constant 1 : index
    %c0_242 = arith.constant 0 : index
    %c0_243 = arith.constant 0 : index
    %379 = vector.load %arg11[%c1_241, %c0_242, %c0_243] : memref<2x8x32xf32, #tpu.memory_space<vmem>>, vector<1x8x32xf32>
    %380 = vector.shape_cast %379 : vector<1x8x32xf32> to vector<8x32xf32>
    %381 = arith.mulf %377, %380 : vector<8x32xf32>
    %382 = arith.mulf %376, %375 : vector<8x32xf32>
    %383 = arith.addf %381, %382 : vector<8x32xf32>
    %384 = math.tanh %383 : vector<8x32xf32>
    %385 = arith.mulf %378, %384 : vector<8x32xf32>
    %c1_244 = arith.constant 1 : index
    %c0_245 = arith.constant 0 : index
    %c0_246 = arith.constant 0 : index
    %386 = vector.load %arg11[%c1_244, %c0_245, %c0_246] : memref<2x8x32xf32, #tpu.memory_space<vmem>>, vector<1x8x32xf32>
    %387 = vector.shape_cast %386 : vector<1x8x32xf32> to vector<8x32xf32>
    %388 = vector.shape_cast %383 : vector<8x32xf32> to vector<1x8x32xf32>
    tpu.vector_store %arg11[%c1_244, %c0_245, %c0_246], %388 {strides = array<i32>} : memref<2x8x32xf32, #tpu.memory_space<vmem>>, vector<1x8x32xf32>,
    %c1_247 = arith.constant 1 : index
    %c0_248 = arith.constant 0 : index
    %c0_249 = arith.constant 0 : index
    %389 = vector.load %arg10[%c1_247, %c0_248, %c0_249] : memref<2x8x32xf32, #tpu.memory_space<vmem>>, vector<1x8x32xf32>
    %390 = vector.shape_cast %389 : vector<1x8x32xf32> to vector<8x32xf32>
    %391 = vector.shape_cast %385 : vector<8x32xf32> to vector<1x8x32xf32>
    tpu.vector_store %arg10[%c1_247, %c0_248, %c0_249], %391 {strides = array<i32>} : memref<2x8x32xf32, #tpu.memory_space<vmem>>, vector<1x8x32xf32>,
    %c0_250 = arith.constant 0 : index
    %c0_251 = arith.constant 0 : index
    %c0_252 = arith.constant 0 : index
    %392 = vector.load %arg10[%c0_250, %c0_251, %c0_252] : memref<2x8x32xf32, #tpu.memory_space<vmem>>, vector<1x8x32xf32>
    %393 = vector.shape_cast %392 : vector<1x8x32xf32> to vector<8x32xf32>
    %394 = arith.truncf %393 : vector<8x32xf32> to vector<8x32xbf16>
    %c40 = arith.constant 40 : index
    %c0_253 = arith.constant 0 : index
    %395 = vector.load %arg13[%c40, %c0_253] : memref<64x128xf32, #tpu.memory_space<vmem>>, vector<8x128xf32>
    %c0_254 = arith.constant 0 : index
    %c0_255 = arith.constant 0 : index
    %c0_256 = arith.constant 0 : index
    %396 = vector.load %arg5[%c0_254, %c0_255, %c0_256] : memref<2x32x128xbf16, #tpu.memory_space<vmem>>, vector<1x32x128xbf16>
    %397 = vector.shape_cast %396 : vector<1x32x128xbf16> to vector<32x128xbf16>
    %cst_257 = arith.constant dense<0.000000e+00> : vector<8x128xf32>
    %398 = tpu.matmul %394, %397, %cst_257 {dimension_numbers = #tpu.dot_dimension_numbers<[1], [0], [0], [1], [0, 0, 1, 1], [], []>} : vector<8x32xbf16>, vector<32x128xbf16>, vector<8x128xf32> -> vector<8x128xf32>
    %399 = arith.addf %395, %398 : vector<8x128xf32>
    %400 = vector.extract_strided_slice %399 {offsets = [0, 0], sizes = [8, 96], strides = [1, 1]} : vector<8x128xf32> to vector<8x96xf32>
    %401 = arith.negf %400 : vector<8x96xf32>
    %402 = math.exp %401 : vector<8x96xf32>
    %cst_258 = arith.constant 1.000000e+00 : f32
    %403 = vector.broadcast %cst_258 : f32 to vector<8x96xf32>
    %404 = arith.addf %403, %402 : vector<8x96xf32>
    %405 = arith.divf %403, %404 : vector<8x96xf32>
    %406 = vector.extract_strided_slice %399 {offsets = [0, 96], sizes = [8, 32], strides = [1, 1]} : vector<8x128xf32> to vector<8x32xf32>
    %407 = math.tanh %406 : vector<8x32xf32>
    %408 = vector.extract_strided_slice %405 {offsets = [0, 0], sizes = [8, 32], strides = [1, 1]} : vector<8x96xf32> to vector<8x32xf32>
    %409 = vector.extract_strided_slice %405 {offsets = [0, 32], sizes = [8, 32], strides = [1, 1]} : vector<8x96xf32> to vector<8x32xf32>
    %410 = vector.extract_strided_slice %405 {offsets = [0, 64], sizes = [8, 32], strides = [1, 1]} : vector<8x96xf32> to vector<8x32xf32>
    %c0_259 = arith.constant 0 : index
    %c0_260 = arith.constant 0 : index
    %c0_261 = arith.constant 0 : index
    %411 = vector.load %arg11[%c0_259, %c0_260, %c0_261] : memref<2x8x32xf32, #tpu.memory_space<vmem>>, vector<1x8x32xf32>
    %412 = vector.shape_cast %411 : vector<1x8x32xf32> to vector<8x32xf32>
    %413 = arith.mulf %409, %412 : vector<8x32xf32>
    %414 = arith.mulf %408, %407 : vector<8x32xf32>
    %415 = arith.addf %413, %414 : vector<8x32xf32>
    %416 = math.tanh %415 : vector<8x32xf32>
    %417 = arith.mulf %410, %416 : vector<8x32xf32>
    %c0_262 = arith.constant 0 : index
    %c0_263 = arith.constant 0 : index
    %c0_264 = arith.constant 0 : index
    %418 = vector.load %arg11[%c0_262, %c0_263, %c0_264] : memref<2x8x32xf32, #tpu.memory_space<vmem>>, vector<1x8x32xf32>
    %419 = vector.shape_cast %418 : vector<1x8x32xf32> to vector<8x32xf32>
    %420 = vector.shape_cast %415 : vector<8x32xf32> to vector<1x8x32xf32>
    tpu.vector_store %arg11[%c0_262, %c0_263, %c0_264], %420 {strides = array<i32>} : memref<2x8x32xf32, #tpu.memory_space<vmem>>, vector<1x8x32xf32>,
    %c0_265 = arith.constant 0 : index
    %c0_266 = arith.constant 0 : index
    %c0_267 = arith.constant 0 : index
    %421 = vector.load %arg10[%c0_265, %c0_266, %c0_267] : memref<2x8x32xf32, #tpu.memory_space<vmem>>, vector<1x8x32xf32>
    %422 = vector.shape_cast %421 : vector<1x8x32xf32> to vector<8x32xf32>
    %423 = vector.shape_cast %417 : vector<8x32xf32> to vector<1x8x32xf32>
    tpu.vector_store %arg10[%c0_265, %c0_266, %c0_267], %423 {strides = array<i32>} : memref<2x8x32xf32, #tpu.memory_space<vmem>>, vector<1x8x32xf32>,
    %c0_268 = arith.constant 0 : index
    %c0_269 = arith.constant 0 : index
    %c0_270 = arith.constant 0 : index
    %424 = vector.load %arg12[%c0_268, %c0_269, %c0_270] : memref<1x8x32xf32, #tpu.memory_space<vmem>>, vector<1x8x32xf32>
    %425 = vector.shape_cast %424 : vector<1x8x32xf32> to vector<8x32xf32>
    %426 = vector.shape_cast %417 : vector<8x32xf32> to vector<1x8x32xf32>
    tpu.vector_store %arg12[%c0_268, %c0_269, %c0_270], %426 {strides = array<i32>} : memref<1x8x32xf32, #tpu.memory_space<vmem>>, vector<1x8x32xf32>,
    %c1_271 = arith.constant 1 : index
    %c0_272 = arith.constant 0 : index
    %c0_273 = arith.constant 0 : index
    %427 = vector.load %arg10[%c1_271, %c0_272, %c0_273] : memref<2x8x32xf32, #tpu.memory_space<vmem>>, vector<1x8x32xf32>
    %428 = vector.shape_cast %427 : vector<1x8x32xf32> to vector<8x32xf32>
    %429 = arith.truncf %428 : vector<8x32xf32> to vector<8x32xbf16>
    %c0_274 = arith.constant 0 : index
    %c0_275 = arith.constant 0 : index
    %c0_276 = arith.constant 0 : index
    %430 = vector.load %arg12[%c0_274, %c0_275, %c0_276] : memref<1x8x32xf32, #tpu.memory_space<vmem>>, vector<1x8x32xf32>
    %431 = vector.shape_cast %430 : vector<1x8x32xf32> to vector<8x32xf32>
    %432 = arith.truncf %431 : vector<8x32xf32> to vector<8x32xbf16>
    %c0_277 = arith.constant 0 : index
    %c0_278 = arith.constant 0 : index
    %c0_279 = arith.constant 0 : index
    %433 = vector.load %arg4[%c0_277, %c0_278, %c0_279] : memref<1x32x128xbf16, #tpu.memory_space<vmem>>, vector<1x32x128xbf16>
    %434 = vector.shape_cast %433 : vector<1x32x128xbf16> to vector<32x128xbf16>
    %cst_280 = arith.constant dense<0.000000e+00> : vector<8x128xf32>
    %435 = tpu.matmul %432, %434, %cst_280 {dimension_numbers = #tpu.dot_dimension_numbers<[1], [0], [0], [1], [0, 0, 1, 1], [], []>} : vector<8x32xbf16>, vector<32x128xbf16>, vector<8x128xf32> -> vector<8x128xf32>
    %c1_281 = arith.constant 1 : index
    %c0_282 = arith.constant 0 : index
    %c0_283 = arith.constant 0 : index
    %436 = vector.load %arg6[%c1_281, %c0_282, %c0_283] : memref<2x1x128xf32, #tpu.memory_space<vmem>>, vector<1x1x128xf32>
    %437 = vector.shape_cast %436 : vector<1x1x128xf32> to vector<1x128xf32>
    %438 = vector.broadcast %437 : vector<1x128xf32> to vector<8x128xf32>
    %439 = arith.addf %435, %438 : vector<8x128xf32>
    %c1_284 = arith.constant 1 : index
    %c0_285 = arith.constant 0 : index
    %c0_286 = arith.constant 0 : index
    %440 = vector.load %arg5[%c1_284, %c0_285, %c0_286] : memref<2x32x128xbf16, #tpu.memory_space<vmem>>, vector<1x32x128xbf16>
    %441 = vector.shape_cast %440 : vector<1x32x128xbf16> to vector<32x128xbf16>
    %cst_287 = arith.constant dense<0.000000e+00> : vector<8x128xf32>
    %442 = tpu.matmul %429, %441, %cst_287 {dimension_numbers = #tpu.dot_dimension_numbers<[1], [0], [0], [1], [0, 0, 1, 1], [], []>} : vector<8x32xbf16>, vector<32x128xbf16>, vector<8x128xf32> -> vector<8x128xf32>
    %443 = arith.addf %439, %442 : vector<8x128xf32>
    %444 = vector.extract_strided_slice %443 {offsets = [0, 0], sizes = [8, 96], strides = [1, 1]} : vector<8x128xf32> to vector<8x96xf32>
    %445 = arith.negf %444 : vector<8x96xf32>
    %446 = math.exp %445 : vector<8x96xf32>
    %cst_288 = arith.constant 1.000000e+00 : f32
    %447 = vector.broadcast %cst_288 : f32 to vector<8x96xf32>
    %448 = arith.addf %447, %446 : vector<8x96xf32>
    %449 = arith.divf %447, %448 : vector<8x96xf32>
    %450 = vector.extract_strided_slice %443 {offsets = [0, 96], sizes = [8, 32], strides = [1, 1]} : vector<8x128xf32> to vector<8x32xf32>
    %451 = math.tanh %450 : vector<8x32xf32>
    %452 = vector.extract_strided_slice %449 {offsets = [0, 0], sizes = [8, 32], strides = [1, 1]} : vector<8x96xf32> to vector<8x32xf32>
    %453 = vector.extract_strided_slice %449 {offsets = [0, 32], sizes = [8, 32], strides = [1, 1]} : vector<8x96xf32> to vector<8x32xf32>
    %454 = vector.extract_strided_slice %449 {offsets = [0, 64], sizes = [8, 32], strides = [1, 1]} : vector<8x96xf32> to vector<8x32xf32>
    %c1_289 = arith.constant 1 : index
    %c0_290 = arith.constant 0 : index
    %c0_291 = arith.constant 0 : index
    %455 = vector.load %arg11[%c1_289, %c0_290, %c0_291] : memref<2x8x32xf32, #tpu.memory_space<vmem>>, vector<1x8x32xf32>
    %456 = vector.shape_cast %455 : vector<1x8x32xf32> to vector<8x32xf32>
    %457 = arith.mulf %453, %456 : vector<8x32xf32>
    %458 = arith.mulf %452, %451 : vector<8x32xf32>
    %459 = arith.addf %457, %458 : vector<8x32xf32>
    %460 = math.tanh %459 : vector<8x32xf32>
    %461 = arith.mulf %454, %460 : vector<8x32xf32>
    %c1_292 = arith.constant 1 : index
    %c0_293 = arith.constant 0 : index
    %c0_294 = arith.constant 0 : index
    %462 = vector.load %arg11[%c1_292, %c0_293, %c0_294] : memref<2x8x32xf32, #tpu.memory_space<vmem>>, vector<1x8x32xf32>
    %463 = vector.shape_cast %462 : vector<1x8x32xf32> to vector<8x32xf32>
    %464 = vector.shape_cast %459 : vector<8x32xf32> to vector<1x8x32xf32>
    tpu.vector_store %arg11[%c1_292, %c0_293, %c0_294], %464 {strides = array<i32>} : memref<2x8x32xf32, #tpu.memory_space<vmem>>, vector<1x8x32xf32>,
    %c1_295 = arith.constant 1 : index
    %c0_296 = arith.constant 0 : index
    %c0_297 = arith.constant 0 : index
    %465 = vector.load %arg10[%c1_295, %c0_296, %c0_297] : memref<2x8x32xf32, #tpu.memory_space<vmem>>, vector<1x8x32xf32>
    %466 = vector.shape_cast %465 : vector<1x8x32xf32> to vector<8x32xf32>
    %467 = vector.shape_cast %461 : vector<8x32xf32> to vector<1x8x32xf32>
    tpu.vector_store %arg10[%c1_295, %c0_296, %c0_297], %467 {strides = array<i32>} : memref<2x8x32xf32, #tpu.memory_space<vmem>>, vector<1x8x32xf32>,
    %c0_298 = arith.constant 0 : index
    %c0_299 = arith.constant 0 : index
    %c0_300 = arith.constant 0 : index
    %468 = vector.load %arg10[%c0_298, %c0_299, %c0_300] : memref<2x8x32xf32, #tpu.memory_space<vmem>>, vector<1x8x32xf32>
    %469 = vector.shape_cast %468 : vector<1x8x32xf32> to vector<8x32xf32>
    %470 = arith.truncf %469 : vector<8x32xf32> to vector<8x32xbf16>
    %c48 = arith.constant 48 : index
    %c0_301 = arith.constant 0 : index
    %471 = vector.load %arg13[%c48, %c0_301] : memref<64x128xf32, #tpu.memory_space<vmem>>, vector<8x128xf32>
    %c0_302 = arith.constant 0 : index
    %c0_303 = arith.constant 0 : index
    %c0_304 = arith.constant 0 : index
    %472 = vector.load %arg5[%c0_302, %c0_303, %c0_304] : memref<2x32x128xbf16, #tpu.memory_space<vmem>>, vector<1x32x128xbf16>
    %473 = vector.shape_cast %472 : vector<1x32x128xbf16> to vector<32x128xbf16>
    %cst_305 = arith.constant dense<0.000000e+00> : vector<8x128xf32>
    %474 = tpu.matmul %470, %473, %cst_305 {dimension_numbers = #tpu.dot_dimension_numbers<[1], [0], [0], [1], [0, 0, 1, 1], [], []>} : vector<8x32xbf16>, vector<32x128xbf16>, vector<8x128xf32> -> vector<8x128xf32>
    %475 = arith.addf %471, %474 : vector<8x128xf32>
    %476 = vector.extract_strided_slice %475 {offsets = [0, 0], sizes = [8, 96], strides = [1, 1]} : vector<8x128xf32> to vector<8x96xf32>
    %477 = arith.negf %476 : vector<8x96xf32>
    %478 = math.exp %477 : vector<8x96xf32>
    %cst_306 = arith.constant 1.000000e+00 : f32
    %479 = vector.broadcast %cst_306 : f32 to vector<8x96xf32>
    %480 = arith.addf %479, %478 : vector<8x96xf32>
    %481 = arith.divf %479, %480 : vector<8x96xf32>
    %482 = vector.extract_strided_slice %475 {offsets = [0, 96], sizes = [8, 32], strides = [1, 1]} : vector<8x128xf32> to vector<8x32xf32>
    %483 = math.tanh %482 : vector<8x32xf32>
    %484 = vector.extract_strided_slice %481 {offsets = [0, 0], sizes = [8, 32], strides = [1, 1]} : vector<8x96xf32> to vector<8x32xf32>
    %485 = vector.extract_strided_slice %481 {offsets = [0, 32], sizes = [8, 32], strides = [1, 1]} : vector<8x96xf32> to vector<8x32xf32>
    %486 = vector.extract_strided_slice %481 {offsets = [0, 64], sizes = [8, 32], strides = [1, 1]} : vector<8x96xf32> to vector<8x32xf32>
    %c0_307 = arith.constant 0 : index
    %c0_308 = arith.constant 0 : index
    %c0_309 = arith.constant 0 : index
    %487 = vector.load %arg11[%c0_307, %c0_308, %c0_309] : memref<2x8x32xf32, #tpu.memory_space<vmem>>, vector<1x8x32xf32>
    %488 = vector.shape_cast %487 : vector<1x8x32xf32> to vector<8x32xf32>
    %489 = arith.mulf %485, %488 : vector<8x32xf32>
    %490 = arith.mulf %484, %483 : vector<8x32xf32>
    %491 = arith.addf %489, %490 : vector<8x32xf32>
    %492 = math.tanh %491 : vector<8x32xf32>
    %493 = arith.mulf %486, %492 : vector<8x32xf32>
    %c0_310 = arith.constant 0 : index
    %c0_311 = arith.constant 0 : index
    %c0_312 = arith.constant 0 : index
    %494 = vector.load %arg11[%c0_310, %c0_311, %c0_312] : memref<2x8x32xf32, #tpu.memory_space<vmem>>, vector<1x8x32xf32>
    %495 = vector.shape_cast %494 : vector<1x8x32xf32> to vector<8x32xf32>
    %496 = vector.shape_cast %491 : vector<8x32xf32> to vector<1x8x32xf32>
    tpu.vector_store %arg11[%c0_310, %c0_311, %c0_312], %496 {strides = array<i32>} : memref<2x8x32xf32, #tpu.memory_space<vmem>>, vector<1x8x32xf32>,
    %c0_313 = arith.constant 0 : index
    %c0_314 = arith.constant 0 : index
    %c0_315 = arith.constant 0 : index
    %497 = vector.load %arg10[%c0_313, %c0_314, %c0_315] : memref<2x8x32xf32, #tpu.memory_space<vmem>>, vector<1x8x32xf32>
    %498 = vector.shape_cast %497 : vector<1x8x32xf32> to vector<8x32xf32>
    %499 = vector.shape_cast %493 : vector<8x32xf32> to vector<1x8x32xf32>
    tpu.vector_store %arg10[%c0_313, %c0_314, %c0_315], %499 {strides = array<i32>} : memref<2x8x32xf32, #tpu.memory_space<vmem>>, vector<1x8x32xf32>,
    %c0_316 = arith.constant 0 : index
    %c0_317 = arith.constant 0 : index
    %c0_318 = arith.constant 0 : index
    %500 = vector.load %arg12[%c0_316, %c0_317, %c0_318] : memref<1x8x32xf32, #tpu.memory_space<vmem>>, vector<1x8x32xf32>
    %501 = vector.shape_cast %500 : vector<1x8x32xf32> to vector<8x32xf32>
    %502 = vector.shape_cast %493 : vector<8x32xf32> to vector<1x8x32xf32>
    tpu.vector_store %arg12[%c0_316, %c0_317, %c0_318], %502 {strides = array<i32>} : memref<1x8x32xf32, #tpu.memory_space<vmem>>, vector<1x8x32xf32>,
    %c1_319 = arith.constant 1 : index
    %c0_320 = arith.constant 0 : index
    %c0_321 = arith.constant 0 : index
    %503 = vector.load %arg10[%c1_319, %c0_320, %c0_321] : memref<2x8x32xf32, #tpu.memory_space<vmem>>, vector<1x8x32xf32>
    %504 = vector.shape_cast %503 : vector<1x8x32xf32> to vector<8x32xf32>
    %505 = arith.truncf %504 : vector<8x32xf32> to vector<8x32xbf16>
    %c0_322 = arith.constant 0 : index
    %c0_323 = arith.constant 0 : index
    %c0_324 = arith.constant 0 : index
    %506 = vector.load %arg12[%c0_322, %c0_323, %c0_324] : memref<1x8x32xf32, #tpu.memory_space<vmem>>, vector<1x8x32xf32>
    %507 = vector.shape_cast %506 : vector<1x8x32xf32> to vector<8x32xf32>
    %508 = arith.truncf %507 : vector<8x32xf32> to vector<8x32xbf16>
    %c0_325 = arith.constant 0 : index
    %c0_326 = arith.constant 0 : index
    %c0_327 = arith.constant 0 : index
    %509 = vector.load %arg4[%c0_325, %c0_326, %c0_327] : memref<1x32x128xbf16, #tpu.memory_space<vmem>>, vector<1x32x128xbf16>
    %510 = vector.shape_cast %509 : vector<1x32x128xbf16> to vector<32x128xbf16>
    %cst_328 = arith.constant dense<0.000000e+00> : vector<8x128xf32>
    %511 = tpu.matmul %508, %510, %cst_328 {dimension_numbers = #tpu.dot_dimension_numbers<[1], [0], [0], [1], [0, 0, 1, 1], [], []>} : vector<8x32xbf16>, vector<32x128xbf16>, vector<8x128xf32> -> vector<8x128xf32>
    %c1_329 = arith.constant 1 : index
    %c0_330 = arith.constant 0 : index
    %c0_331 = arith.constant 0 : index
    %512 = vector.load %arg6[%c1_329, %c0_330, %c0_331] : memref<2x1x128xf32, #tpu.memory_space<vmem>>, vector<1x1x128xf32>
    %513 = vector.shape_cast %512 : vector<1x1x128xf32> to vector<1x128xf32>
    %514 = vector.broadcast %513 : vector<1x128xf32> to vector<8x128xf32>
    %515 = arith.addf %511, %514 : vector<8x128xf32>
    %c1_332 = arith.constant 1 : index
    %c0_333 = arith.constant 0 : index
    %c0_334 = arith.constant 0 : index
    %516 = vector.load %arg5[%c1_332, %c0_333, %c0_334] : memref<2x32x128xbf16, #tpu.memory_space<vmem>>, vector<1x32x128xbf16>
    %517 = vector.shape_cast %516 : vector<1x32x128xbf16> to vector<32x128xbf16>
    %cst_335 = arith.constant dense<0.000000e+00> : vector<8x128xf32>
    %518 = tpu.matmul %505, %517, %cst_335 {dimension_numbers = #tpu.dot_dimension_numbers<[1], [0], [0], [1], [0, 0, 1, 1], [], []>} : vector<8x32xbf16>, vector<32x128xbf16>, vector<8x128xf32> -> vector<8x128xf32>
    %519 = arith.addf %515, %518 : vector<8x128xf32>
    %520 = vector.extract_strided_slice %519 {offsets = [0, 0], sizes = [8, 96], strides = [1, 1]} : vector<8x128xf32> to vector<8x96xf32>
    %521 = arith.negf %520 : vector<8x96xf32>
    %522 = math.exp %521 : vector<8x96xf32>
    %cst_336 = arith.constant 1.000000e+00 : f32
    %523 = vector.broadcast %cst_336 : f32 to vector<8x96xf32>
    %524 = arith.addf %523, %522 : vector<8x96xf32>
    %525 = arith.divf %523, %524 : vector<8x96xf32>
    %526 = vector.extract_strided_slice %519 {offsets = [0, 96], sizes = [8, 32], strides = [1, 1]} : vector<8x128xf32> to vector<8x32xf32>
    %527 = math.tanh %526 : vector<8x32xf32>
    %528 = vector.extract_strided_slice %525 {offsets = [0, 0], sizes = [8, 32], strides = [1, 1]} : vector<8x96xf32> to vector<8x32xf32>
    %529 = vector.extract_strided_slice %525 {offsets = [0, 32], sizes = [8, 32], strides = [1, 1]} : vector<8x96xf32> to vector<8x32xf32>
    %530 = vector.extract_strided_slice %525 {offsets = [0, 64], sizes = [8, 32], strides = [1, 1]} : vector<8x96xf32> to vector<8x32xf32>
    %c1_337 = arith.constant 1 : index
    %c0_338 = arith.constant 0 : index
    %c0_339 = arith.constant 0 : index
    %531 = vector.load %arg11[%c1_337, %c0_338, %c0_339] : memref<2x8x32xf32, #tpu.memory_space<vmem>>, vector<1x8x32xf32>
    %532 = vector.shape_cast %531 : vector<1x8x32xf32> to vector<8x32xf32>
    %533 = arith.mulf %529, %532 : vector<8x32xf32>
    %534 = arith.mulf %528, %527 : vector<8x32xf32>
    %535 = arith.addf %533, %534 : vector<8x32xf32>
    %536 = math.tanh %535 : vector<8x32xf32>
    %537 = arith.mulf %530, %536 : vector<8x32xf32>
    %c1_340 = arith.constant 1 : index
    %c0_341 = arith.constant 0 : index
    %c0_342 = arith.constant 0 : index
    %538 = vector.load %arg11[%c1_340, %c0_341, %c0_342] : memref<2x8x32xf32, #tpu.memory_space<vmem>>, vector<1x8x32xf32>
    %539 = vector.shape_cast %538 : vector<1x8x32xf32> to vector<8x32xf32>
    %540 = vector.shape_cast %535 : vector<8x32xf32> to vector<1x8x32xf32>
    tpu.vector_store %arg11[%c1_340, %c0_341, %c0_342], %540 {strides = array<i32>} : memref<2x8x32xf32, #tpu.memory_space<vmem>>, vector<1x8x32xf32>,
    %c1_343 = arith.constant 1 : index
    %c0_344 = arith.constant 0 : index
    %c0_345 = arith.constant 0 : index
    %541 = vector.load %arg10[%c1_343, %c0_344, %c0_345] : memref<2x8x32xf32, #tpu.memory_space<vmem>>, vector<1x8x32xf32>
    %542 = vector.shape_cast %541 : vector<1x8x32xf32> to vector<8x32xf32>
    %543 = vector.shape_cast %537 : vector<8x32xf32> to vector<1x8x32xf32>
    tpu.vector_store %arg10[%c1_343, %c0_344, %c0_345], %543 {strides = array<i32>} : memref<2x8x32xf32, #tpu.memory_space<vmem>>, vector<1x8x32xf32>,
    %c0_346 = arith.constant 0 : index
    %c0_347 = arith.constant 0 : index
    %c0_348 = arith.constant 0 : index
    %544 = vector.load %arg10[%c0_346, %c0_347, %c0_348] : memref<2x8x32xf32, #tpu.memory_space<vmem>>, vector<1x8x32xf32>
    %545 = vector.shape_cast %544 : vector<1x8x32xf32> to vector<8x32xf32>
    %546 = arith.truncf %545 : vector<8x32xf32> to vector<8x32xbf16>
    %c56 = arith.constant 56 : index
    %c0_349 = arith.constant 0 : index
    %547 = vector.load %arg13[%c56, %c0_349] : memref<64x128xf32, #tpu.memory_space<vmem>>, vector<8x128xf32>
    %c0_350 = arith.constant 0 : index
    %c0_351 = arith.constant 0 : index
    %c0_352 = arith.constant 0 : index
    %548 = vector.load %arg5[%c0_350, %c0_351, %c0_352] : memref<2x32x128xbf16, #tpu.memory_space<vmem>>, vector<1x32x128xbf16>
    %549 = vector.shape_cast %548 : vector<1x32x128xbf16> to vector<32x128xbf16>
    %cst_353 = arith.constant dense<0.000000e+00> : vector<8x128xf32>
    %550 = tpu.matmul %546, %549, %cst_353 {dimension_numbers = #tpu.dot_dimension_numbers<[1], [0], [0], [1], [0, 0, 1, 1], [], []>} : vector<8x32xbf16>, vector<32x128xbf16>, vector<8x128xf32> -> vector<8x128xf32>
    %551 = arith.addf %547, %550 : vector<8x128xf32>
    %552 = vector.extract_strided_slice %551 {offsets = [0, 0], sizes = [8, 96], strides = [1, 1]} : vector<8x128xf32> to vector<8x96xf32>
    %553 = arith.negf %552 : vector<8x96xf32>
    %554 = math.exp %553 : vector<8x96xf32>
    %cst_354 = arith.constant 1.000000e+00 : f32
    %555 = vector.broadcast %cst_354 : f32 to vector<8x96xf32>
    %556 = arith.addf %555, %554 : vector<8x96xf32>
    %557 = arith.divf %555, %556 : vector<8x96xf32>
    %558 = vector.extract_strided_slice %551 {offsets = [0, 96], sizes = [8, 32], strides = [1, 1]} : vector<8x128xf32> to vector<8x32xf32>
    %559 = math.tanh %558 : vector<8x32xf32>
    %560 = vector.extract_strided_slice %557 {offsets = [0, 0], sizes = [8, 32], strides = [1, 1]} : vector<8x96xf32> to vector<8x32xf32>
    %561 = vector.extract_strided_slice %557 {offsets = [0, 32], sizes = [8, 32], strides = [1, 1]} : vector<8x96xf32> to vector<8x32xf32>
    %562 = vector.extract_strided_slice %557 {offsets = [0, 64], sizes = [8, 32], strides = [1, 1]} : vector<8x96xf32> to vector<8x32xf32>
    %c0_355 = arith.constant 0 : index
    %c0_356 = arith.constant 0 : index
    %c0_357 = arith.constant 0 : index
    %563 = vector.load %arg11[%c0_355, %c0_356, %c0_357] : memref<2x8x32xf32, #tpu.memory_space<vmem>>, vector<1x8x32xf32>
    %564 = vector.shape_cast %563 : vector<1x8x32xf32> to vector<8x32xf32>
    %565 = arith.mulf %561, %564 : vector<8x32xf32>
    %566 = arith.mulf %560, %559 : vector<8x32xf32>
    %567 = arith.addf %565, %566 : vector<8x32xf32>
    %568 = math.tanh %567 : vector<8x32xf32>
    %569 = arith.mulf %562, %568 : vector<8x32xf32>
    %c0_358 = arith.constant 0 : index
    %c0_359 = arith.constant 0 : index
    %c0_360 = arith.constant 0 : index
    %570 = vector.load %arg11[%c0_358, %c0_359, %c0_360] : memref<2x8x32xf32, #tpu.memory_space<vmem>>, vector<1x8x32xf32>
    %571 = vector.shape_cast %570 : vector<1x8x32xf32> to vector<8x32xf32>
    %572 = vector.shape_cast %567 : vector<8x32xf32> to vector<1x8x32xf32>
    tpu.vector_store %arg11[%c0_358, %c0_359, %c0_360], %572 {strides = array<i32>} : memref<2x8x32xf32, #tpu.memory_space<vmem>>, vector<1x8x32xf32>,
    %c0_361 = arith.constant 0 : index
    %c0_362 = arith.constant 0 : index
    %c0_363 = arith.constant 0 : index
    %573 = vector.load %arg10[%c0_361, %c0_362, %c0_363] : memref<2x8x32xf32, #tpu.memory_space<vmem>>, vector<1x8x32xf32>
    %574 = vector.shape_cast %573 : vector<1x8x32xf32> to vector<8x32xf32>
    %575 = vector.shape_cast %569 : vector<8x32xf32> to vector<1x8x32xf32>
    tpu.vector_store %arg10[%c0_361, %c0_362, %c0_363], %575 {strides = array<i32>} : memref<2x8x32xf32, #tpu.memory_space<vmem>>, vector<1x8x32xf32>,
    %c0_364 = arith.constant 0 : index
    %c0_365 = arith.constant 0 : index
    %c0_366 = arith.constant 0 : index
    %576 = vector.load %arg12[%c0_364, %c0_365, %c0_366] : memref<1x8x32xf32, #tpu.memory_space<vmem>>, vector<1x8x32xf32>
    %577 = vector.shape_cast %576 : vector<1x8x32xf32> to vector<8x32xf32>
    %578 = vector.shape_cast %569 : vector<8x32xf32> to vector<1x8x32xf32>
    tpu.vector_store %arg12[%c0_364, %c0_365, %c0_366], %578 {strides = array<i32>} : memref<1x8x32xf32, #tpu.memory_space<vmem>>, vector<1x8x32xf32>,
    %c1_367 = arith.constant 1 : index
    %c0_368 = arith.constant 0 : index
    %c0_369 = arith.constant 0 : index
    %579 = vector.load %arg10[%c1_367, %c0_368, %c0_369] : memref<2x8x32xf32, #tpu.memory_space<vmem>>, vector<1x8x32xf32>
    %580 = vector.shape_cast %579 : vector<1x8x32xf32> to vector<8x32xf32>
    %581 = arith.truncf %580 : vector<8x32xf32> to vector<8x32xbf16>
    %c0_370 = arith.constant 0 : index
    %c0_371 = arith.constant 0 : index
    %c0_372 = arith.constant 0 : index
    %582 = vector.load %arg12[%c0_370, %c0_371, %c0_372] : memref<1x8x32xf32, #tpu.memory_space<vmem>>, vector<1x8x32xf32>
    %583 = vector.shape_cast %582 : vector<1x8x32xf32> to vector<8x32xf32>
    %584 = arith.truncf %583 : vector<8x32xf32> to vector<8x32xbf16>
    %c0_373 = arith.constant 0 : index
    %c0_374 = arith.constant 0 : index
    %c0_375 = arith.constant 0 : index
    %585 = vector.load %arg4[%c0_373, %c0_374, %c0_375] : memref<1x32x128xbf16, #tpu.memory_space<vmem>>, vector<1x32x128xbf16>
    %586 = vector.shape_cast %585 : vector<1x32x128xbf16> to vector<32x128xbf16>
    %cst_376 = arith.constant dense<0.000000e+00> : vector<8x128xf32>
    %587 = tpu.matmul %584, %586, %cst_376 {dimension_numbers = #tpu.dot_dimension_numbers<[1], [0], [0], [1], [0, 0, 1, 1], [], []>} : vector<8x32xbf16>, vector<32x128xbf16>, vector<8x128xf32> -> vector<8x128xf32>
    %c1_377 = arith.constant 1 : index
    %c0_378 = arith.constant 0 : index
    %c0_379 = arith.constant 0 : index
    %588 = vector.load %arg6[%c1_377, %c0_378, %c0_379] : memref<2x1x128xf32, #tpu.memory_space<vmem>>, vector<1x1x128xf32>
    %589 = vector.shape_cast %588 : vector<1x1x128xf32> to vector<1x128xf32>
    %590 = vector.broadcast %589 : vector<1x128xf32> to vector<8x128xf32>
    %591 = arith.addf %587, %590 : vector<8x128xf32>
    %c1_380 = arith.constant 1 : index
    %c0_381 = arith.constant 0 : index
    %c0_382 = arith.constant 0 : index
    %592 = vector.load %arg5[%c1_380, %c0_381, %c0_382] : memref<2x32x128xbf16, #tpu.memory_space<vmem>>, vector<1x32x128xbf16>
    %593 = vector.shape_cast %592 : vector<1x32x128xbf16> to vector<32x128xbf16>
    %cst_383 = arith.constant dense<0.000000e+00> : vector<8x128xf32>
    %594 = tpu.matmul %581, %593, %cst_383 {dimension_numbers = #tpu.dot_dimension_numbers<[1], [0], [0], [1], [0, 0, 1, 1], [], []>} : vector<8x32xbf16>, vector<32x128xbf16>, vector<8x128xf32> -> vector<8x128xf32>
    %595 = arith.addf %591, %594 : vector<8x128xf32>
    %596 = vector.extract_strided_slice %595 {offsets = [0, 0], sizes = [8, 96], strides = [1, 1]} : vector<8x128xf32> to vector<8x96xf32>
    %597 = arith.negf %596 : vector<8x96xf32>
    %598 = math.exp %597 : vector<8x96xf32>
    %cst_384 = arith.constant 1.000000e+00 : f32
    %599 = vector.broadcast %cst_384 : f32 to vector<8x96xf32>
    %600 = arith.addf %599, %598 : vector<8x96xf32>
    %601 = arith.divf %599, %600 : vector<8x96xf32>
    %602 = vector.extract_strided_slice %595 {offsets = [0, 96], sizes = [8, 32], strides = [1, 1]} : vector<8x128xf32> to vector<8x32xf32>
    %603 = math.tanh %602 : vector<8x32xf32>
    %604 = vector.extract_strided_slice %601 {offsets = [0, 0], sizes = [8, 32], strides = [1, 1]} : vector<8x96xf32> to vector<8x32xf32>
    %605 = vector.extract_strided_slice %601 {offsets = [0, 32], sizes = [8, 32], strides = [1, 1]} : vector<8x96xf32> to vector<8x32xf32>
    %606 = vector.extract_strided_slice %601 {offsets = [0, 64], sizes = [8, 32], strides = [1, 1]} : vector<8x96xf32> to vector<8x32xf32>
    %c1_385 = arith.constant 1 : index
    %c0_386 = arith.constant 0 : index
    %c0_387 = arith.constant 0 : index
    %607 = vector.load %arg11[%c1_385, %c0_386, %c0_387] : memref<2x8x32xf32, #tpu.memory_space<vmem>>, vector<1x8x32xf32>
    %608 = vector.shape_cast %607 : vector<1x8x32xf32> to vector<8x32xf32>
    %609 = arith.mulf %605, %608 : vector<8x32xf32>
    %610 = arith.mulf %604, %603 : vector<8x32xf32>
    %611 = arith.addf %609, %610 : vector<8x32xf32>
    %612 = math.tanh %611 : vector<8x32xf32>
    %613 = arith.mulf %606, %612 : vector<8x32xf32>
    %c1_388 = arith.constant 1 : index
    %c0_389 = arith.constant 0 : index
    %c0_390 = arith.constant 0 : index
    %614 = vector.load %arg11[%c1_388, %c0_389, %c0_390] : memref<2x8x32xf32, #tpu.memory_space<vmem>>, vector<1x8x32xf32>
    %615 = vector.shape_cast %614 : vector<1x8x32xf32> to vector<8x32xf32>
    %616 = vector.shape_cast %611 : vector<8x32xf32> to vector<1x8x32xf32>
    tpu.vector_store %arg11[%c1_388, %c0_389, %c0_390], %616 {strides = array<i32>} : memref<2x8x32xf32, #tpu.memory_space<vmem>>, vector<1x8x32xf32>,
    %c1_391 = arith.constant 1 : index
    %c0_392 = arith.constant 0 : index
    %c0_393 = arith.constant 0 : index
    %617 = vector.load %arg10[%c1_391, %c0_392, %c0_393] : memref<2x8x32xf32, #tpu.memory_space<vmem>>, vector<1x8x32xf32>
    %618 = vector.shape_cast %617 : vector<1x8x32xf32> to vector<8x32xf32>
    %619 = vector.shape_cast %613 : vector<8x32xf32> to vector<1x8x32xf32>
    tpu.vector_store %arg10[%c1_391, %c0_392, %c0_393], %619 {strides = array<i32>} : memref<2x8x32xf32, #tpu.memory_space<vmem>>, vector<1x8x32xf32>,
    %c0_i32_394 = arith.constant 0 : i32
    %620 = arith.cmpi eq, %arg1, %c0_i32_394 : i32
    %621 = arith.extui %620 : i1 to i32
    %c0_i32_395 = arith.constant 0 : i32
    %622 = arith.cmpi ne, %621, %c0_i32_395 : i32
    scf.if %622 {
      %c1_396 = arith.constant 1 : index
      %c0_397 = arith.constant 0 : index
      %c0_398 = arith.constant 0 : index
      %623 = vector.load %arg10[%c1_396, %c0_397, %c0_398] : memref<2x8x32xf32, #tpu.memory_space<vmem>>, vector<1x8x32xf32>
      %624 = vector.shape_cast %623 : vector<1x8x32xf32> to vector<8x32xf32>
      %625 = arith.truncf %624 : vector<8x32xf32> to vector<8x32xbf16>
      %c0_399 = arith.constant 0 : index
      %c0_400 = arith.constant 0 : index
      %626 = vector.load %arg7[%c0_399, %c0_400] : memref<32x3xbf16, #tpu.memory_space<vmem>>, vector<32x3xbf16>
      %cst_401 = arith.constant dense<0.000000e+00> : vector<8x3xf32>
      %627 = tpu.matmul %625, %626, %cst_401 {dimension_numbers = #tpu.dot_dimension_numbers<[1], [0], [0], [1], [0, 0, 1, 1], [], []>} : vector<8x32xbf16>, vector<32x3xbf16>, vector<8x3xf32> -> vector<8x3xf32>
      %c0_402 = arith.constant 0 : index
      %c0_403 = arith.constant 0 : index
      %628 = vector.load %arg8[%c0_402, %c0_403] : memref<1x3xf32, #tpu.memory_space<vmem>>, vector<1x3xf32>
      %629 = vector.broadcast %628 : vector<1x3xf32> to vector<8x3xf32>
      %630 = arith.addf %627, %629 : vector<8x3xf32>
      %c0_404 = arith.constant 0 : index
      %c0_405 = arith.constant 0 : index
      %631 = vector.load %arg9[%c0_404, %c0_405] : memref<8x3xf32, #tpu.memory_space<vmem>>, vector<8x3xf32>
      tpu.vector_store %arg9[%c0_404, %c0_405], %630 {strides = array<i32>} : memref<8x3xf32, #tpu.memory_space<vmem>>, vector<8x3xf32>,
    } else {
    }
    return
  }
  func.func @transform_0(%arg0: i32, %arg1: i32) -> (i32, i32, i32) {
    %c0_i32 = arith.constant 0 : i32
    %c0_i32_0 = arith.constant 0 : i32
    return %arg1, %arg0, %c0_i32 : i32, i32, i32
  }
  func.func @transform_1(%arg0: i32, %arg1: i32) -> (i32, i32) {
    %c0_i32 = arith.constant 0 : i32
    %c0_i32_0 = arith.constant 0 : i32
    %c0_i32_1 = arith.constant 0 : i32
    return %c0_i32, %c0_i32_0 : i32, i32
  }
  func.func @transform_2(%arg0: i32, %arg1: i32) -> (i32, i32, i32) {
    %c0_i32 = arith.constant 0 : i32
    %c0_i32_0 = arith.constant 0 : i32
    %c0_i32_1 = arith.constant 0 : i32
    %c0_i32_2 = arith.constant 0 : i32
    return %c0_i32, %c0_i32_0, %c0_i32_1 : i32, i32, i32
  }
  func.func @transform_3(%arg0: i32, %arg1: i32) -> (i32, i32, i32) {
    %c0_i32 = arith.constant 0 : i32
    %c0_i32_0 = arith.constant 0 : i32
    %c0_i32_1 = arith.constant 0 : i32
    %c0_i32_2 = arith.constant 0 : i32
    return %c0_i32, %c0_i32_0, %c0_i32_1 : i32, i32, i32
  }
  func.func @transform_4(%arg0: i32, %arg1: i32) -> (i32, i32, i32) {
    %c0_i32 = arith.constant 0 : i32
    %c0_i32_0 = arith.constant 0 : i32
    %c0_i32_1 = arith.constant 0 : i32
    %c0_i32_2 = arith.constant 0 : i32
    return %c0_i32, %c0_i32_0, %c0_i32_1 : i32, i32, i32
  }
  func.func @transform_5(%arg0: i32, %arg1: i32) -> (i32, i32) {
    %c0_i32 = arith.constant 0 : i32
    %c0_i32_0 = arith.constant 0 : i32
    %c0_i32_1 = arith.constant 0 : i32
    return %c0_i32, %c0_i32_0 : i32, i32
  }
  func.func @transform_6(%arg0: i32, %arg1: i32) -> (i32, i32) {
    %c0_i32 = arith.constant 0 : i32
    %c0_i32_0 = arith.constant 0 : i32
    %c0_i32_1 = arith.constant 0 : i32
    return %c0_i32, %c0_i32_0 : i32, i32
  }
  func.func @transform_7(%arg0: i32, %arg1: i32) -> (i32, i32) {
    %c0_i32 = arith.constant 0 : i32
    %c0_i32_0 = arith.constant 0 : i32
    return %arg0, %c0_i32 : i32, i32
  }
}

</mosaic_0001>

<llo_original>
// kernel: tpu_custom_call.1
$region0: #{tpu_custom_call.1}
  #allocation0 [shape = 'u32[]', space=smem, size = 0x4, offset = 0x4, fixed_abs, tag = 'smem constant byte address 0x4 - core index']
  #allocation1 [shape = 'u32[144,128]{1,0:T(1,128)}', space=vmem, size = 0x12000, scoped, tag = 'internal scratch']
  #allocation2 [shape = 'f32[2,8,32]{2,1,0:T(8,128)}', space=vmem, size = 0x2000, scoped, tag = 'scratch operand']
  #allocation3 [shape = 'f32[2,8,32]{2,1,0:T(8,128)}', space=vmem, size = 0x2000, scoped, tag = 'scratch operand']
  #allocation4 [shape = 'f32[1,8,32]{2,1,0:T(8,128)}', space=vmem, size = 0x1000, scoped, tag = 'scratch operand']
  #allocation5 [shape = 'f32[64,128]{1,0:T(8,128)}', space=vmem, size = 0x8000, scoped, tag = 'scratch operand']
  %s0 = inlined_call_operand.vmem [shape: bf16[8,8,4], index: 0, kind: input, shape index: {}]
  %s1 = inlined_call_operand.vmem [shape: bf16[4,128], index: 1, kind: input, shape index: {}]
  %s2 = inlined_call_operand.vmem [shape: bf16[1,32,128], index: 2, kind: input, shape index: {}]
  %s3 = inlined_call_operand.vmem [shape: bf16[2,32,128], index: 3, kind: input, shape index: {}]
  %s4 = inlined_call_operand.vmem [shape: f32[2,1,128], index: 4, kind: input, shape index: {}]
  %s5 = inlined_call_operand.vmem [shape: bf16[32,3], index: 5, kind: input, shape index: {}]
  %s6 = inlined_call_operand.vmem [shape: f32[1,3], index: 6, kind: input, shape index: {}]
  %s7 = inlined_call_operand.vmem [shape: f32[8,3], index: 7, kind: output, shape index: {}]
  %s8 = sld [smem:[#allocation0]]
  $region46: #{tpu_custom_call.1} parent=0
    _
  %s10 = ssub.s32 1, %s8
  %s11 = scalar_select 0, %s10, %s8
  // Predicated region
  $region2: #{tpu_custom_call.1} parent=0 // pred_check
    _
  $region3: #{tpu_custom_call.1} parent=0 // pred_check_branch
    %13 = sbr.rel (0) target = $region5
  $region4: #{tpu_custom_call.1} parent=0 // pred_region
    _
  $region5: #{tpu_custom_call.1} parent=0 // pred_fallthru
    _
  // Predicated region
  $region6: #{tpu_custom_call.1} parent=0 // pred_check
    _
  $region7: #{tpu_custom_call.1} parent=0 // pred_check_branch
    %15 = sbr.rel (0) target = $region9
  $region8: #{tpu_custom_call.1} parent=0 // pred_region
    _
  $region9: #{tpu_custom_call.1} parent=0 // pred_fallthru
    _
  // Predicated region
  $region10: #{tpu_custom_call.1} parent=0 // pred_check
    _
  $region11: #{tpu_custom_call.1} parent=0 // pred_check_branch
    %17 = sbr.rel (0) target = $region13
  $region12: #{tpu_custom_call.1} parent=0 // pred_region
    _
  $region13: #{tpu_custom_call.1} parent=0 // pred_fallthru
    _
  // Predicated region
  $region14: #{tpu_custom_call.1} parent=0 // pred_check
    _
  $region15: #{tpu_custom_call.1} parent=0 // pred_check_branch
    %19 = sbr.rel (0) target = $region17
  $region16: #{tpu_custom_call.1} parent=0 // pred_region
    _
  $region17: #{tpu_custom_call.1} parent=0 // pred_fallthru
    _
  // Predicated region
  $region18: #{tpu_custom_call.1} parent=0 // pred_check
    _
  $region19: #{tpu_custom_call.1} parent=0 // pred_check_branch
    %21 = sbr.rel (0) target = $region21
  $region20: #{tpu_custom_call.1} parent=0 // pred_region
    _
  $region21: #{tpu_custom_call.1} parent=0 // pred_fallthru
    _
  // Predicated region
  $region22: #{tpu_custom_call.1} parent=0 // pred_check
    _
  $region23: #{tpu_custom_call.1} parent=0 // pred_check_branch
    %23 = sbr.rel (0) target = $region25
  $region24: #{tpu_custom_call.1} parent=0 // pred_region
    _
  $region25: #{tpu_custom_call.1} parent=0 // pred_fallthru
    _
  // Predicated region
  $region26: #{tpu_custom_call.1} parent=0 // pred_check
    _
  $region27: #{tpu_custom_call.1} parent=0 // pred_check_branch
    %25 = sbr.rel (0) target = $region29
  $region28: #{tpu_custom_call.1} parent=0 // pred_region
    _
  $region29: #{tpu_custom_call.1} parent=0 // pred_fallthru
    _
  %p27 = scmp.eq.s32.totalorder 0, 0
  // Predicated region
  $region30: #{tpu_custom_call.1} parent=0 // pred_check
    %p28 = pneg %p27
  $region31: #{tpu_custom_call.1} parent=0 // pred_check_branch
    %30 = sbr.rel (%p28) target = $region33
  $region32: #{tpu_custom_call.1} parent=0 // pred_region
    %vm31 = vcmask 261120
    %32 = vst.msk [vmem:[#allocation2] sm:$0xff] %vm31, 0.0
    %33 = vst.msk [vmem:[#allocation2 + $0x8] sm:$0xff] %vm31, 0.0
    %34 = vst.msk [vmem:[#allocation3] sm:$0xff] %vm31, 0.0
    %35 = vst.msk [vmem:[#allocation3 + $0x8] sm:$0xff] %vm31, 0.0
  $region33: #{tpu_custom_call.1} parent=0 // pred_fallthru
    _
  %v36 = vld [vmem:[%s0] sm:$0xf]
  %v37 = vld [vmem:[%s0 + $0x4] sm:$0xf]
  %v38 = vld [vmem:[%s0 + $0x8] sm:$0xf]
  %v39 = vld [vmem:[%s0 + $0xc] sm:$0xf]
  %v40 = vld [vmem:[%s0 + $0x10] sm:$0xf]
  %v41 = vld [vmem:[%s0 + $0x14] sm:$0xf]
  %v42 = vld [vmem:[%s0 + $0x18] sm:$0xf]
  %v43 = vld [vmem:[%s0 + $0x1c] sm:$0xf]
  %v44 = vld [vmem:[%s1] sm:$0x3]
  %v45 = vld [vmem:[%s4] sm:$0x1]
  %v47 = vlaneseq
  %v48 = vshrl.u32 %v47, 7
  %v49 = vsub.s32 0, %v48
  %v50 = vrot.slane %v45, %v49
  %v60 = vunpack.c.l.b16 %v36
  %v61 = vunpack.c.l.b16 %v37
  %v62 = vunpack.c.l.b16 %v38
  %v63 = vunpack.c.l.b16 %v39
  %v64 = vunpack.c.l.b16 %v40
  %v65 = vunpack.c.l.b16 %v41
  %v66 = vunpack.c.l.b16 %v42
  %v67 = vunpack.c.l.b16 %v43
  %v68 = vpack.c.b16 %v61, %v60
  %v69 = vpack.c.b16 %v63, %v62
  %v70 = vpack.c.b16 %v65, %v64
  %v71 = vpack.c.b16 %v67, %v66
  %vm72 = vcmask 31744
  %v74 = vsel %vm72, %v68, 0
  %v77 = vsel %vm72, %v69, 0
  %v80 = vsel %vm72, %v70, 0
  %v83 = vsel %vm72, %v71, 0
  %vm85 = vcmask 1041408
  %v87 = vsel %vm85, %v44, 0
  %89 = vmatprep.subr.bf16.mxu0 0
  %90 = vmatpush1.bf16.msra.mxu0 %v87
  %91 = vmatprep.subr.bf16.mxu0 0
  %92 = vmatpush1.bf16.msra.mxu0 0
  %93 = vmatprep.subr.bf16.mxu0 0
  %94 = vmatpush1.bf16.msra.mxu0 0
  %95 = vmatprep.subr.bf16.mxu0 0
  %96 = vmatpush1.bf16.msra.mxu0 0
  %97 = vmatprep.subr.bf16.mxu0 0
  %98 = vmatpush1.bf16.msra.mxu0 0
  %99 = vmatprep.subr.bf16.mxu0 0
  %100 = vmatpush1.bf16.msra.mxu0 0
  %101 = vmatprep.subr.bf16.mxu0 0
  %102 = vmatpush1.bf16.msra.mxu0 0
  %103 = vmatprep.subr.bf16.mxu0 0
  %104 = vmatpush1.bf16.msra.mxu0 0
  %105 = vmatprep.subr.bf16.mxu0 0
  %106 = vmatpush1.bf16.msra.mxu0 0
  %107 = vmatprep.subr.bf16.mxu0 0
  %108 = vmatpush1.bf16.msra.mxu0 0
  %109 = vmatprep.subr.bf16.mxu0 0
  %110 = vmatpush1.bf16.msra.mxu0 0
  %111 = vmatprep.subr.bf16.mxu0 0
  %112 = vmatpush1.bf16.msra.mxu0 0
  %113 = vmatprep.subr.bf16.mxu0 0
  %114 = vmatpush1.bf16.msra.mxu0 0
  %115 = vmatprep.subr.bf16.mxu0 0
  %116 = vmatpush1.bf16.msra.mxu0 0
  %117 = vmatprep.subr.bf16.mxu0 0
  %118 = vmatpush1.bf16.msra.mxu0 0
  %119 = vmatprep.subr.bf16.mxu0 0
  %120 = vmatpush1.bf16.msra.mxu0 0
  %121 = vmatprep.mubr.bf16.mxu0 0
  %122 = vmatmul.mubr.bf16.gmra.mrb[0].mxu0 %v74
  %v123 = vpop.f32.mrb[0].mxu0
  %v124 = vadd.f32 %v50, %v123
  %v125 = vpop.f32.mrb[0].mxu0
  %v126 = vpop.f32.mrb[0].mxu0
  %v127 = vadd.f32 %v50, %v126
  %v128 = vpop.f32.mrb[0].mxu0
  %129 = vmatprep.mubr.bf16.mxu0 0
  %130 = vmatmul.mubr.bf16.gmra.mrb[0].mxu0 %v77
  %v131 = vpop.f32.mrb[0].mxu0
  %v132 = vadd.f32 %v50, %v131
  %v133 = vpop.f32.mrb[0].mxu0
  %v134 = vpop.f32.mrb[0].mxu0
  %v135 = vadd.f32 %v50, %v134
  %v136 = vpop.f32.mrb[0].mxu0
  %137 = vmatprep.mubr.bf16.mxu0 0
  %138 = vmatmul.mubr.bf16.gmra.mrb[0].mxu0 %v80
  %v139 = vpop.f32.mrb[0].mxu0
  %v140 = vadd.f32 %v50, %v139
  %v141 = vpop.f32.mrb[0].mxu0
  %v142 = vpop.f32.mrb[0].mxu0
  %v143 = vadd.f32 %v50, %v142
  %v144 = vpop.f32.mrb[0].mxu0
  %145 = vmatprep.mubr.bf16.mxu0 0
  %146 = vmatmul.mubr.bf16.gmra.mrb[0].mxu0 %v83
  %v147 = vpop.f32.mrb[0].mxu0
  %v148 = vadd.f32 %v50, %v147
  %v149 = vpop.f32.mrb[0].mxu0
  %v150 = vpop.f32.mrb[0].mxu0
  %v151 = vadd.f32 %v50, %v150
  %v152 = vpop.f32.mrb[0].mxu0
  %153 = vdwg.mxu0
  %154 = vst [vmem:[#allocation5] sm:$0xff] %v124
  %155 = vst [vmem:[#allocation5 + $0x8] sm:$0xff] %v127
  %156 = vst [vmem:[#allocation5 + $0x10] sm:$0xff] %v132
  %157 = vst [vmem:[#allocation5 + $0x18] sm:$0xff] %v135
  %158 = vst [vmem:[#allocation5 + $0x20] sm:$0xff] %v140
  %159 = vst [vmem:[#allocation5 + $0x28] sm:$0xff] %v143
  %160 = vst [vmem:[#allocation5 + $0x30] sm:$0xff] %v148
  %161 = vst [vmem:[#allocation5 + $0x38] sm:$0xff] %v151
  %v162 = vld [vmem:[#allocation2] sm:$0xff]
  %v163 = vpack.c.bf16 %v162, %v162
  %v164 = vld [vmem:[#allocation5] sm:$0xff]
  %v165 = vld [vmem:[%s3] sm:$0xf]
  %v166 = vld [vmem:[%s3 + $0x4] sm:$0xf]
  %v167 = vld [vmem:[%s3 + $0x8] sm:$0xf]
  %v168 = vld [vmem:[%s3 + $0xc] sm:$0xf]
  %v173 = vunpack.c.l.b16 %v165
  %v174 = vunpack.c.l.b16 %v166
  %v175 = vunpack.c.l.b16 %v167
  %v176 = vunpack.c.l.b16 %v168
  %v177 = vpack.c.b16 %v174, %v173
  %v178 = vpack.c.b16 %v176, %v175
  %vm181 = vcmask 261120
  %v183 = vsel %vm181, %v163, 0
  %185 = vmatprep.subr.bf16.mxu0 0
  %186 = vmatpush1.bf16.msra.mxu0 %v177
  %187 = vmatprep.subr.bf16.mxu0 0
  %188 = vmatpush1.bf16.msra.mxu0 %v178
  %189 = vmatprep.subr.bf16.mxu0 0
  %190 = vmatpush1.bf16.msra.mxu0 0
  %191 = vmatprep.subr.bf16.mxu0 0
  %192 = vmatpush1.bf16.msra.mxu0 0
  %193 = vmatprep.subr.bf16.mxu0 0
  %194 = vmatpush1.bf16.msra.mxu0 0
  %195 = vmatprep.subr.bf16.mxu0 0
  %196 = vmatpush1.bf16.msra.mxu0 0
  %197 = vmatprep.subr.bf16.mxu0 0
  %198 = vmatpush1.bf16.msra.mxu0 0
  %199 = vmatprep.subr.bf16.mxu0 0
  %200 = vmatpush1.bf16.msra.mxu0 0
  %201 = vmatprep.subr.bf16.mxu0 0
  %202 = vmatpush1.bf16.msra.mxu0 0
  %203 = vmatprep.subr.bf16.mxu0 0
  %204 = vmatpush1.bf16.msra.mxu0 0
  %205 = vmatprep.subr.bf16.mxu0 0
  %206 = vmatpush1.bf16.msra.mxu0 0
  %207 = vmatprep.subr.bf16.mxu0 0
  %208 = vmatpush1.bf16.msra.mxu0 0
  %209 = vmatprep.subr.bf16.mxu0 0
  %210 = vmatpush1.bf16.msra.mxu0 0
  %211 = vmatprep.subr.bf16.mxu0 0
  %212 = vmatpush1.bf16.msra.mxu0 0
  %213 = vmatprep.subr.bf16.mxu0 0
  %214 = vmatpush1.bf16.msra.mxu0 0
  %215 = vmatprep.subr.bf16.mxu0 0
  %216 = vmatpush1.bf16.msra.mxu0 0
  %217 = vmatprep.mubr.bf16.mxu0 0
  %218 = vmatmul.mubr.bf16.gmra.mrb[0].mxu0 %v183
  %v219 = vpop.f32.mrb[0].mxu0
  %v220 = vadd.f32 0.0, %v219
  %v221 = vpop.f32.mrb[0].mxu0
  %v222 = vpop.f32.mrb[0].mxu0
  %v223 = vpop.f32.mrb[0].mxu0
  %224 = vdwg.mxu0
  %v225 = vadd.f32 %v164, %v220
  %v226 = vxor.u32 %v225, 2147483648
  %v227 = vmul.f32 %v226, 1.442695
  %v228 = vpow.pop %v227
  %v229 = vadd.f32 %v228, 1.0
  %v230 = vrcp.pop %v229
  %v231 = vmul.f32 1.0, %v230
  %v232 = vtanh.pop %v225
  %v233 = vld [vmem:[#allocation3] sm:$0xff]
  %235 = vrot.lane.b32.xlu0 %v233, 32
  %v236 = vpop.permute.xlu0 %235
  %v238 = vmul.f32 %v231, %v236
  %240 = vrot.lane.b32.xlu0 %v232, 32
  %v241 = vpop.permute.xlu0 %240
  %v243 = vmul.f32 %v231, %v241
  %245 = vrot.lane.b32.xlu0 %v243, 32
  %v246 = vpop.permute.xlu0 %245
  %v248 = vadd.f32 %v238, %v246
  %v249 = vtanh.pop %v248
  %251 = vrot.lane.b32.xlu0 %v249, 32
  %v252 = vpop.permute.xlu0 %251
  %v254 = vmul.f32 %v231, %v252
  %256 = vrot.lane.b32.xlu0 %v248, 96
  %v257 = vpop.permute.xlu0 %256
  %259 = vst.msk [vmem:[#allocation3] sm:$0xff] %vm181, %v257
  %261 = vrot.lane.b32.xlu0 %v254, 64
  %v262 = vpop.permute.xlu0 %261
  %264 = vst.msk [vmem:[#allocation2] sm:$0xff] %vm181, %v262
  %265 = vst.msk [vmem:[#allocation4] sm:$0xff] %vm181, %v262
  %s266 = scalar_lea.vmem [#allocation2], 8
  %v267 = vld [vmem:[%s266] sm:$0xff]
  %v268 = vpack.c.bf16 %v267, %v267
  %v269 = vld [vmem:[#allocation4] sm:$0xff]
  %v270 = vpack.c.bf16 %v269, %v269
  %v271 = vld [vmem:[%s2] sm:$0xf]
  %v272 = vld [vmem:[%s2 + $0x4] sm:$0xf]
  %v273 = vld [vmem:[%s2 + $0x8] sm:$0xf]
  %v274 = vld [vmem:[%s2 + $0xc] sm:$0xf]
  %s275 = scalar_lea.vmem %s4, 1
  %v276 = vld [vmem:[%s275] sm:$0x1]
  %v278 = vlaneseq
  %v279 = vshrl.u32 %v278, 7
  %v280 = vsub.s32 0, %v279
  %v281 = vrot.slane %v276, %v280
  %v287 = vunpack.c.l.b16 %v271
  %v288 = vunpack.c.l.b16 %v272
  %v289 = vunpack.c.l.b16 %v273
  %v290 = vunpack.c.l.b16 %v274
  %v291 = vpack.c.b16 %v288, %v287
  %v292 = vpack.c.b16 %v290, %v289
  %v296 = vsel %vm181, %v270, 0
  %298 = vmatprep.subr.bf16.mxu0 0
  %299 = vmatpush1.bf16.msra.mxu0 %v291
  %300 = vmatprep.subr.bf16.mxu0 0
  %301 = vmatpush1.bf16.msra.mxu0 %v292
  %302 = vmatprep.subr.bf16.mxu0 0
  %303 = vmatpush1.bf16.msra.mxu0 0
  %304 = vmatprep.subr.bf16.mxu0 0
  %305 = vmatpush1.bf16.msra.mxu0 0
  %306 = vmatprep.subr.bf16.mxu0 0
  %307 = vmatpush1.bf16.msra.mxu0 0
  %308 = vmatprep.subr.bf16.mxu0 0
  %309 = vmatpush1.bf16.msra.mxu0 0
  %310 = vmatprep.subr.bf16.mxu0 0
  %311 = vmatpush1.bf16.msra.mxu0 0
  %312 = vmatprep.subr.bf16.mxu0 0
  %313 = vmatpush1.bf16.msra.mxu0 0
  %314 = vmatprep.subr.bf16.mxu0 0
  %315 = vmatpush1.bf16.msra.mxu0 0
  %316 = vmatprep.subr.bf16.mxu0 0
  %317 = vmatpush1.bf16.msra.mxu0 0
  %318 = vmatprep.subr.bf16.mxu0 0
  %319 = vmatpush1.bf16.msra.mxu0 0
  %320 = vmatprep.subr.bf16.mxu0 0
  %321 = vmatpush1.bf16.msra.mxu0 0
  %322 = vmatprep.subr.bf16.mxu0 0
  %323 = vmatpush1.bf16.msra.mxu0 0
  %324 = vmatprep.subr.bf16.mxu0 0
  %325 = vmatpush1.bf16.msra.mxu0 0
  %326 = vmatprep.subr.bf16.mxu0 0
  %327 = vmatpush1.bf16.msra.mxu0 0
  %328 = vmatprep.subr.bf16.mxu0 0
  %329 = vmatpush1.bf16.msra.mxu0 0
  %330 = vmatprep.mubr.bf16.mxu0 0
  %331 = vmatmul.mubr.bf16.gmra.mrb[0].mxu0 %v296
  %v332 = vpop.f32.mrb[0].mxu0
  %v333 = vadd.f32 %v281, %v332
  %v334 = vpop.f32.mrb[0].mxu0
  %v335 = vpop.f32.mrb[0].mxu0
  %v336 = vpop.f32.mrb[0].mxu0
  %337 = vdwg.mxu0
  %s338 = scalar_lea.vmem %s3, 16
  %v339 = vld [vmem:[%s338] sm:$0xf]
  %v340 = vld [vmem:[%s338 + $0x4] sm:$0xf]
  %v341 = vld [vmem:[%s338 + $0x8] sm:$0xf]
  %v342 = vld [vmem:[%s338 + $0xc] sm:$0xf]
  %v347 = vunpack.c.l.b16 %v339
  %v348 = vunpack.c.l.b16 %v340
  %v349 = vunpack.c.l.b16 %v341
  %v350 = vunpack.c.l.b16 %v342
  %v351 = vpack.c.b16 %v348, %v347
  %v352 = vpack.c.b16 %v350, %v349
  %v356 = vsel %vm181, %v268, 0
  %358 = vmatprep.subr.bf16.mxu0 0
  %359 = vmatpush1.bf16.msra.mxu0 %v351
  %360 = vmatprep.subr.bf16.mxu0 0
  %361 = vmatpush1.bf16.msra.mxu0 %v352
  %362 = vmatprep.subr.bf16.mxu0 0
  %363 = vmatpush1.bf16.msra.mxu0 0
  %364 = vmatprep.subr.bf16.mxu0 0
  %365 = vmatpush1.bf16.msra.mxu0 0
  %366 = vmatprep.subr.bf16.mxu0 0
  %367 = vmatpush1.bf16.msra.mxu0 0
  %368 = vmatprep.subr.bf16.mxu0 0
  %369 = vmatpush1.bf16.msra.mxu0 0
  %370 = vmatprep.subr.bf16.mxu0 0
  %371 = vmatpush1.bf16.msra.mxu0 0
  %372 = vmatprep.subr.bf16.mxu0 0
  %373 = vmatpush1.bf16.msra.mxu0 0
  %374 = vmatprep.subr.bf16.mxu0 0
  %375 = vmatpush1.bf16.msra.mxu0 0
  %376 = vmatprep.subr.bf16.mxu0 0
  %377 = vmatpush1.bf16.msra.mxu0 0
  %378 = vmatprep.subr.bf16.mxu0 0
  %379 = vmatpush1.bf16.msra.mxu0 0
  %380 = vmatprep.subr.bf16.mxu0 0
  %381 = vmatpush1.bf16.msra.mxu0 0
  %382 = vmatprep.subr.bf16.mxu0 0
  %383 = vmatpush1.bf16.msra.mxu0 0
  %384 = vmatprep.subr.bf16.mxu0 0
  %385 = vmatpush1.bf16.msra.mxu0 0
  %386 = vmatprep.subr.bf16.mxu0 0
  %387 = vmatpush1.bf16.msra.mxu0 0
  %388 = vmatprep.subr.bf16.mxu0 0
  %389 = vmatpush1.bf16.msra.mxu0 0
  %390 = vmatprep.mubr.bf16.mxu0 0
  %391 = vmatmul.mubr.bf16.gmra.mrb[0].mxu0 %v356
  %v392 = vpop.f32.mrb[0].mxu0
  %v393 = vadd.f32 0.0, %v392
  %v394 = vpop.f32.mrb[0].mxu0
  %v395 = vpop.f32.mrb[0].mxu0
  %v396 = vpop.f32.mrb[0].mxu0
  %397 = vdwg.mxu0
  %v398 = vadd.f32 %v333, %v393
  %v399 = vxor.u32 %v398, 2147483648
  %v400 = vmul.f32 %v399, 1.442695
  %v401 = vpow.pop %v400
  %v402 = vadd.f32 %v401, 1.0
  %v403 = vrcp.pop %v402
  %v404 = vmul.f32 1.0, %v403
  %v405 = vtanh.pop %v398
  %s406 = scalar_lea.vmem [#allocation3], 8
  %v407 = vld [vmem:[%s406] sm:$0xff]
  %409 = vrot.lane.b32.xlu0 %v407, 32
  %v410 = vpop.permute.xlu0 %409
  %v412 = vmul.f32 %v404, %v410
  %414 = vrot.lane.b32.xlu0 %v405, 32
  %v415 = vpop.permute.xlu0 %414
  %v417 = vmul.f32 %v404, %v415
  %419 = vrot.lane.b32.xlu0 %v417, 32
  %v420 = vpop.permute.xlu0 %419
  %v422 = vadd.f32 %v412, %v420
  %v423 = vtanh.pop %v422
  %425 = vrot.lane.b32.xlu0 %v423, 32
  %v426 = vpop.permute.xlu0 %425
  %v428 = vmul.f32 %v404, %v426
  %430 = vrot.lane.b32.xlu0 %v422, 96
  %v431 = vpop.permute.xlu0 %430
  %433 = vst.msk [vmem:[%s406] sm:$0xff] %vm181, %v431
  %435 = vrot.lane.b32.xlu0 %v428, 64
  %v436 = vpop.permute.xlu0 %435
  %438 = vst.msk [vmem:[%s266] sm:$0xff] %vm181, %v436
  %v439 = vld [vmem:[#allocation2] sm:$0xff]
  %v440 = vpack.c.bf16 %v439, %v439
  %v441 = vld [vmem:[#allocation5 + $0x8] sm:$0xff]
  %v442 = vld [vmem:[%s3] sm:$0xf]
  %v443 = vld [vmem:[%s3 + $0x4] sm:$0xf]
  %v444 = vld [vmem:[%s3 + $0x8] sm:$0xf]
  %v445 = vld [vmem:[%s3 + $0xc] sm:$0xf]
  %v450 = vunpack.c.l.b16 %v442
  %v451 = vunpack.c.l.b16 %v443
  %v452 = vunpack.c.l.b16 %v444
  %v453 = vunpack.c.l.b16 %v445
  %v454 = vpack.c.b16 %v451, %v450
  %v455 = vpack.c.b16 %v453, %v452
  %v459 = vsel %vm181, %v440, 0
  %461 = vmatprep.subr.bf16.mxu0 0
  %462 = vmatpush1.bf16.msra.mxu0 %v454
  %463 = vmatprep.subr.bf16.mxu0 0
  %464 = vmatpush1.bf16.msra.mxu0 %v455
  %465 = vmatprep.subr.bf16.mxu0 0
  %466 = vmatpush1.bf16.msra.mxu0 0
  %467 = vmatprep.subr.bf16.mxu0 0
  %468 = vmatpush1.bf16.msra.mxu0 0
  %469 = vmatprep.subr.bf16.mxu0 0
  %470 = vmatpush1.bf16.msra.mxu0 0
  %471 = vmatprep.subr.bf16.mxu0 0
  %472 = vmatpush1.bf16.msra.mxu0 0
  %473 = vmatprep.subr.bf16.mxu0 0
  %474 = vmatpush1.bf16.msra.mxu0 0
  %475 = vmatprep.subr.bf16.mxu0 0
  %476 = vmatpush1.bf16.msra.mxu0 0
  %477 = vmatprep.subr.bf16.mxu0 0
  %478 = vmatpush1.bf16.msra.mxu0 0
  %479 = vmatprep.subr.bf16.mxu0 0
  %480 = vmatpush1.bf16.msra.mxu0 0
  %481 = vmatprep.subr.bf16.mxu0 0
  %482 = vmatpush1.bf16.msra.mxu0 0
  %483 = vmatprep.subr.bf16.mxu0 0
  %484 = vmatpush1.bf16.msra.mxu0 0
  %485 = vmatprep.subr.bf16.mxu0 0
  %486 = vmatpush1.bf16.msra.mxu0 0
  %487 = vmatprep.subr.bf16.mxu0 0
  %488 = vmatpush1.bf16.msra.mxu0 0
  %489 = vmatprep.subr.bf16.mxu0 0
  %490 = vmatpush1.bf16.msra.mxu0 0
  %491 = vmatprep.subr.bf16.mxu0 0
  %492 = vmatpush1.bf16.msra.mxu0 0
  %493 = vmatprep.mubr.bf16.mxu0 0
  %494 = vmatmul.mubr.bf16.gmra.mrb[0].mxu0 %v459
  %v495 = vpop.f32.mrb[0].mxu0
  %v496 = vadd.f32 0.0, %v495
  %v497 = vpop.f32.mrb[0].mxu0
  %v498 = vpop.f32.mrb[0].mxu0
  %v499 = vpop.f32.mrb[0].mxu0
  %500 = vdwg.mxu0
  %v501 = vadd.f32 %v441, %v496
  %v502 = vxor.u32 %v501, 2147483648
  %v503 = vmul.f32 %v502, 1.442695
  %v504 = vpow.pop %v503
  %v505 = vadd.f32 %v504, 1.0
  %v506 = vrcp.pop %v505
  %v507 = vmul.f32 1.0, %v506
  %v508 = vtanh.pop %v501
  %v509 = vld [vmem:[#allocation3] sm:$0xff]
  %511 = vrot.lane.b32.xlu0 %v509, 32
  %v512 = vpop.permute.xlu0 %511
  %v514 = vmul.f32 %v507, %v512
  %516 = vrot.lane.b32.xlu0 %v508, 32
  %v517 = vpop.permute.xlu0 %516
  %v519 = vmul.f32 %v507, %v517
  %521 = vrot.lane.b32.xlu0 %v519, 32
  %v522 = vpop.permute.xlu0 %521
  %v524 = vadd.f32 %v514, %v522
  %v525 = vtanh.pop %v524
  %527 = vrot.lane.b32.xlu0 %v525, 32
  %v528 = vpop.permute.xlu0 %527
  %v530 = vmul.f32 %v507, %v528
  %532 = vrot.lane.b32.xlu0 %v524, 96
  %v533 = vpop.permute.xlu0 %532
  %535 = vst.msk [vmem:[#allocation3] sm:$0xff] %vm181, %v533
  %537 = vrot.lane.b32.xlu0 %v530, 64
  %v538 = vpop.permute.xlu0 %537
  %540 = vst.msk [vmem:[#allocation2] sm:$0xff] %vm181, %v538
  %541 = vst.msk [vmem:[#allocation4] sm:$0xff] %vm181, %v538
  %v542 = vld [vmem:[%s266] sm:$0xff]
  %v543 = vpack.c.bf16 %v542, %v542
  %v544 = vld [vmem:[#allocation4] sm:$0xff]
  %v545 = vpack.c.bf16 %v544, %v544
  %v546 = vld [vmem:[%s2] sm:$0xf]
  %v547 = vld [vmem:[%s2 + $0x4] sm:$0xf]
  %v548 = vld [vmem:[%s2 + $0x8] sm:$0xf]
  %v549 = vld [vmem:[%s2 + $0xc] sm:$0xf]
  %v550 = vld [vmem:[%s275] sm:$0x1]
  %v552 = vlaneseq
  %v553 = vshrl.u32 %v552, 7
  %v554 = vsub.s32 0, %v553
  %v555 = vrot.slane %v550, %v554
  %v561 = vunpack.c.l.b16 %v546
  %v562 = vunpack.c.l.b16 %v547
  %v563 = vunpack.c.l.b16 %v548
  %v564 = vunpack.c.l.b16 %v549
  %v565 = vpack.c.b16 %v562, %v561
  %v566 = vpack.c.b16 %v564, %v563
  %v570 = vsel %vm181, %v545, 0
  %572 = vmatprep.subr.bf16.mxu0 0
  %573 = vmatpush1.bf16.msra.mxu0 %v565
  %574 = vmatprep.subr.bf16.mxu0 0
  %575 = vmatpush1.bf16.msra.mxu0 %v566
  %576 = vmatprep.subr.bf16.mxu0 0
  %577 = vmatpush1.bf16.msra.mxu0 0
  %578 = vmatprep.subr.bf16.mxu0 0
  %579 = vmatpush1.bf16.msra.mxu0 0
  %580 = vmatprep.subr.bf16.mxu0 0
  %581 = vmatpush1.bf16.msra.mxu0 0
  %582 = vmatprep.subr.bf16.mxu0 0
  %583 = vmatpush1.bf16.msra.mxu0 0
  %584 = vmatprep.subr.bf16.mxu0 0
  %585 = vmatpush1.bf16.msra.mxu0 0
  %586 = vmatprep.subr.bf16.mxu0 0
  %587 = vmatpush1.bf16.msra.mxu0 0
  %588 = vmatprep.subr.bf16.mxu0 0
  %589 = vmatpush1.bf16.msra.mxu0 0
  %590 = vmatprep.subr.bf16.mxu0 0
  %591 = vmatpush1.bf16.msra.mxu0 0
  %592 = vmatprep.subr.bf16.mxu0 0
  %593 = vmatpush1.bf16.msra.mxu0 0
  %594 = vmatprep.subr.bf16.mxu0 0
  %595 = vmatpush1.bf16.msra.mxu0 0
  %596 = vmatprep.subr.bf16.mxu0 0
  %597 = vmatpush1.bf16.msra.mxu0 0
  %598 = vmatprep.subr.bf16.mxu0 0
  %599 = vmatpush1.bf16.msra.mxu0 0
  %600 = vmatprep.subr.bf16.mxu0 0
  %601 = vmatpush1.bf16.msra.mxu0 0
  %602 = vmatprep.subr.bf16.mxu0 0
  %603 = vmatpush1.bf16.msra.mxu0 0
  %604 = vmatprep.mubr.bf16.mxu0 0
  %605 = vmatmul.mubr.bf16.gmra.mrb[0].mxu0 %v570
  %v606 = vpop.f32.mrb[0].mxu0
  %v607 = vadd.f32 %v555, %v606
  %v608 = vpop.f32.mrb[0].mxu0
  %v609 = vpop.f32.mrb[0].mxu0
  %v610 = vpop.f32.mrb[0].mxu0
  %611 = vdwg.mxu0
  %v612 = vld [vmem:[%s338] sm:$0xf]
  %v613 = vld [vmem:[%s338 + $0x4] sm:$0xf]
  %v614 = vld [vmem:[%s338 + $0x8] sm:$0xf]
  %v615 = vld [vmem:[%s338 + $0xc] sm:$0xf]
  %v620 = vunpack.c.l.b16 %v612
  %v621 = vunpack.c.l.b16 %v613
  %v622 = vunpack.c.l.b16 %v614
  %v623 = vunpack.c.l.b16 %v615
  %v624 = vpack.c.b16 %v621, %v620
  %v625 = vpack.c.b16 %v623, %v622
  %v629 = vsel %vm181, %v543, 0
  %631 = vmatprep.subr.bf16.mxu0 0
  %632 = vmatpush1.bf16.msra.mxu0 %v624
  %633 = vmatprep.subr.bf16.mxu0 0
  %634 = vmatpush1.bf16.msra.mxu0 %v625
  %635 = vmatprep.subr.bf16.mxu0 0
  %636 = vmatpush1.bf16.msra.mxu0 0
  %637 = vmatprep.subr.bf16.mxu0 0
  %638 = vmatpush1.bf16.msra.mxu0 0
  %639 = vmatprep.subr.bf16.mxu0 0
  %640 = vmatpush1.bf16.msra.mxu0 0
  %641 = vmatprep.subr.bf16.mxu0 0
  %642 = vmatpush1.bf16.msra.mxu0 0
  %643 = vmatprep.subr.bf16.mxu0 0
  %644 = vmatpush1.bf16.msra.mxu0 0
  %645 = vmatprep.subr.bf16.mxu0 0
  %646 = vmatpush1.bf16.msra.mxu0 0
  %647 = vmatprep.subr.bf16.mxu0 0
  %648 = vmatpush1.bf16.msra.mxu0 0
  %649 = vmatprep.subr.bf16.mxu0 0
  %650 = vmatpush1.bf16.msra.mxu0 0
  %651 = vmatprep.subr.bf16.mxu0 0
  %652 = vmatpush1.bf16.msra.mxu0 0
  %653 = vmatprep.subr.bf16.mxu0 0
  %654 = vmatpush1.bf16.msra.mxu0 0
  %655 = vmatprep.subr.bf16.mxu0 0
  %656 = vmatpush1.bf16.msra.mxu0 0
  %657 = vmatprep.subr.bf16.mxu0 0
  %658 = vmatpush1.bf16.msra.mxu0 0
  %659 = vmatprep.subr.bf16.mxu0 0
  %660 = vmatpush1.bf16.msra.mxu0 0
  %661 = vmatprep.subr.bf16.mxu0 0
  %662 = vmatpush1.bf16.msra.mxu0 0
  %663 = vmatprep.mubr.bf16.mxu0 0
  %664 = vmatmul.mubr.bf16.gmra.mrb[0].mxu0 %v629
  %v665 = vpop.f32.mrb[0].mxu0
  %v666 = vadd.f32 0.0, %v665
  %v667 = vpop.f32.mrb[0].mxu0
  %v668 = vpop.f32.mrb[0].mxu0
  %v669 = vpop.f32.mrb[0].mxu0
  %670 = vdwg.mxu0
  %v671 = vadd.f32 %v607, %v666
  %v672 = vxor.u32 %v671, 2147483648
  %v673 = vmul.f32 %v672, 1.442695
  %v674 = vpow.pop %v673
  %v675 = vadd.f32 %v674, 1.0
  %v676 = vrcp.pop %v675
  %v677 = vmul.f32 1.0, %v676
  %v678 = vtanh.pop %v671
  %v679 = vld [vmem:[%s406] sm:$0xff]
  %681 = vrot.lane.b32.xlu0 %v679, 32
  %v682 = vpop.permute.xlu0 %681
  %v684 = vmul.f32 %v677, %v682
  %686 = vrot.lane.b32.xlu0 %v678, 32
  %v687 = vpop.permute.xlu0 %686
  %v689 = vmul.f32 %v677, %v687
  %691 = vrot.lane.b32.xlu0 %v689, 32
  %v692 = vpop.permute.xlu0 %691
  %v694 = vadd.f32 %v684, %v692
  %v695 = vtanh.pop %v694
  %697 = vrot.lane.b32.xlu0 %v695, 32
  %v698 = vpop.permute.xlu0 %697
  %v700 = vmul.f32 %v677, %v698
  %702 = vrot.lane.b32.xlu0 %v694, 96
  %v703 = vpop.permute.xlu0 %702
  %705 = vst.msk [vmem:[%s406] sm:$0xff] %vm181, %v703
  %707 = vrot.lane.b32.xlu0 %v700, 64
  %v708 = vpop.permute.xlu0 %707
  %710 = vst.msk [vmem:[%s266] sm:$0xff] %vm181, %v708
  %v711 = vld [vmem:[#allocation2] sm:$0xff]
  %v712 = vpack.c.bf16 %v711, %v711
  %v713 = vld [vmem:[#allocation5 + $0x10] sm:$0xff]
  %v714 = vld [vmem:[%s3] sm:$0xf]
  %v715 = vld [vmem:[%s3 + $0x4] sm:$0xf]
  %v716 = vld [vmem:[%s3 + $0x8] sm:$0xf]
  %v717 = vld [vmem:[%s3 + $0xc] sm:$0xf]
  %v722 = vunpack.c.l.b16 %v714
  %v723 = vunpack.c.l.b16 %v715
  %v724 = vunpack.c.l.b16 %v716
  %v725 = vunpack.c.l.b16 %v717
  %v726 = vpack.c.b16 %v723, %v722
  %v727 = vpack.c.b16 %v725, %v724
  %v731 = vsel %vm181, %v712, 0
  %733 = vmatprep.subr.bf16.mxu0 0
  %734 = vmatpush1.bf16.msra.mxu0 %v726
  %735 = vmatprep.subr.bf16.mxu0 0
  %736 = vmatpush1.bf16.msra.mxu0 %v727
  %737 = vmatprep.subr.bf16.mxu0 0
  %738 = vmatpush1.bf16.msra.mxu0 0
  %739 = vmatprep.subr.bf16.mxu0 0
  %740 = vmatpush1.bf16.msra.mxu0 0
  %741 = vmatprep.subr.bf16.mxu0 0
  %742 = vmatpush1.bf16.msra.mxu0 0
  %743 = vmatprep.subr.bf16.mxu0 0
  %744 = vmatpush1.bf16.msra.mxu0 0
  %745 = vmatprep.subr.bf16.mxu0 0
  %746 = vmatpush1.bf16.msra.mxu0 0
  %747 = vmatprep.subr.bf16.mxu0 0
  %748 = vmatpush1.bf16.msra.mxu0 0
  %749 = vmatprep.subr.bf16.mxu0 0
  %750 = vmatpush1.bf16.msra.mxu0 0
  %751 = vmatprep.subr.bf16.mxu0 0
  %752 = vmatpush1.bf16.msra.mxu0 0
  %753 = vmatprep.subr.bf16.mxu0 0
  %754 = vmatpush1.bf16.msra.mxu0 0
  %755 = vmatprep.subr.bf16.mxu0 0
  %756 = vmatpush1.bf16.msra.mxu0 0
  %757 = vmatprep.subr.bf16.mxu0 0
  %758 = vmatpush1.bf16.msra.mxu0 0
  %759 = vmatprep.subr.bf16.mxu0 0
  %760 = vmatpush1.bf16.msra.mxu0 0
  %761 = vmatprep.subr.bf16.mxu0 0
  %762 = vmatpush1.bf16.msra.mxu0 0
  %763 = vmatprep.subr.bf16.mxu0 0
  %764 = vmatpush1.bf16.msra.mxu0 0
  %765 = vmatprep.mubr.bf16.mxu0 0
  %766 = vmatmul.mubr.bf16.gmra.mrb[0].mxu0 %v731
  %v767 = vpop.f32.mrb[0].mxu0
  %v768 = vadd.f32 0.0, %v767
  %v769 = vpop.f32.mrb[0].mxu0
  %v770 = vpop.f32.mrb[0].mxu0
  %v771 = vpop.f32.mrb[0].mxu0
  %772 = vdwg.mxu0
  %v773 = vadd.f32 %v713, %v768
  %v774 = vxor.u32 %v773, 2147483648
  %v775 = vmul.f32 %v774, 1.442695
  %v776 = vpow.pop %v775
  %v777 = vadd.f32 %v776, 1.0
  %v778 = vrcp.pop %v777
  %v779 = vmul.f32 1.0, %v778
  %v780 = vtanh.pop %v773
  %v781 = vld [vmem:[#allocation3] sm:$0xff]
  %783 = vrot.lane.b32.xlu0 %v781, 32
  %v784 = vpop.permute.xlu0 %783
  %v786 = vmul.f32 %v779, %v784
  %788 = vrot.lane.b32.xlu0 %v780, 32
  %v789 = vpop.permute.xlu0 %788
  %v791 = vmul.f32 %v779, %v789
  %793 = vrot.lane.b32.xlu0 %v791, 32
  %v794 = vpop.permute.xlu0 %793
  %v796 = vadd.f32 %v786, %v794
  %v797 = vtanh.pop %v796
  %799 = vrot.lane.b32.xlu0 %v797, 32
  %v800 = vpop.permute.xlu0 %799
  %v802 = vmul.f32 %v779, %v800
  %804 = vrot.lane.b32.xlu0 %v796, 96
  %v805 = vpop.permute.xlu0 %804
  %807 = vst.msk [vmem:[#allocation3] sm:$0xff] %vm181, %v805
  %809 = vrot.lane.b32.xlu0 %v802, 64
  %v810 = vpop.permute.xlu0 %809
  %812 = vst.msk [vmem:[#allocation2] sm:$0xff] %vm181, %v810
  %813 = vst.msk [vmem:[#allocation4] sm:$0xff] %vm181, %v810
  %v814 = vld [vmem:[%s266] sm:$0xff]
  %v815 = vpack.c.bf16 %v814, %v814
  %v816 = vld [vmem:[#allocation4] sm:$0xff]
  %v817 = vpack.c.bf16 %v816, %v816
  %v818 = vld [vmem:[%s2] sm:$0xf]
  %v819 = vld [vmem:[%s2 + $0x4] sm:$0xf]
  %v820 = vld [vmem:[%s2 + $0x8] sm:$0xf]
  %v821 = vld [vmem:[%s2 + $0xc] sm:$0xf]
  %v822 = vld [vmem:[%s275] sm:$0x1]
  %v824 = vlaneseq
  %v825 = vshrl.u32 %v824, 7
  %v826 = vsub.s32 0, %v825
  %v827 = vrot.slane %v822, %v826
  %v833 = vunpack.c.l.b16 %v818
  %v834 = vunpack.c.l.b16 %v819
  %v835 = vunpack.c.l.b16 %v820
  %v836 = vunpack.c.l.b16 %v821
  %v837 = vpack.c.b16 %v834, %v833
  %v838 = vpack.c.b16 %v836, %v835
  %v842 = vsel %vm181, %v817, 0
  %844 = vmatprep.subr.bf16.mxu0 0
  %845 = vmatpush1.bf16.msra.mxu0 %v837
  %846 = vmatprep.subr.bf16.mxu0 0
  %847 = vmatpush1.bf16.msra.mxu0 %v838
  %848 = vmatprep.subr.bf16.mxu0 0
  %849 = vmatpush1.bf16.msra.mxu0 0
  %850 = vmatprep.subr.bf16.mxu0 0
  %851 = vmatpush1.bf16.msra.mxu0 0
  %852 = vmatprep.subr.bf16.mxu0 0
  %853 = vmatpush1.bf16.msra.mxu0 0
  %854 = vmatprep.subr.bf16.mxu0 0
  %855 = vmatpush1.bf16.msra.mxu0 0
  %856 = vmatprep.subr.bf16.mxu0 0
  %857 = vmatpush1.bf16.msra.mxu0 0
  %858 = vmatprep.subr.bf16.mxu0 0
  %859 = vmatpush1.bf16.msra.mxu0 0
  %860 = vmatprep.subr.bf16.mxu0 0
  %861 = vmatpush1.bf16.msra.mxu0 0
  %862 = vmatprep.subr.bf16.mxu0 0
  %863 = vmatpush1.bf16.msra.mxu0 0
  %864 = vmatprep.subr.bf16.mxu0 0
  %865 = vmatpush1.bf16.msra.mxu0 0
  %866 = vmatprep.subr.bf16.mxu0 0
  %867 = vmatpush1.bf16.msra.mxu0 0
  %868 = vmatprep.subr.bf16.mxu0 0
  %869 = vmatpush1.bf16.msra.mxu0 0
  %870 = vmatprep.subr.bf16.mxu0 0
  %871 = vmatpush1.bf16.msra.mxu0 0
  %872 = vmatprep.subr.bf16.mxu0 0
  %873 = vmatpush1.bf16.msra.mxu0 0
  %874 = vmatprep.subr.bf16.mxu0 0
  %875 = vmatpush1.bf16.msra.mxu0 0
  %876 = vmatprep.mubr.bf16.mxu0 0
  %877 = vmatmul.mubr.bf16.gmra.mrb[0].mxu0 %v842
  %v878 = vpop.f32.mrb[0].mxu0
  %v879 = vadd.f32 %v827, %v878
  %v880 = vpop.f32.mrb[0].mxu0
  %v881 = vpop.f32.mrb[0].mxu0
  %v882 = vpop.f32.mrb[0].mxu0
  %883 = vdwg.mxu0
  %v884 = vld [vmem:[%s338] sm:$0xf]
  %v885 = vld [vmem:[%s338 + $0x4] sm:$0xf]
  %v886 = vld [vmem:[%s338 + $0x8] sm:$0xf]
  %v887 = vld [vmem:[%s338 + $0xc] sm:$0xf]
  %v892 = vunpack.c.l.b16 %v884
  %v893 = vunpack.c.l.b16 %v885
  %v894 = vunpack.c.l.b16 %v886
  %v895 = vunpack.c.l.b16 %v887
  %v896 = vpack.c.b16 %v893, %v892
  %v897 = vpack.c.b16 %v895, %v894
  %v901 = vsel %vm181, %v815, 0
  %903 = vmatprep.subr.bf16.mxu0 0
  %904 = vmatpush1.bf16.msra.mxu0 %v896
  %905 = vmatprep.subr.bf16.mxu0 0
  %906 = vmatpush1.bf16.msra.mxu0 %v897
  %907 = vmatprep.subr.bf16.mxu0 0
  %908 = vmatpush1.bf16.msra.mxu0 0
  %909 = vmatprep.subr.bf16.mxu0 0
  %910 = vmatpush1.bf16.msra.mxu0 0
  %911 = vmatprep.subr.bf16.mxu0 0
  %912 = vmatpush1.bf16.msra.mxu0 0
  %913 = vmatprep.subr.bf16.mxu0 0
  %914 = vmatpush1.bf16.msra.mxu0 0
  %915 = vmatprep.subr.bf16.mxu0 0
  %916 = vmatpush1.bf16.msra.mxu0 0
  %917 = vmatprep.subr.bf16.mxu0 0
  %918 = vmatpush1.bf16.msra.mxu0 0
  %919 = vmatprep.subr.bf16.mxu0 0
  %920 = vmatpush1.bf16.msra.mxu0 0
  %921 = vmatprep.subr.bf16.mxu0 0
  %922 = vmatpush1.bf16.msra.mxu0 0
  %923 = vmatprep.subr.bf16.mxu0 0
  %924 = vmatpush1.bf16.msra.mxu0 0
  %925 = vmatprep.subr.bf16.mxu0 0
  %926 = vmatpush1.bf16.msra.mxu0 0
  %927 = vmatprep.subr.bf16.mxu0 0
  %928 = vmatpush1.bf16.msra.mxu0 0
  %929 = vmatprep.subr.bf16.mxu0 0
  %930 = vmatpush1.bf16.msra.mxu0 0
  %931 = vmatprep.subr.bf16.mxu0 0
  %932 = vmatpush1.bf16.msra.mxu0 0
  %933 = vmatprep.subr.bf16.mxu0 0
  %934 = vmatpush1.bf16.msra.mxu0 0
  %935 = vmatprep.mubr.bf16.mxu0 0
  %936 = vmatmul.mubr.bf16.gmra.mrb[0].mxu0 %v901
  %v937 = vpop.f32.mrb[0].mxu0
  %v938 = vadd.f32 0.0, %v937
  %v939 = vpop.f32.mrb[0].mxu0
  %v940 = vpop.f32.mrb[0].mxu0
  %v941 = vpop.f32.mrb[0].mxu0
  %942 = vdwg.mxu0
  %v943 = vadd.f32 %v879, %v938
  %v944 = vxor.u32 %v943, 2147483648
  %v945 = vmul.f32 %v944, 1.442695
  %v946 = vpow.pop %v945
  %v947 = vadd.f32 %v946, 1.0
  %v948 = vrcp.pop %v947
  %v949 = vmul.f32 1.0, %v948
  %v950 = vtanh.pop %v943
  %v951 = vld [vmem:[%s406] sm:$0xff]
  %953 = vrot.lane.b32.xlu0 %v951, 32
  %v954 = vpop.permute.xlu0 %953
  %v956 = vmul.f32 %v949, %v954
  %958 = vrot.lane.b32.xlu0 %v950, 32
  %v959 = vpop.permute.xlu0 %958
  %v961 = vmul.f32 %v949, %v959
  %963 = vrot.lane.b32.xlu0 %v961, 32
  %v964 = vpop.permute.xlu0 %963
  %v966 = vadd.f32 %v956, %v964
  %v967 = vtanh.pop %v966
  %969 = vrot.lane.b32.xlu0 %v967, 32
  %v970 = vpop.permute.xlu0 %969
  %v972 = vmul.f32 %v949, %v970
  %974 = vrot.lane.b32.xlu0 %v966, 96
  %v975 = vpop.permute.xlu0 %974
  %977 = vst.msk [vmem:[%s406] sm:$0xff] %vm181, %v975
  %979 = vrot.lane.b32.xlu0 %v972, 64
  %v980 = vpop.permute.xlu0 %979
  %982 = vst.msk [vmem:[%s266] sm:$0xff] %vm181, %v980
  %v983 = vld [vmem:[#allocation2] sm:$0xff]
  %v984 = vpack.c.bf16 %v983, %v983
  %v985 = vld [vmem:[#allocation5 + $0x18] sm:$0xff]
  %v986 = vld [vmem:[%s3] sm:$0xf]
  %v987 = vld [vmem:[%s3 + $0x4] sm:$0xf]
  %v988 = vld [vmem:[%s3 + $0x8] sm:$0xf]
  %v989 = vld [vmem:[%s3 + $0xc] sm:$0xf]
  %v994 = vunpack.c.l.b16 %v986
  %v995 = vunpack.c.l.b16 %v987
  %v996 = vunpack.c.l.b16 %v988
  %v997 = vunpack.c.l.b16 %v989
  %v998 = vpack.c.b16 %v995, %v994
  %v999 = vpack.c.b16 %v997, %v996
  %v1003 = vsel %vm181, %v984, 0
  %1005 = vmatprep.subr.bf16.mxu0 0
  %1006 = vmatpush1.bf16.msra.mxu0 %v998
  %1007 = vmatprep.subr.bf16.mxu0 0
  %1008 = vmatpush1.bf16.msra.mxu0 %v999
  %1009 = vmatprep.subr.bf16.mxu0 0
  %1010 = vmatpush1.bf16.msra.mxu0 0
  %1011 = vmatprep.subr.bf16.mxu0 0
  %1012 = vmatpush1.bf16.msra.mxu0 0
  %1013 = vmatprep.subr.bf16.mxu0 0
  %1014 = vmatpush1.bf16.msra.mxu0 0
  %1015 = vmatprep.subr.bf16.mxu0 0
  %1016 = vmatpush1.bf16.msra.mxu0 0
  %1017 = vmatprep.subr.bf16.mxu0 0
  %1018 = vmatpush1.bf16.msra.mxu0 0
  %1019 = vmatprep.subr.bf16.mxu0 0
  %1020 = vmatpush1.bf16.msra.mxu0 0
  %1021 = vmatprep.subr.bf16.mxu0 0
  %1022 = vmatpush1.bf16.msra.mxu0 0
  %1023 = vmatprep.subr.bf16.mxu0 0
  %1024 = vmatpush1.bf16.msra.mxu0 0
  %1025 = vmatprep.subr.bf16.mxu0 0
  %1026 = vmatpush1.bf16.msra.mxu0 0
  %1027 = vmatprep.subr.bf16.mxu0 0
  %1028 = vmatpush1.bf16.msra.mxu0 0
  %1029 = vmatprep.subr.bf16.mxu0 0
  %1030 = vmatpush1.bf16.msra.mxu0 0
  %1031 = vmatprep.subr.bf16.mxu0 0
  %1032 = vmatpush1.bf16.msra.mxu0 0
  %1033 = vmatprep.subr.bf16.mxu0 0
  %1034 = vmatpush1.bf16.msra.mxu0 0
  %1035 = vmatprep.subr.bf16.mxu0 0
  %1036 = vmatpush1.bf16.msra.mxu0 0
  %1037 = vmatprep.mubr.bf16.mxu0 0
  %1038 = vmatmul.mubr.bf16.gmra.mrb[0].mxu0 %v1003
  %v1039 = vpop.f32.mrb[0].mxu0
  %v1040 = vadd.f32 0.0, %v1039
  %v1041 = vpop.f32.mrb[0].mxu0
  %v1042 = vpop.f32.mrb[0].mxu0
  %v1043 = vpop.f32.mrb[0].mxu0
  %1044 = vdwg.mxu0
  %v1045 = vadd.f32 %v985, %v1040
  %v1046 = vxor.u32 %v1045, 2147483648
  %v1047 = vmul.f32 %v1046, 1.442695
  %v1048 = vpow.pop %v1047
  %v1049 = vadd.f32 %v1048, 1.0
  %v1050 = vrcp.pop %v1049
  %v1051 = vmul.f32 1.0, %v1050
  %v1052 = vtanh.pop %v1045
  %v1053 = vld [vmem:[#allocation3] sm:$0xff]
  %1055 = vrot.lane.b32.xlu0 %v1053, 32
  %v1056 = vpop.permute.xlu0 %1055
  %v1058 = vmul.f32 %v1051, %v1056
  %1060 = vrot.lane.b32.xlu0 %v1052, 32
  %v1061 = vpop.permute.xlu0 %1060
  %v1063 = vmul.f32 %v1051, %v1061
  %1065 = vrot.lane.b32.xlu0 %v1063, 32
  %v1066 = vpop.permute.xlu0 %1065
  %v1068 = vadd.f32 %v1058, %v1066
  %v1069 = vtanh.pop %v1068
  %1071 = vrot.lane.b32.xlu0 %v1069, 32
  %v1072 = vpop.permute.xlu0 %1071
  %v1074 = vmul.f32 %v1051, %v1072
  %1076 = vrot.lane.b32.xlu0 %v1068, 96
  %v1077 = vpop.permute.xlu0 %1076
  %1079 = vst.msk [vmem:[#allocation3] sm:$0xff] %vm181, %v1077
  %1081 = vrot.lane.b32.xlu0 %v1074, 64
  %v1082 = vpop.permute.xlu0 %1081
  %1084 = vst.msk [vmem:[#allocation2] sm:$0xff] %vm181, %v1082
  %1085 = vst.msk [vmem:[#allocation4] sm:$0xff] %vm181, %v1082
  %v1086 = vld [vmem:[%s266] sm:$0xff]
  %v1087 = vpack.c.bf16 %v1086, %v1086
  %v1088 = vld [vmem:[#allocation4] sm:$0xff]
  %v1089 = vpack.c.bf16 %v1088, %v1088
  %v1090 = vld [vmem:[%s2] sm:$0xf]
  %v1091 = vld [vmem:[%s2 + $0x4] sm:$0xf]
  %v1092 = vld [vmem:[%s2 + $0x8] sm:$0xf]
  %v1093 = vld [vmem:[%s2 + $0xc] sm:$0xf]
  %v1094 = vld [vmem:[%s275] sm:$0x1]
  %v1096 = vlaneseq
  %v1097 = vshrl.u32 %v1096, 7
  %v1098 = vsub.s32 0, %v1097
  %v1099 = vrot.slane %v1094, %v1098
  %v1105 = vunpack.c.l.b16 %v1090
  %v1106 = vunpack.c.l.b16 %v1091
  %v1107 = vunpack.c.l.b16 %v1092
  %v1108 = vunpack.c.l.b16 %v1093
  %v1109 = vpack.c.b16 %v1106, %v1105
  %v1110 = vpack.c.b16 %v1108, %v1107
  %v1114 = vsel %vm181, %v1089, 0
  %1116 = vmatprep.subr.bf16.mxu0 0
  %1117 = vmatpush1.bf16.msra.mxu0 %v1109
  %1118 = vmatprep.subr.bf16.mxu0 0
  %1119 = vmatpush1.bf16.msra.mxu0 %v1110
  %1120 = vmatprep.subr.bf16.mxu0 0
  %1121 = vmatpush1.bf16.msra.mxu0 0
  %1122 = vmatprep.subr.bf16.mxu0 0
  %1123 = vmatpush1.bf16.msra.mxu0 0
  %1124 = vmatprep.subr.bf16.mxu0 0
  %1125 = vmatpush1.bf16.msra.mxu0 0
  %1126 = vmatprep.subr.bf16.mxu0 0
  %1127 = vmatpush1.bf16.msra.mxu0 0
  %1128 = vmatprep.subr.bf16.mxu0 0
  %1129 = vmatpush1.bf16.msra.mxu0 0
  %1130 = vmatprep.subr.bf16.mxu0 0
  %1131 = vmatpush1.bf16.msra.mxu0 0
  %1132 = vmatprep.subr.bf16.mxu0 0
  %1133 = vmatpush1.bf16.msra.mxu0 0
  %1134 = vmatprep.subr.bf16.mxu0 0
  %1135 = vmatpush1.bf16.msra.mxu0 0
  %1136 = vmatprep.subr.bf16.mxu0 0
  %1137 = vmatpush1.bf16.msra.mxu0 0
  %1138 = vmatprep.subr.bf16.mxu0 0
  %1139 = vmatpush1.bf16.msra.mxu0 0
  %1140 = vmatprep.subr.bf16.mxu0 0
  %1141 = vmatpush1.bf16.msra.mxu0 0
  %1142 = vmatprep.subr.bf16.mxu0 0
  %1143 = vmatpush1.bf16.msra.mxu0 0
  %1144 = vmatprep.subr.bf16.mxu0 0
  %1145 = vmatpush1.bf16.msra.mxu0 0
  %1146 = vmatprep.subr.bf16.mxu0 0
  %1147 = vmatpush1.bf16.msra.mxu0 0
  %1148 = vmatprep.mubr.bf16.mxu0 0
  %1149 = vmatmul.mubr.bf16.gmra.mrb[0].mxu0 %v1114
  %v1150 = vpop.f32.mrb[0].mxu0
  %v1151 = vadd.f32 %v1099, %v1150
  %v1152 = vpop.f32.mrb[0].mxu0
  %v1153 = vpop.f32.mrb[0].mxu0
  %v1154 = vpop.f32.mrb[0].mxu0
  %1155 = vdwg.mxu0
  %v1156 = vld [vmem:[%s338] sm:$0xf]
  %v1157 = vld [vmem:[%s338 + $0x4] sm:$0xf]
  %v1158 = vld [vmem:[%s338 + $0x8] sm:$0xf]
  %v1159 = vld [vmem:[%s338 + $0xc] sm:$0xf]
  %v1164 = vunpack.c.l.b16 %v1156
  %v1165 = vunpack.c.l.b16 %v1157
  %v1166 = vunpack.c.l.b16 %v1158
  %v1167 = vunpack.c.l.b16 %v1159
  %v1168 = vpack.c.b16 %v1165, %v1164
  %v1169 = vpack.c.b16 %v1167, %v1166
  %v1173 = vsel %vm181, %v1087, 0
  %1175 = vmatprep.subr.bf16.mxu0 0
  %1176 = vmatpush1.bf16.msra.mxu0 %v1168
  %1177 = vmatprep.subr.bf16.mxu0 0
  %1178 = vmatpush1.bf16.msra.mxu0 %v1169
  %1179 = vmatprep.subr.bf16.mxu0 0
  %1180 = vmatpush1.bf16.msra.mxu0 0
  %1181 = vmatprep.subr.bf16.mxu0 0
  %1182 = vmatpush1.bf16.msra.mxu0 0
  %1183 = vmatprep.subr.bf16.mxu0 0
  %1184 = vmatpush1.bf16.msra.mxu0 0
  %1185 = vmatprep.subr.bf16.mxu0 0
  %1186 = vmatpush1.bf16.msra.mxu0 0
  %1187 = vmatprep.subr.bf16.mxu0 0
  %1188 = vmatpush1.bf16.msra.mxu0 0
  %1189 = vmatprep.subr.bf16.mxu0 0
  %1190 = vmatpush1.bf16.msra.mxu0 0
  %1191 = vmatprep.subr.bf16.mxu0 0
  %1192 = vmatpush1.bf16.msra.mxu0 0
  %1193 = vmatprep.subr.bf16.mxu0 0
  %1194 = vmatpush1.bf16.msra.mxu0 0
  %1195 = vmatprep.subr.bf16.mxu0 0
  %1196 = vmatpush1.bf16.msra.mxu0 0
  %1197 = vmatprep.subr.bf16.mxu0 0
  %1198 = vmatpush1.bf16.msra.mxu0 0
  %1199 = vmatprep.subr.bf16.mxu0 0
  %1200 = vmatpush1.bf16.msra.mxu0 0
  %1201 = vmatprep.subr.bf16.mxu0 0
  %1202 = vmatpush1.bf16.msra.mxu0 0
  %1203 = vmatprep.subr.bf16.mxu0 0
  %1204 = vmatpush1.bf16.msra.mxu0 0
  %1205 = vmatprep.subr.bf16.mxu0 0
  %1206 = vmatpush1.bf16.msra.mxu0 0
  %1207 = vmatprep.mubr.bf16.mxu0 0
  %1208 = vmatmul.mubr.bf16.gmra.mrb[0].mxu0 %v1173
  %v1209 = vpop.f32.mrb[0].mxu0
  %v1210 = vadd.f32 0.0, %v1209
  %v1211 = vpop.f32.mrb[0].mxu0
  %v1212 = vpop.f32.mrb[0].mxu0
  %v1213 = vpop.f32.mrb[0].mxu0
  %1214 = vdwg.mxu0
  %v1215 = vadd.f32 %v1151, %v1210
  %v1216 = vxor.u32 %v1215, 2147483648
  %v1217 = vmul.f32 %v1216, 1.442695
  %v1218 = vpow.pop %v1217
  %v1219 = vadd.f32 %v1218, 1.0
  %v1220 = vrcp.pop %v1219
  %v1221 = vmul.f32 1.0, %v1220
  %v1222 = vtanh.pop %v1215
  %v1223 = vld [vmem:[%s406] sm:$0xff]
  %1225 = vrot.lane.b32.xlu0 %v1223, 32
  %v1226 = vpop.permute.xlu0 %1225
  %v1228 = vmul.f32 %v1221, %v1226
  %1230 = vrot.lane.b32.xlu0 %v1222, 32
  %v1231 = vpop.permute.xlu0 %1230
  %v1233 = vmul.f32 %v1221, %v1231
  %1235 = vrot.lane.b32.xlu0 %v1233, 32
  %v1236 = vpop.permute.xlu0 %1235
  %v1238 = vadd.f32 %v1228, %v1236
  %v1239 = vtanh.pop %v1238
  %1241 = vrot.lane.b32.xlu0 %v1239, 32
  %v1242 = vpop.permute.xlu0 %1241
  %v1244 = vmul.f32 %v1221, %v1242
  %1246 = vrot.lane.b32.xlu0 %v1238, 96
  %v1247 = vpop.permute.xlu0 %1246
  %1249 = vst.msk [vmem:[%s406] sm:$0xff] %vm181, %v1247
  %1251 = vrot.lane.b32.xlu0 %v1244, 64
  %v1252 = vpop.permute.xlu0 %1251
  %1254 = vst.msk [vmem:[%s266] sm:$0xff] %vm181, %v1252
  %v1255 = vld [vmem:[#allocation2] sm:$0xff]
  %v1256 = vpack.c.bf16 %v1255, %v1255
  %v1257 = vld [vmem:[#allocation5 + $0x20] sm:$0xff]
  %v1258 = vld [vmem:[%s3] sm:$0xf]
  %v1259 = vld [vmem:[%s3 + $0x4] sm:$0xf]
  %v1260 = vld [vmem:[%s3 + $0x8] sm:$0xf]
  %v1261 = vld [vmem:[%s3 + $0xc] sm:$0xf]
  %v1266 = vunpack.c.l.b16 %v1258
  %v1267 = vunpack.c.l.b16 %v1259
  %v1268 = vunpack.c.l.b16 %v1260
  %v1269 = vunpack.c.l.b16 %v1261
  %v1270 = vpack.c.b16 %v1267, %v1266
  %v1271 = vpack.c.b16 %v1269, %v1268
  %v1275 = vsel %vm181, %v1256, 0
  %1277 = vmatprep.subr.bf16.mxu0 0
  %1278 = vmatpush1.bf16.msra.mxu0 %v1270
  %1279 = vmatprep.subr.bf16.mxu0 0
  %1280 = vmatpush1.bf16.msra.mxu0 %v1271
  %1281 = vmatprep.subr.bf16.mxu0 0
  %1282 = vmatpush1.bf16.msra.mxu0 0
  %1283 = vmatprep.subr.bf16.mxu0 0
  %1284 = vmatpush1.bf16.msra.mxu0 0
  %1285 = vmatprep.subr.bf16.mxu0 0
  %1286 = vmatpush1.bf16.msra.mxu0 0
  %1287 = vmatprep.subr.bf16.mxu0 0
  %1288 = vmatpush1.bf16.msra.mxu0 0
  %1289 = vmatprep.subr.bf16.mxu0 0
  %1290 = vmatpush1.bf16.msra.mxu0 0
  %1291 = vmatprep.subr.bf16.mxu0 0
  %1292 = vmatpush1.bf16.msra.mxu0 0
  %1293 = vmatprep.subr.bf16.mxu0 0
  %1294 = vmatpush1.bf16.msra.mxu0 0
  %1295 = vmatprep.subr.bf16.mxu0 0
  %1296 = vmatpush1.bf16.msra.mxu0 0
  %1297 = vmatprep.subr.bf16.mxu0 0
  %1298 = vmatpush1.bf16.msra.mxu0 0
  %1299 = vmatprep.subr.bf16.mxu0 0
  %1300 = vmatpush1.bf16.msra.mxu0 0
  %1301 = vmatprep.subr.bf16.mxu0 0
  %1302 = vmatpush1.bf16.msra.mxu0 0
  %1303 = vmatprep.subr.bf16.mxu0 0
  %1304 = vmatpush1.bf16.msra.mxu0 0
  %1305 = vmatprep.subr.bf16.mxu0 0
  %1306 = vmatpush1.bf16.msra.mxu0 0
  %1307 = vmatprep.subr.bf16.mxu0 0
  %1308 = vmatpush1.bf16.msra.mxu0 0
  %1309 = vmatprep.mubr.bf16.mxu0 0
  %1310 = vmatmul.mubr.bf16.gmra.mrb[0].mxu0 %v1275
  %v1311 = vpop.f32.mrb[0].mxu0
  %v1312 = vadd.f32 0.0, %v1311
  %v1313 = vpop.f32.mrb[0].mxu0
  %v1314 = vpop.f32.mrb[0].mxu0
  %v1315 = vpop.f32.mrb[0].mxu0
  %1316 = vdwg.mxu0
  %v1317 = vadd.f32 %v1257, %v1312
  %v1318 = vxor.u32 %v1317, 2147483648
  %v1319 = vmul.f32 %v1318, 1.442695
  %v1320 = vpow.pop %v1319
  %v1321 = vadd.f32 %v1320, 1.0
  %v1322 = vrcp.pop %v1321
  %v1323 = vmul.f32 1.0, %v1322
  %v1324 = vtanh.pop %v1317
  %v1325 = vld [vmem:[#allocation3] sm:$0xff]
  %1327 = vrot.lane.b32.xlu0 %v1325, 32
  %v1328 = vpop.permute.xlu0 %1327
  %v1330 = vmul.f32 %v1323, %v1328
  %1332 = vrot.lane.b32.xlu0 %v1324, 32
  %v1333 = vpop.permute.xlu0 %1332
  %v1335 = vmul.f32 %v1323, %v1333
  %1337 = vrot.lane.b32.xlu0 %v1335, 32
  %v1338 = vpop.permute.xlu0 %1337
  %v1340 = vadd.f32 %v1330, %v1338
  %v1341 = vtanh.pop %v1340
  %1343 = vrot.lane.b32.xlu0 %v1341, 32
  %v1344 = vpop.permute.xlu0 %1343
  %v1346 = vmul.f32 %v1323, %v1344
  %1348 = vrot.lane.b32.xlu0 %v1340, 96
  %v1349 = vpop.permute.xlu0 %1348
  %1351 = vst.msk [vmem:[#allocation3] sm:$0xff] %vm181, %v1349
  %1353 = vrot.lane.b32.xlu0 %v1346, 64
  %v1354 = vpop.permute.xlu0 %1353
  %1356 = vst.msk [vmem:[#allocation2] sm:$0xff] %vm181, %v1354
  %1357 = vst.msk [vmem:[#allocation4] sm:$0xff] %vm181, %v1354
  %v1358 = vld [vmem:[%s266] sm:$0xff]
  %v1359 = vpack.c.bf16 %v1358, %v1358
  %v1360 = vld [vmem:[#allocation4] sm:$0xff]
  %v1361 = vpack.c.bf16 %v1360, %v1360
  %v1362 = vld [vmem:[%s2] sm:$0xf]
  %v1363 = vld [vmem:[%s2 + $0x4] sm:$0xf]
  %v1364 = vld [vmem:[%s2 + $0x8] sm:$0xf]
  %v1365 = vld [vmem:[%s2 + $0xc] sm:$0xf]
  %v1366 = vld [vmem:[%s275] sm:$0x1]
  %v1368 = vlaneseq
  %v1369 = vshrl.u32 %v1368, 7
  %v1370 = vsub.s32 0, %v1369
  %v1371 = vrot.slane %v1366, %v1370
  %v1377 = vunpack.c.l.b16 %v1362
  %v1378 = vunpack.c.l.b16 %v1363
  %v1379 = vunpack.c.l.b16 %v1364
  %v1380 = vunpack.c.l.b16 %v1365
  %v1381 = vpack.c.b16 %v1378, %v1377
  %v1382 = vpack.c.b16 %v1380, %v1379
  %v1386 = vsel %vm181, %v1361, 0
  %1388 = vmatprep.subr.bf16.mxu0 0
  %1389 = vmatpush1.bf16.msra.mxu0 %v1381
  %1390 = vmatprep.subr.bf16.mxu0 0
  %1391 = vmatpush1.bf16.msra.mxu0 %v1382
  %1392 = vmatprep.subr.bf16.mxu0 0
  %1393 = vmatpush1.bf16.msra.mxu0 0
  %1394 = vmatprep.subr.bf16.mxu0 0
  %1395 = vmatpush1.bf16.msra.mxu0 0
  %1396 = vmatprep.subr.bf16.mxu0 0
  %1397 = vmatpush1.bf16.msra.mxu0 0
  %1398 = vmatprep.subr.bf16.mxu0 0
  %1399 = vmatpush1.bf16.msra.mxu0 0
  %1400 = vmatprep.subr.bf16.mxu0 0
  %1401 = vmatpush1.bf16.msra.mxu0 0
  %1402 = vmatprep.subr.bf16.mxu0 0
  %1403 = vmatpush1.bf16.msra.mxu0 0
  %1404 = vmatprep.subr.bf16.mxu0 0
  %1405 = vmatpush1.bf16.msra.mxu0 0
  %1406 = vmatprep.subr.bf16.mxu0 0
  %1407 = vmatpush1.bf16.msra.mxu0 0
  %1408 = vmatprep.subr.bf16.mxu0 0
  %1409 = vmatpush1.bf16.msra.mxu0 0
  %1410 = vmatprep.subr.bf16.mxu0 0
  %1411 = vmatpush1.bf16.msra.mxu0 0
  %1412 = vmatprep.subr.bf16.mxu0 0
  %1413 = vmatpush1.bf16.msra.mxu0 0
  %1414 = vmatprep.subr.bf16.mxu0 0
  %1415 = vmatpush1.bf16.msra.mxu0 0
  %1416 = vmatprep.subr.bf16.mxu0 0
  %1417 = vmatpush1.bf16.msra.mxu0 0
  %1418 = vmatprep.subr.bf16.mxu0 0
  %1419 = vmatpush1.bf16.msra.mxu0 0
  %1420 = vmatprep.mubr.bf16.mxu0 0
  %1421 = vmatmul.mubr.bf16.gmra.mrb[0].mxu0 %v1386
  %v1422 = vpop.f32.mrb[0].mxu0
  %v1423 = vadd.f32 %v1371, %v1422
  %v1424 = vpop.f32.mrb[0].mxu0
  %v1425 = vpop.f32.mrb[0].mxu0
  %v1426 = vpop.f32.mrb[0].mxu0
  %1427 = vdwg.mxu0
  %v1428 = vld [vmem:[%s338] sm:$0xf]
  %v1429 = vld [vmem:[%s338 + $0x4] sm:$0xf]
  %v1430 = vld [vmem:[%s338 + $0x8] sm:$0xf]
  %v1431 = vld [vmem:[%s338 + $0xc] sm:$0xf]
  %v1436 = vunpack.c.l.b16 %v1428
  %v1437 = vunpack.c.l.b16 %v1429
  %v1438 = vunpack.c.l.b16 %v1430
  %v1439 = vunpack.c.l.b16 %v1431
  %v1440 = vpack.c.b16 %v1437, %v1436
  %v1441 = vpack.c.b16 %v1439, %v1438
  %v1445 = vsel %vm181, %v1359, 0
  %1447 = vmatprep.subr.bf16.mxu0 0
  %1448 = vmatpush1.bf16.msra.mxu0 %v1440
  %1449 = vmatprep.subr.bf16.mxu0 0
  %1450 = vmatpush1.bf16.msra.mxu0 %v1441
  %1451 = vmatprep.subr.bf16.mxu0 0
  %1452 = vmatpush1.bf16.msra.mxu0 0
  %1453 = vmatprep.subr.bf16.mxu0 0
  %1454 = vmatpush1.bf16.msra.mxu0 0
  %1455 = vmatprep.subr.bf16.mxu0 0
  %1456 = vmatpush1.bf16.msra.mxu0 0
  %1457 = vmatprep.subr.bf16.mxu0 0
  %1458 = vmatpush1.bf16.msra.mxu0 0
  %1459 = vmatprep.subr.bf16.mxu0 0
  %1460 = vmatpush1.bf16.msra.mxu0 0
  %1461 = vmatprep.subr.bf16.mxu0 0
  %1462 = vmatpush1.bf16.msra.mxu0 0
  %1463 = vmatprep.subr.bf16.mxu0 0
  %1464 = vmatpush1.bf16.msra.mxu0 0
  %1465 = vmatprep.subr.bf16.mxu0 0
  %1466 = vmatpush1.bf16.msra.mxu0 0
  %1467 = vmatprep.subr.bf16.mxu0 0
  %1468 = vmatpush1.bf16.msra.mxu0 0
  %1469 = vmatprep.subr.bf16.mxu0 0
  %1470 = vmatpush1.bf16.msra.mxu0 0
  %1471 = vmatprep.subr.bf16.mxu0 0
  %1472 = vmatpush1.bf16.msra.mxu0 0
  %1473 = vmatprep.subr.bf16.mxu0 0
  %1474 = vmatpush1.bf16.msra.mxu0 0
  %1475 = vmatprep.subr.bf16.mxu0 0
  %1476 = vmatpush1.bf16.msra.mxu0 0
  %1477 = vmatprep.subr.bf16.mxu0 0
  %1478 = vmatpush1.bf16.msra.mxu0 0
  %1479 = vmatprep.mubr.bf16.mxu0 0
  %1480 = vmatmul.mubr.bf16.gmra.mrb[0].mxu0 %v1445
  %v1481 = vpop.f32.mrb[0].mxu0
  %v1482 = vadd.f32 0.0, %v1481
  %v1483 = vpop.f32.mrb[0].mxu0
  %v1484 = vpop.f32.mrb[0].mxu0
  %v1485 = vpop.f32.mrb[0].mxu0
  %1486 = vdwg.mxu0
  %v1487 = vadd.f32 %v1423, %v1482
  %v1488 = vxor.u32 %v1487, 2147483648
  %v1489 = vmul.f32 %v1488, 1.442695
  %v1490 = vpow.pop %v1489
  %v1491 = vadd.f32 %v1490, 1.0
  %v1492 = vrcp.pop %v1491
  %v1493 = vmul.f32 1.0, %v1492
  %v1494 = vtanh.pop %v1487
  %v1495 = vld [vmem:[%s406] sm:$0xff]
  %1497 = vrot.lane.b32.xlu0 %v1495, 32
  %v1498 = vpop.permute.xlu0 %1497
  %v1500 = vmul.f32 %v1493, %v1498
  %1502 = vrot.lane.b32.xlu0 %v1494, 32
  %v1503 = vpop.permute.xlu0 %1502
  %v1505 = vmul.f32 %v1493, %v1503
  %1507 = vrot.lane.b32.xlu0 %v1505, 32
  %v1508 = vpop.permute.xlu0 %1507
  %v1510 = vadd.f32 %v1500, %v1508
  %v1511 = vtanh.pop %v1510
  %1513 = vrot.lane.b32.xlu0 %v1511, 32
  %v1514 = vpop.permute.xlu0 %1513
  %v1516 = vmul.f32 %v1493, %v1514
  %1518 = vrot.lane.b32.xlu0 %v1510, 96
  %v1519 = vpop.permute.xlu0 %1518
  %1521 = vst.msk [vmem:[%s406] sm:$0xff] %vm181, %v1519
  %1523 = vrot.lane.b32.xlu0 %v1516, 64
  %v1524 = vpop.permute.xlu0 %1523
  %1526 = vst.msk [vmem:[%s266] sm:$0xff] %vm181, %v1524
  %v1527 = vld [vmem:[#allocation2] sm:$0xff]
  %v1528 = vpack.c.bf16 %v1527, %v1527
  %v1529 = vld [vmem:[#allocation5 + $0x28] sm:$0xff]
  %v1530 = vld [vmem:[%s3] sm:$0xf]
  %v1531 = vld [vmem:[%s3 + $0x4] sm:$0xf]
  %v1532 = vld [vmem:[%s3 + $0x8] sm:$0xf]
  %v1533 = vld [vmem:[%s3 + $0xc] sm:$0xf]
  %v1538 = vunpack.c.l.b16 %v1530
  %v1539 = vunpack.c.l.b16 %v1531
  %v1540 = vunpack.c.l.b16 %v1532
  %v1541 = vunpack.c.l.b16 %v1533
  %v1542 = vpack.c.b16 %v1539, %v1538
  %v1543 = vpack.c.b16 %v1541, %v1540
  %v1547 = vsel %vm181, %v1528, 0
  %1549 = vmatprep.subr.bf16.mxu0 0
  %1550 = vmatpush1.bf16.msra.mxu0 %v1542
  %1551 = vmatprep.subr.bf16.mxu0 0
  %1552 = vmatpush1.bf16.msra.mxu0 %v1543
  %1553 = vmatprep.subr.bf16.mxu0 0
  %1554 = vmatpush1.bf16.msra.mxu0 0
  %1555 = vmatprep.subr.bf16.mxu0 0
  %1556 = vmatpush1.bf16.msra.mxu0 0
  %1557 = vmatprep.subr.bf16.mxu0 0
  %1558 = vmatpush1.bf16.msra.mxu0 0
  %1559 = vmatprep.subr.bf16.mxu0 0
  %1560 = vmatpush1.bf16.msra.mxu0 0
  %1561 = vmatprep.subr.bf16.mxu0 0
  %1562 = vmatpush1.bf16.msra.mxu0 0
  %1563 = vmatprep.subr.bf16.mxu0 0
  %1564 = vmatpush1.bf16.msra.mxu0 0
  %1565 = vmatprep.subr.bf16.mxu0 0
  %1566 = vmatpush1.bf16.msra.mxu0 0
  %1567 = vmatprep.subr.bf16.mxu0 0
  %1568 = vmatpush1.bf16.msra.mxu0 0
  %1569 = vmatprep.subr.bf16.mxu0 0
  %1570 = vmatpush1.bf16.msra.mxu0 0
  %1571 = vmatprep.subr.bf16.mxu0 0
  %1572 = vmatpush1.bf16.msra.mxu0 0
  %1573 = vmatprep.subr.bf16.mxu0 0
  %1574 = vmatpush1.bf16.msra.mxu0 0
  %1575 = vmatprep.subr.bf16.mxu0 0
  %1576 = vmatpush1.bf16.msra.mxu0 0
  %1577 = vmatprep.subr.bf16.mxu0 0
  %1578 = vmatpush1.bf16.msra.mxu0 0
  %1579 = vmatprep.subr.bf16.mxu0 0
  %1580 = vmatpush1.bf16.msra.mxu0 0
  %1581 = vmatprep.mubr.bf16.mxu0 0
  %1582 = vmatmul.mubr.bf16.gmra.mrb[0].mxu0 %v1547
  %v1583 = vpop.f32.mrb[0].mxu0
  %v1584 = vadd.f32 0.0, %v1583
  %v1585 = vpop.f32.mrb[0].mxu0
  %v1586 = vpop.f32.mrb[0].mxu0
  %v1587 = vpop.f32.mrb[0].mxu0
  %1588 = vdwg.mxu0
  %v1589 = vadd.f32 %v1529, %v1584
  %v1590 = vxor.u32 %v1589, 2147483648
  %v1591 = vmul.f32 %v1590, 1.442695
  %v1592 = vpow.pop %v1591
  %v1593 = vadd.f32 %v1592, 1.0
  %v1594 = vrcp.pop %v1593
  %v1595 = vmul.f32 1.0, %v1594
  %v1596 = vtanh.pop %v1589
  %v1597 = vld [vmem:[#allocation3] sm:$0xff]
  %1599 = vrot.lane.b32.xlu0 %v1597, 32
  %v1600 = vpop.permute.xlu0 %1599
  %v1602 = vmul.f32 %v1595, %v1600
  %1604 = vrot.lane.b32.xlu0 %v1596, 32
  %v1605 = vpop.permute.xlu0 %1604
  %v1607 = vmul.f32 %v1595, %v1605
  %1609 = vrot.lane.b32.xlu0 %v1607, 32
  %v1610 = vpop.permute.xlu0 %1609
  %v1612 = vadd.f32 %v1602, %v1610
  %v1613 = vtanh.pop %v1612
  %1615 = vrot.lane.b32.xlu0 %v1613, 32
  %v1616 = vpop.permute.xlu0 %1615
  %v1618 = vmul.f32 %v1595, %v1616
  %1620 = vrot.lane.b32.xlu0 %v1612, 96
  %v1621 = vpop.permute.xlu0 %1620
  %1623 = vst.msk [vmem:[#allocation3] sm:$0xff] %vm181, %v1621
  %1625 = vrot.lane.b32.xlu0 %v1618, 64
  %v1626 = vpop.permute.xlu0 %1625
  %1628 = vst.msk [vmem:[#allocation2] sm:$0xff] %vm181, %v1626
  %1629 = vst.msk [vmem:[#allocation4] sm:$0xff] %vm181, %v1626
  %v1630 = vld [vmem:[%s266] sm:$0xff]
  %v1631 = vpack.c.bf16 %v1630, %v1630
  %v1632 = vld [vmem:[#allocation4] sm:$0xff]
  %v1633 = vpack.c.bf16 %v1632, %v1632
  %v1634 = vld [vmem:[%s2] sm:$0xf]
  %v1635 = vld [vmem:[%s2 + $0x4] sm:$0xf]
  %v1636 = vld [vmem:[%s2 + $0x8] sm:$0xf]
  %v1637 = vld [vmem:[%s2 + $0xc] sm:$0xf]
  %v1638 = vld [vmem:[%s275] sm:$0x1]
  %v1640 = vlaneseq
  %v1641 = vshrl.u32 %v1640, 7
  %v1642 = vsub.s32 0, %v1641
  %v1643 = vrot.slane %v1638, %v1642
  %v1649 = vunpack.c.l.b16 %v1634
  %v1650 = vunpack.c.l.b16 %v1635
  %v1651 = vunpack.c.l.b16 %v1636
  %v1652 = vunpack.c.l.b16 %v1637
  %v1653 = vpack.c.b16 %v1650, %v1649
  %v1654 = vpack.c.b16 %v1652, %v1651
  %v1658 = vsel %vm181, %v1633, 0
  %1660 = vmatprep.subr.bf16.mxu0 0
  %1661 = vmatpush1.bf16.msra.mxu0 %v1653
  %1662 = vmatprep.subr.bf16.mxu0 0
  %1663 = vmatpush1.bf16.msra.mxu0 %v1654
  %1664 = vmatprep.subr.bf16.mxu0 0
  %1665 = vmatpush1.bf16.msra.mxu0 0
  %1666 = vmatprep.subr.bf16.mxu0 0
  %1667 = vmatpush1.bf16.msra.mxu0 0
  %1668 = vmatprep.subr.bf16.mxu0 0
  %1669 = vmatpush1.bf16.msra.mxu0 0
  %1670 = vmatprep.subr.bf16.mxu0 0
  %1671 = vmatpush1.bf16.msra.mxu0 0
  %1672 = vmatprep.subr.bf16.mxu0 0
  %1673 = vmatpush1.bf16.msra.mxu0 0
  %1674 = vmatprep.subr.bf16.mxu0 0
  %1675 = vmatpush1.bf16.msra.mxu0 0
  %1676 = vmatprep.subr.bf16.mxu0 0
  %1677 = vmatpush1.bf16.msra.mxu0 0
  %1678 = vmatprep.subr.bf16.mxu0 0
  %1679 = vmatpush1.bf16.msra.mxu0 0
  %1680 = vmatprep.subr.bf16.mxu0 0
  %1681 = vmatpush1.bf16.msra.mxu0 0
  %1682 = vmatprep.subr.bf16.mxu0 0
  %1683 = vmatpush1.bf16.msra.mxu0 0
  %1684 = vmatprep.subr.bf16.mxu0 0
  %1685 = vmatpush1.bf16.msra.mxu0 0
  %1686 = vmatprep.subr.bf16.mxu0 0
  %1687 = vmatpush1.bf16.msra.mxu0 0
  %1688 = vmatprep.subr.bf16.mxu0 0
  %1689 = vmatpush1.bf16.msra.mxu0 0
  %1690 = vmatprep.subr.bf16.mxu0 0
  %1691 = vmatpush1.bf16.msra.mxu0 0
  %1692 = vmatprep.mubr.bf16.mxu0 0
  %1693 = vmatmul.mubr.bf16.gmra.mrb[0].mxu0 %v1658
  %v1694 = vpop.f32.mrb[0].mxu0
  %v1695 = vadd.f32 %v1643, %v1694
  %v1696 = vpop.f32.mrb[0].mxu0
  %v1697 = vpop.f32.mrb[0].mxu0
  %v1698 = vpop.f32.mrb[0].mxu0
  %1699 = vdwg.mxu0
  %v1700 = vld [vmem:[%s338] sm:$0xf]
  %v1701 = vld [vmem:[%s338 + $0x4] sm:$0xf]
  %v1702 = vld [vmem:[%s338 + $0x8] sm:$0xf]
  %v1703 = vld [vmem:[%s338 + $0xc] sm:$0xf]
  %v1708 = vunpack.c.l.b16 %v1700
  %v1709 = vunpack.c.l.b16 %v1701
  %v1710 = vunpack.c.l.b16 %v1702
  %v1711 = vunpack.c.l.b16 %v1703
  %v1712 = vpack.c.b16 %v1709, %v1708
  %v1713 = vpack.c.b16 %v1711, %v1710
  %v1717 = vsel %vm181, %v1631, 0
  %1719 = vmatprep.subr.bf16.mxu0 0
  %1720 = vmatpush1.bf16.msra.mxu0 %v1712
  %1721 = vmatprep.subr.bf16.mxu0 0
  %1722 = vmatpush1.bf16.msra.mxu0 %v1713
  %1723 = vmatprep.subr.bf16.mxu0 0
  %1724 = vmatpush1.bf16.msra.mxu0 0
  %1725 = vmatprep.subr.bf16.mxu0 0
  %1726 = vmatpush1.bf16.msra.mxu0 0
  %1727 = vmatprep.subr.bf16.mxu0 0
  %1728 = vmatpush1.bf16.msra.mxu0 0
  %1729 = vmatprep.subr.bf16.mxu0 0
  %1730 = vmatpush1.bf16.msra.mxu0 0
  %1731 = vmatprep.subr.bf16.mxu0 0
  %1732 = vmatpush1.bf16.msra.mxu0 0
  %1733 = vmatprep.subr.bf16.mxu0 0
  %1734 = vmatpush1.bf16.msra.mxu0 0
  %1735 = vmatprep.subr.bf16.mxu0 0
  %1736 = vmatpush1.bf16.msra.mxu0 0
  %1737 = vmatprep.subr.bf16.mxu0 0
  %1738 = vmatpush1.bf16.msra.mxu0 0
  %1739 = vmatprep.subr.bf16.mxu0 0
  %1740 = vmatpush1.bf16.msra.mxu0 0
  %1741 = vmatprep.subr.bf16.mxu0 0
  %1742 = vmatpush1.bf16.msra.mxu0 0
  %1743 = vmatprep.subr.bf16.mxu0 0
  %1744 = vmatpush1.bf16.msra.mxu0 0
  %1745 = vmatprep.subr.bf16.mxu0 0
  %1746 = vmatpush1.bf16.msra.mxu0 0
  %1747 = vmatprep.subr.bf16.mxu0 0
  %1748 = vmatpush1.bf16.msra.mxu0 0
  %1749 = vmatprep.subr.bf16.mxu0 0
  %1750 = vmatpush1.bf16.msra.mxu0 0
  %1751 = vmatprep.mubr.bf16.mxu0 0
  %1752 = vmatmul.mubr.bf16.gmra.mrb[0].mxu0 %v1717
  %v1753 = vpop.f32.mrb[0].mxu0
  %v1754 = vadd.f32 0.0, %v1753
  %v1755 = vpop.f32.mrb[0].mxu0
  %v1756 = vpop.f32.mrb[0].mxu0
  %v1757 = vpop.f32.mrb[0].mxu0
  %1758 = vdwg.mxu0
  %v1759 = vadd.f32 %v1695, %v1754
  %v1760 = vxor.u32 %v1759, 2147483648
  %v1761 = vmul.f32 %v1760, 1.442695
  %v1762 = vpow.pop %v1761
  %v1763 = vadd.f32 %v1762, 1.0
  %v1764 = vrcp.pop %v1763
  %v1765 = vmul.f32 1.0, %v1764
  %v1766 = vtanh.pop %v1759
  %v1767 = vld [vmem:[%s406] sm:$0xff]
  %1769 = vrot.lane.b32.xlu0 %v1767, 32
  %v1770 = vpop.permute.xlu0 %1769
  %v1772 = vmul.f32 %v1765, %v1770
  %1774 = vrot.lane.b32.xlu0 %v1766, 32
  %v1775 = vpop.permute.xlu0 %1774
  %v1777 = vmul.f32 %v1765, %v1775
  %1779 = vrot.lane.b32.xlu0 %v1777, 32
  %v1780 = vpop.permute.xlu0 %1779
  %v1782 = vadd.f32 %v1772, %v1780
  %v1783 = vtanh.pop %v1782
  %1785 = vrot.lane.b32.xlu0 %v1783, 32
  %v1786 = vpop.permute.xlu0 %1785
  %v1788 = vmul.f32 %v1765, %v1786
  %1790 = vrot.lane.b32.xlu0 %v1782, 96
  %v1791 = vpop.permute.xlu0 %1790
  %1793 = vst.msk [vmem:[%s406] sm:$0xff] %vm181, %v1791
  %1795 = vrot.lane.b32.xlu0 %v1788, 64
  %v1796 = vpop.permute.xlu0 %1795
  %1798 = vst.msk [vmem:[%s266] sm:$0xff] %vm181, %v1796
  %v1799 = vld [vmem:[#allocation2] sm:$0xff]
  %v1800 = vpack.c.bf16 %v1799, %v1799
  %v1801 = vld [vmem:[#allocation5 + $0x30] sm:$0xff]
  %v1802 = vld [vmem:[%s3] sm:$0xf]
  %v1803 = vld [vmem:[%s3 + $0x4] sm:$0xf]
  %v1804 = vld [vmem:[%s3 + $0x8] sm:$0xf]
  %v1805 = vld [vmem:[%s3 + $0xc] sm:$0xf]
  %v1810 = vunpack.c.l.b16 %v1802
  %v1811 = vunpack.c.l.b16 %v1803
  %v1812 = vunpack.c.l.b16 %v1804
  %v1813 = vunpack.c.l.b16 %v1805
  %v1814 = vpack.c.b16 %v1811, %v1810
  %v1815 = vpack.c.b16 %v1813, %v1812
  %v1819 = vsel %vm181, %v1800, 0
  %1821 = vmatprep.subr.bf16.mxu0 0
  %1822 = vmatpush1.bf16.msra.mxu0 %v1814
  %1823 = vmatprep.subr.bf16.mxu0 0
  %1824 = vmatpush1.bf16.msra.mxu0 %v1815
  %1825 = vmatprep.subr.bf16.mxu0 0
  %1826 = vmatpush1.bf16.msra.mxu0 0
  %1827 = vmatprep.subr.bf16.mxu0 0
  %1828 = vmatpush1.bf16.msra.mxu0 0
  %1829 = vmatprep.subr.bf16.mxu0 0
  %1830 = vmatpush1.bf16.msra.mxu0 0
  %1831 = vmatprep.subr.bf16.mxu0 0
  %1832 = vmatpush1.bf16.msra.mxu0 0
  %1833 = vmatprep.subr.bf16.mxu0 0
  %1834 = vmatpush1.bf16.msra.mxu0 0
  %1835 = vmatprep.subr.bf16.mxu0 0
  %1836 = vmatpush1.bf16.msra.mxu0 0
  %1837 = vmatprep.subr.bf16.mxu0 0
  %1838 = vmatpush1.bf16.msra.mxu0 0
  %1839 = vmatprep.subr.bf16.mxu0 0
  %1840 = vmatpush1.bf16.msra.mxu0 0
  %1841 = vmatprep.subr.bf16.mxu0 0
  %1842 = vmatpush1.bf16.msra.mxu0 0
  %1843 = vmatprep.subr.bf16.mxu0 0
  %1844 = vmatpush1.bf16.msra.mxu0 0
  %1845 = vmatprep.subr.bf16.mxu0 0
  %1846 = vmatpush1.bf16.msra.mxu0 0
  %1847 = vmatprep.subr.bf16.mxu0 0
  %1848 = vmatpush1.bf16.msra.mxu0 0
  %1849 = vmatprep.subr.bf16.mxu0 0
  %1850 = vmatpush1.bf16.msra.mxu0 0
  %1851 = vmatprep.subr.bf16.mxu0 0
  %1852 = vmatpush1.bf16.msra.mxu0 0
  %1853 = vmatprep.mubr.bf16.mxu0 0
  %1854 = vmatmul.mubr.bf16.gmra.mrb[0].mxu0 %v1819
  %v1855 = vpop.f32.mrb[0].mxu0
  %v1856 = vadd.f32 0.0, %v1855
  %v1857 = vpop.f32.mrb[0].mxu0
  %v1858 = vpop.f32.mrb[0].mxu0
  %v1859 = vpop.f32.mrb[0].mxu0
  %1860 = vdwg.mxu0
  %v1861 = vadd.f32 %v1801, %v1856
  %v1862 = vxor.u32 %v1861, 2147483648
  %v1863 = vmul.f32 %v1862, 1.442695
  %v1864 = vpow.pop %v1863
  %v1865 = vadd.f32 %v1864, 1.0
  %v1866 = vrcp.pop %v1865
  %v1867 = vmul.f32 1.0, %v1866
  %v1868 = vtanh.pop %v1861
  %v1869 = vld [vmem:[#allocation3] sm:$0xff]
  %1871 = vrot.lane.b32.xlu0 %v1869, 32
  %v1872 = vpop.permute.xlu0 %1871
  %v1874 = vmul.f32 %v1867, %v1872
  %1876 = vrot.lane.b32.xlu0 %v1868, 32
  %v1877 = vpop.permute.xlu0 %1876
  %v1879 = vmul.f32 %v1867, %v1877
  %1881 = vrot.lane.b32.xlu0 %v1879, 32
  %v1882 = vpop.permute.xlu0 %1881
  %v1884 = vadd.f32 %v1874, %v1882
  %v1885 = vtanh.pop %v1884
  %1887 = vrot.lane.b32.xlu0 %v1885, 32
  %v1888 = vpop.permute.xlu0 %1887
  %v1890 = vmul.f32 %v1867, %v1888
  %1892 = vrot.lane.b32.xlu0 %v1884, 96
  %v1893 = vpop.permute.xlu0 %1892
  %1895 = vst.msk [vmem:[#allocation3] sm:$0xff] %vm181, %v1893
  %1897 = vrot.lane.b32.xlu0 %v1890, 64
  %v1898 = vpop.permute.xlu0 %1897
  %1900 = vst.msk [vmem:[#allocation2] sm:$0xff] %vm181, %v1898
  %1901 = vst.msk [vmem:[#allocation4] sm:$0xff] %vm181, %v1898
  %v1902 = vld [vmem:[%s266] sm:$0xff]
  %v1903 = vpack.c.bf16 %v1902, %v1902
  %v1904 = vld [vmem:[#allocation4] sm:$0xff]
  %v1905 = vpack.c.bf16 %v1904, %v1904
  %v1906 = vld [vmem:[%s2] sm:$0xf]
  %v1907 = vld [vmem:[%s2 + $0x4] sm:$0xf]
  %v1908 = vld [vmem:[%s2 + $0x8] sm:$0xf]
  %v1909 = vld [vmem:[%s2 + $0xc] sm:$0xf]
  %v1910 = vld [vmem:[%s275] sm:$0x1]
  %v1912 = vlaneseq
  %v1913 = vshrl.u32 %v1912, 7
  %v1914 = vsub.s32 0, %v1913
  %v1915 = vrot.slane %v1910, %v1914
  %v1921 = vunpack.c.l.b16 %v1906
  %v1922 = vunpack.c.l.b16 %v1907
  %v1923 = vunpack.c.l.b16 %v1908
  %v1924 = vunpack.c.l.b16 %v1909
  %v1925 = vpack.c.b16 %v1922, %v1921
  %v1926 = vpack.c.b16 %v1924, %v1923
  %v1930 = vsel %vm181, %v1905, 0
  %1932 = vmatprep.subr.bf16.mxu0 0
  %1933 = vmatpush1.bf16.msra.mxu0 %v1925
  %1934 = vmatprep.subr.bf16.mxu0 0
  %1935 = vmatpush1.bf16.msra.mxu0 %v1926
  %1936 = vmatprep.subr.bf16.mxu0 0
  %1937 = vmatpush1.bf16.msra.mxu0 0
  %1938 = vmatprep.subr.bf16.mxu0 0
  %1939 = vmatpush1.bf16.msra.mxu0 0
  %1940 = vmatprep.subr.bf16.mxu0 0
  %1941 = vmatpush1.bf16.msra.mxu0 0
  %1942 = vmatprep.subr.bf16.mxu0 0
  %1943 = vmatpush1.bf16.msra.mxu0 0
  %1944 = vmatprep.subr.bf16.mxu0 0
  %1945 = vmatpush1.bf16.msra.mxu0 0
  %1946 = vmatprep.subr.bf16.mxu0 0
  %1947 = vmatpush1.bf16.msra.mxu0 0
  %1948 = vmatprep.subr.bf16.mxu0 0
  %1949 = vmatpush1.bf16.msra.mxu0 0
  %1950 = vmatprep.subr.bf16.mxu0 0
  %1951 = vmatpush1.bf16.msra.mxu0 0
  %1952 = vmatprep.subr.bf16.mxu0 0
  %1953 = vmatpush1.bf16.msra.mxu0 0
  %1954 = vmatprep.subr.bf16.mxu0 0
  %1955 = vmatpush1.bf16.msra.mxu0 0
  %1956 = vmatprep.subr.bf16.mxu0 0
  %1957 = vmatpush1.bf16.msra.mxu0 0
  %1958 = vmatprep.subr.bf16.mxu0 0
  %1959 = vmatpush1.bf16.msra.mxu0 0
  %1960 = vmatprep.subr.bf16.mxu0 0
  %1961 = vmatpush1.bf16.msra.mxu0 0
  %1962 = vmatprep.subr.bf16.mxu0 0
  %1963 = vmatpush1.bf16.msra.mxu0 0
  %1964 = vmatprep.mubr.bf16.mxu0 0
  %1965 = vmatmul.mubr.bf16.gmra.mrb[0].mxu0 %v1930
  %v1966 = vpop.f32.mrb[0].mxu0
  %v1967 = vadd.f32 %v1915, %v1966
  %v1968 = vpop.f32.mrb[0].mxu0
  %v1969 = vpop.f32.mrb[0].mxu0
  %v1970 = vpop.f32.mrb[0].mxu0
  %1971 = vdwg.mxu0
  %v1972 = vld [vmem:[%s338] sm:$0xf]
  %v1973 = vld [vmem:[%s338 + $0x4] sm:$0xf]
  %v1974 = vld [vmem:[%s338 + $0x8] sm:$0xf]
  %v1975 = vld [vmem:[%s338 + $0xc] sm:$0xf]
  %v1980 = vunpack.c.l.b16 %v1972
  %v1981 = vunpack.c.l.b16 %v1973
  %v1982 = vunpack.c.l.b16 %v1974
  %v1983 = vunpack.c.l.b16 %v1975
  %v1984 = vpack.c.b16 %v1981, %v1980
  %v1985 = vpack.c.b16 %v1983, %v1982
  %v1989 = vsel %vm181, %v1903, 0
  %1991 = vmatprep.subr.bf16.mxu0 0
  %1992 = vmatpush1.bf16.msra.mxu0 %v1984
  %1993 = vmatprep.subr.bf16.mxu0 0
  %1994 = vmatpush1.bf16.msra.mxu0 %v1985
  %1995 = vmatprep.subr.bf16.mxu0 0
  %1996 = vmatpush1.bf16.msra.mxu0 0
  %1997 = vmatprep.subr.bf16.mxu0 0
  %1998 = vmatpush1.bf16.msra.mxu0 0
  %1999 = vmatprep.subr.bf16.mxu0 0
  %2000 = vmatpush1.bf16.msra.mxu0 0
  %2001 = vmatprep.subr.bf16.mxu0 0
  %2002 = vmatpush1.bf16.msra.mxu0 0
  %2003 = vmatprep.subr.bf16.mxu0 0
  %2004 = vmatpush1.bf16.msra.mxu0 0
  %2005 = vmatprep.subr.bf16.mxu0 0
  %2006 = vmatpush1.bf16.msra.mxu0 0
  %2007 = vmatprep.subr.bf16.mxu0 0
  %2008 = vmatpush1.bf16.msra.mxu0 0
  %2009 = vmatprep.subr.bf16.mxu0 0
  %2010 = vmatpush1.bf16.msra.mxu0 0
  %2011 = vmatprep.subr.bf16.mxu0 0
  %2012 = vmatpush1.bf16.msra.mxu0 0
  %2013 = vmatprep.subr.bf16.mxu0 0
  %2014 = vmatpush1.bf16.msra.mxu0 0
  %2015 = vmatprep.subr.bf16.mxu0 0
  %2016 = vmatpush1.bf16.msra.mxu0 0
  %2017 = vmatprep.subr.bf16.mxu0 0
  %2018 = vmatpush1.bf16.msra.mxu0 0
  %2019 = vmatprep.subr.bf16.mxu0 0
  %2020 = vmatpush1.bf16.msra.mxu0 0
  %2021 = vmatprep.subr.bf16.mxu0 0
  %2022 = vmatpush1.bf16.msra.mxu0 0
  %2023 = vmatprep.mubr.bf16.mxu0 0
  %2024 = vmatmul.mubr.bf16.gmra.mrb[0].mxu0 %v1989
  %v2025 = vpop.f32.mrb[0].mxu0
  %v2026 = vadd.f32 0.0, %v2025
  %v2027 = vpop.f32.mrb[0].mxu0
  %v2028 = vpop.f32.mrb[0].mxu0
  %v2029 = vpop.f32.mrb[0].mxu0
  %2030 = vdwg.mxu0
  %v2031 = vadd.f32 %v1967, %v2026
  %v2032 = vxor.u32 %v2031, 2147483648
  %v2033 = vmul.f32 %v2032, 1.442695
  %v2034 = vpow.pop %v2033
  %v2035 = vadd.f32 %v2034, 1.0
  %v2036 = vrcp.pop %v2035
  %v2037 = vmul.f32 1.0, %v2036
  %v2038 = vtanh.pop %v2031
  %v2039 = vld [vmem:[%s406] sm:$0xff]
  %2041 = vrot.lane.b32.xlu0 %v2039, 32
  %v2042 = vpop.permute.xlu0 %2041
  %v2044 = vmul.f32 %v2037, %v2042
  %2046 = vrot.lane.b32.xlu0 %v2038, 32
  %v2047 = vpop.permute.xlu0 %2046
  %v2049 = vmul.f32 %v2037, %v2047
  %2051 = vrot.lane.b32.xlu0 %v2049, 32
  %v2052 = vpop.permute.xlu0 %2051
  %v2054 = vadd.f32 %v2044, %v2052
  %v2055 = vtanh.pop %v2054
  %2057 = vrot.lane.b32.xlu0 %v2055, 32
  %v2058 = vpop.permute.xlu0 %2057
  %v2060 = vmul.f32 %v2037, %v2058
  %2062 = vrot.lane.b32.xlu0 %v2054, 96
  %v2063 = vpop.permute.xlu0 %2062
  %2065 = vst.msk [vmem:[%s406] sm:$0xff] %vm181, %v2063
  %2067 = vrot.lane.b32.xlu0 %v2060, 64
  %v2068 = vpop.permute.xlu0 %2067
  %2070 = vst.msk [vmem:[%s266] sm:$0xff] %vm181, %v2068
  %v2071 = vld [vmem:[#allocation2] sm:$0xff]
  %v2072 = vpack.c.bf16 %v2071, %v2071
  %v2073 = vld [vmem:[#allocation5 + $0x38] sm:$0xff]
  %v2074 = vld [vmem:[%s3] sm:$0xf]
  %v2075 = vld [vmem:[%s3 + $0x4] sm:$0xf]
  %v2076 = vld [vmem:[%s3 + $0x8] sm:$0xf]
  %v2077 = vld [vmem:[%s3 + $0xc] sm:$0xf]
  %v2082 = vunpack.c.l.b16 %v2074
  %v2083 = vunpack.c.l.b16 %v2075
  %v2084 = vunpack.c.l.b16 %v2076
  %v2085 = vunpack.c.l.b16 %v2077
  %v2086 = vpack.c.b16 %v2083, %v2082
  %v2087 = vpack.c.b16 %v2085, %v2084
  %v2091 = vsel %vm181, %v2072, 0
  %2093 = vmatprep.subr.bf16.mxu0 0
  %2094 = vmatpush1.bf16.msra.mxu0 %v2086
  %2095 = vmatprep.subr.bf16.mxu0 0
  %2096 = vmatpush1.bf16.msra.mxu0 %v2087
  %2097 = vmatprep.subr.bf16.mxu0 0
  %2098 = vmatpush1.bf16.msra.mxu0 0
  %2099 = vmatprep.subr.bf16.mxu0 0
  %2100 = vmatpush1.bf16.msra.mxu0 0
  %2101 = vmatprep.subr.bf16.mxu0 0
  %2102 = vmatpush1.bf16.msra.mxu0 0
  %2103 = vmatprep.subr.bf16.mxu0 0
  %2104 = vmatpush1.bf16.msra.mxu0 0
  %2105 = vmatprep.subr.bf16.mxu0 0
  %2106 = vmatpush1.bf16.msra.mxu0 0
  %2107 = vmatprep.subr.bf16.mxu0 0
  %2108 = vmatpush1.bf16.msra.mxu0 0
  %2109 = vmatprep.subr.bf16.mxu0 0
  %2110 = vmatpush1.bf16.msra.mxu0 0
  %2111 = vmatprep.subr.bf16.mxu0 0
  %2112 = vmatpush1.bf16.msra.mxu0 0
  %2113 = vmatprep.subr.bf16.mxu0 0
  %2114 = vmatpush1.bf16.msra.mxu0 0
  %2115 = vmatprep.subr.bf16.mxu0 0
  %2116 = vmatpush1.bf16.msra.mxu0 0
  %2117 = vmatprep.subr.bf16.mxu0 0
  %2118 = vmatpush1.bf16.msra.mxu0 0
  %2119 = vmatprep.subr.bf16.mxu0 0
  %2120 = vmatpush1.bf16.msra.mxu0 0
  %2121 = vmatprep.subr.bf16.mxu0 0
  %2122 = vmatpush1.bf16.msra.mxu0 0
  %2123 = vmatprep.subr.bf16.mxu0 0
  %2124 = vmatpush1.bf16.msra.mxu0 0
  %2125 = vmatprep.mubr.bf16.mxu0 0
  %2126 = vmatmul.mubr.bf16.gmra.mrb[0].mxu0 %v2091
  %v2127 = vpop.f32.mrb[0].mxu0
  %v2128 = vadd.f32 0.0, %v2127
  %v2129 = vpop.f32.mrb[0].mxu0
  %v2130 = vpop.f32.mrb[0].mxu0
  %v2131 = vpop.f32.mrb[0].mxu0
  %2132 = vdwg.mxu0
  %v2133 = vadd.f32 %v2073, %v2128
  %v2134 = vxor.u32 %v2133, 2147483648
  %v2135 = vmul.f32 %v2134, 1.442695
  %v2136 = vpow.pop %v2135
  %v2137 = vadd.f32 %v2136, 1.0
  %v2138 = vrcp.pop %v2137
  %v2139 = vmul.f32 1.0, %v2138
  %v2140 = vtanh.pop %v2133
  %v2141 = vld [vmem:[#allocation3] sm:$0xff]
  %2143 = vrot.lane.b32.xlu0 %v2141, 32
  %v2144 = vpop.permute.xlu0 %2143
  %v2146 = vmul.f32 %v2139, %v2144
  %2148 = vrot.lane.b32.xlu0 %v2140, 32
  %v2149 = vpop.permute.xlu0 %2148
  %v2151 = vmul.f32 %v2139, %v2149
  %2153 = vrot.lane.b32.xlu0 %v2151, 32
  %v2154 = vpop.permute.xlu0 %2153
  %v2156 = vadd.f32 %v2146, %v2154
  %v2157 = vtanh.pop %v2156
  %2159 = vrot.lane.b32.xlu0 %v2157, 32
  %v2160 = vpop.permute.xlu0 %2159
  %v2162 = vmul.f32 %v2139, %v2160
  %2164 = vrot.lane.b32.xlu0 %v2156, 96
  %v2165 = vpop.permute.xlu0 %2164
  %2167 = vst.msk [vmem:[#allocation3] sm:$0xff] %vm181, %v2165
  %2169 = vrot.lane.b32.xlu0 %v2162, 64
  %v2170 = vpop.permute.xlu0 %2169
  %2172 = vst.msk [vmem:[#allocation2] sm:$0xff] %vm181, %v2170
  %2173 = vst.msk [vmem:[#allocation4] sm:$0xff] %vm181, %v2170
  %v2174 = vld [vmem:[%s266] sm:$0xff]
  %v2175 = vpack.c.bf16 %v2174, %v2174
  %v2176 = vld [vmem:[#allocation4] sm:$0xff]
  %v2177 = vpack.c.bf16 %v2176, %v2176
  %v2178 = vld [vmem:[%s2] sm:$0xf]
  %v2179 = vld [vmem:[%s2 + $0x4] sm:$0xf]
  %v2180 = vld [vmem:[%s2 + $0x8] sm:$0xf]
  %v2181 = vld [vmem:[%s2 + $0xc] sm:$0xf]
  %v2182 = vld [vmem:[%s275] sm:$0x1]
  %v2184 = vlaneseq
  %v2185 = vshrl.u32 %v2184, 7
  %v2186 = vsub.s32 0, %v2185
  %v2187 = vrot.slane %v2182, %v2186
  %v2193 = vunpack.c.l.b16 %v2178
  %v2194 = vunpack.c.l.b16 %v2179
  %v2195 = vunpack.c.l.b16 %v2180
  %v2196 = vunpack.c.l.b16 %v2181
  %v2197 = vpack.c.b16 %v2194, %v2193
  %v2198 = vpack.c.b16 %v2196, %v2195
  %v2202 = vsel %vm181, %v2177, 0
  %2204 = vmatprep.subr.bf16.mxu0 0
  %2205 = vmatpush1.bf16.msra.mxu0 %v2197
  %2206 = vmatprep.subr.bf16.mxu0 0
  %2207 = vmatpush1.bf16.msra.mxu0 %v2198
  %2208 = vmatprep.subr.bf16.mxu0 0
  %2209 = vmatpush1.bf16.msra.mxu0 0
  %2210 = vmatprep.subr.bf16.mxu0 0
  %2211 = vmatpush1.bf16.msra.mxu0 0
  %2212 = vmatprep.subr.bf16.mxu0 0
  %2213 = vmatpush1.bf16.msra.mxu0 0
  %2214 = vmatprep.subr.bf16.mxu0 0
  %2215 = vmatpush1.bf16.msra.mxu0 0
  %2216 = vmatprep.subr.bf16.mxu0 0
  %2217 = vmatpush1.bf16.msra.mxu0 0
  %2218 = vmatprep.subr.bf16.mxu0 0
  %2219 = vmatpush1.bf16.msra.mxu0 0
  %2220 = vmatprep.subr.bf16.mxu0 0
  %2221 = vmatpush1.bf16.msra.mxu0 0
  %2222 = vmatprep.subr.bf16.mxu0 0
  %2223 = vmatpush1.bf16.msra.mxu0 0
  %2224 = vmatprep.subr.bf16.mxu0 0
  %2225 = vmatpush1.bf16.msra.mxu0 0
  %2226 = vmatprep.subr.bf16.mxu0 0
  %2227 = vmatpush1.bf16.msra.mxu0 0
  %2228 = vmatprep.subr.bf16.mxu0 0
  %2229 = vmatpush1.bf16.msra.mxu0 0
  %2230 = vmatprep.subr.bf16.mxu0 0
  %2231 = vmatpush1.bf16.msra.mxu0 0
  %2232 = vmatprep.subr.bf16.mxu0 0
  %2233 = vmatpush1.bf16.msra.mxu0 0
  %2234 = vmatprep.subr.bf16.mxu0 0
  %2235 = vmatpush1.bf16.msra.mxu0 0
  %2236 = vmatprep.mubr.bf16.mxu0 0
  %2237 = vmatmul.mubr.bf16.gmra.mrb[0].mxu0 %v2202
  %v2238 = vpop.f32.mrb[0].mxu0
  %v2239 = vadd.f32 %v2187, %v2238
  %v2240 = vpop.f32.mrb[0].mxu0
  %v2241 = vpop.f32.mrb[0].mxu0
  %v2242 = vpop.f32.mrb[0].mxu0
  %2243 = vdwg.mxu0
  %v2244 = vld [vmem:[%s338] sm:$0xf]
  %v2245 = vld [vmem:[%s338 + $0x4] sm:$0xf]
  %v2246 = vld [vmem:[%s338 + $0x8] sm:$0xf]
  %v2247 = vld [vmem:[%s338 + $0xc] sm:$0xf]
  %v2252 = vunpack.c.l.b16 %v2244
  %v2253 = vunpack.c.l.b16 %v2245
  %v2254 = vunpack.c.l.b16 %v2246
  %v2255 = vunpack.c.l.b16 %v2247
  %v2256 = vpack.c.b16 %v2253, %v2252
  %v2257 = vpack.c.b16 %v2255, %v2254
  %v2261 = vsel %vm181, %v2175, 0
  %2263 = vmatprep.subr.bf16.mxu0 0
  %2264 = vmatpush1.bf16.msra.mxu0 %v2256
  %2265 = vmatprep.subr.bf16.mxu0 0
  %2266 = vmatpush1.bf16.msra.mxu0 %v2257
  %2267 = vmatprep.subr.bf16.mxu0 0
  %2268 = vmatpush1.bf16.msra.mxu0 0
  %2269 = vmatprep.subr.bf16.mxu0 0
  %2270 = vmatpush1.bf16.msra.mxu0 0
  %2271 = vmatprep.subr.bf16.mxu0 0
  %2272 = vmatpush1.bf16.msra.mxu0 0
  %2273 = vmatprep.subr.bf16.mxu0 0
  %2274 = vmatpush1.bf16.msra.mxu0 0
  %2275 = vmatprep.subr.bf16.mxu0 0
  %2276 = vmatpush1.bf16.msra.mxu0 0
  %2277 = vmatprep.subr.bf16.mxu0 0
  %2278 = vmatpush1.bf16.msra.mxu0 0
  %2279 = vmatprep.subr.bf16.mxu0 0
  %2280 = vmatpush1.bf16.msra.mxu0 0
  %2281 = vmatprep.subr.bf16.mxu0 0
  %2282 = vmatpush1.bf16.msra.mxu0 0
  %2283 = vmatprep.subr.bf16.mxu0 0
  %2284 = vmatpush1.bf16.msra.mxu0 0
  %2285 = vmatprep.subr.bf16.mxu0 0
  %2286 = vmatpush1.bf16.msra.mxu0 0
  %2287 = vmatprep.subr.bf16.mxu0 0
  %2288 = vmatpush1.bf16.msra.mxu0 0
  %2289 = vmatprep.subr.bf16.mxu0 0
  %2290 = vmatpush1.bf16.msra.mxu0 0
  %2291 = vmatprep.subr.bf16.mxu0 0
  %2292 = vmatpush1.bf16.msra.mxu0 0
  %2293 = vmatprep.subr.bf16.mxu0 0
  %2294 = vmatpush1.bf16.msra.mxu0 0
  %2295 = vmatprep.mubr.bf16.mxu0 0
  %2296 = vmatmul.mubr.bf16.gmra.mrb[0].mxu0 %v2261
  %v2297 = vpop.f32.mrb[0].mxu0
  %v2298 = vadd.f32 0.0, %v2297
  %v2299 = vpop.f32.mrb[0].mxu0
  %v2300 = vpop.f32.mrb[0].mxu0
  %v2301 = vpop.f32.mrb[0].mxu0
  %2302 = vdwg.mxu0
  %v2303 = vadd.f32 %v2239, %v2298
  %v2304 = vxor.u32 %v2303, 2147483648
  %v2305 = vmul.f32 %v2304, 1.442695
  %v2306 = vpow.pop %v2305
  %v2307 = vadd.f32 %v2306, 1.0
  %v2308 = vrcp.pop %v2307
  %v2309 = vmul.f32 1.0, %v2308
  %v2310 = vtanh.pop %v2303
  %v2311 = vld [vmem:[%s406] sm:$0xff]
  %2313 = vrot.lane.b32.xlu0 %v2311, 32
  %v2314 = vpop.permute.xlu0 %2313
  %v2316 = vmul.f32 %v2309, %v2314
  %2318 = vrot.lane.b32.xlu0 %v2310, 32
  %v2319 = vpop.permute.xlu0 %2318
  %v2321 = vmul.f32 %v2309, %v2319
  %2323 = vrot.lane.b32.xlu0 %v2321, 32
  %v2324 = vpop.permute.xlu0 %2323
  %v2326 = vadd.f32 %v2316, %v2324
  %v2327 = vtanh.pop %v2326
  %2329 = vrot.lane.b32.xlu0 %v2327, 32
  %v2330 = vpop.permute.xlu0 %2329
  %v2332 = vmul.f32 %v2309, %v2330
  %2334 = vrot.lane.b32.xlu0 %v2326, 96
  %v2335 = vpop.permute.xlu0 %2334
  %2337 = vst.msk [vmem:[%s406] sm:$0xff] %vm181, %v2335
  %2339 = vrot.lane.b32.xlu0 %v2332, 64
  %v2340 = vpop.permute.xlu0 %2339
  %2342 = vst.msk [vmem:[%s266] sm:$0xff] %vm181, %v2340
  // Predicated region
  $region34: #{tpu_custom_call.1} parent=0 // pred_check
    %p2343 = pneg %p27
  $region35: #{tpu_custom_call.1} parent=0 // pred_check_branch
    %2345 = sbr.rel (%p2343) target = $region37
  $region36: #{tpu_custom_call.1} parent=0 // pred_region
    %v2346 = vld [vmem:[%s266] sm:$0xff]
    %v2347 = vpack.c.bf16 %v2346, %v2346
    %v2348 = vld [vmem:[%s5] sm:$0xf]
    %v2349 = vld [vmem:[%s5 + $0x4] sm:$0xf]
    %v2350 = vld [vmem:[%s5 + $0x8] sm:$0xf]
    %v2351 = vld [vmem:[%s5 + $0xc] sm:$0xf]
    %v2352 = vld [vmem:[%s6] sm:$0x1]
    %v2354 = vlaneseq
    %v2355 = vshrl.u32 %v2354, 7
    %v2356 = vsub.s32 0, %v2355
    %v2357 = vrot.slane %v2352, %v2356
    %v2363 = vunpack.c.l.b16 %v2348
    %v2364 = vunpack.c.l.b16 %v2349
    %v2365 = vunpack.c.l.b16 %v2350
    %v2366 = vunpack.c.l.b16 %v2351
    %v2367 = vpack.c.b16 %v2364, %v2363
    %v2368 = vpack.c.b16 %v2366, %v2365
    %v2372 = vsel %vm181, %v2347, 0
    %2374 = vmatprep.subr.bf16.mxu0 0
    %2375 = vmatpush1.bf16.msra.mxu0 %v2367
    %2376 = vmatprep.subr.bf16.mxu0 0
    %2377 = vmatpush1.bf16.msra.mxu0 %v2368
    %2378 = vmatprep.subr.bf16.mxu0 0
    %2379 = vmatpush1.bf16.msra.mxu0 0
    %2380 = vmatprep.subr.bf16.mxu0 0
    %2381 = vmatpush1.bf16.msra.mxu0 0
    %2382 = vmatprep.subr.bf16.mxu0 0
    %2383 = vmatpush1.bf16.msra.mxu0 0
    %2384 = vmatprep.subr.bf16.mxu0 0
    %2385 = vmatpush1.bf16.msra.mxu0 0
    %2386 = vmatprep.subr.bf16.mxu0 0
    %2387 = vmatpush1.bf16.msra.mxu0 0
    %2388 = vmatprep.subr.bf16.mxu0 0
    %2389 = vmatpush1.bf16.msra.mxu0 0
    %2390 = vmatprep.subr.bf16.mxu0 0
    %2391 = vmatpush1.bf16.msra.mxu0 0
    %2392 = vmatprep.subr.bf16.mxu0 0
    %2393 = vmatpush1.bf16.msra.mxu0 0
    %2394 = vmatprep.subr.bf16.mxu0 0
    %2395 = vmatpush1.bf16.msra.mxu0 0
    %2396 = vmatprep.subr.bf16.mxu0 0
    %2397 = vmatpush1.bf16.msra.mxu0 0
    %2398 = vmatprep.subr.bf16.mxu0 0
    %2399 = vmatpush1.bf16.msra.mxu0 0
    %2400 = vmatprep.subr.bf16.mxu0 0
    %2401 = vmatpush1.bf16.msra.mxu0 0
    %2402 = vmatprep.subr.bf16.mxu0 0
    %2403 = vmatpush1.bf16.msra.mxu0 0
    %2404 = vmatprep.subr.bf16.mxu0 0
    %2405 = vmatpush1.bf16.msra.mxu0 0
    %2406 = vmatprep.mubr.bf16.mxu0 0
    %2407 = vmatmul.mubr.bf16.gmra.mrb[0].mxu0 %v2372
    %v2408 = vpop.f32.mrb[0].mxu0
    %v2409 = vadd.f32 %v2357, %v2408
    %v2410 = vpop.f32.mrb[0].mxu0
    %v2411 = vpop.f32.mrb[0].mxu0
    %v2412 = vpop.f32.mrb[0].mxu0
    %2413 = vdwg.mxu0
    %vm2414 = vcmask 23552
    %2415 = vst.msk [vmem:[%s7] sm:$0xff] %vm2414, %v2409
  $region37: #{tpu_custom_call.1} parent=0 // pred_fallthru
    _
  // Predicated region
  $region38: #{tpu_custom_call.1} parent=0 // pred_check
    _
  $region39: #{tpu_custom_call.1} parent=0 // pred_check_branch
    %2417 = sbr.rel (0) target = $region41
  $region40: #{tpu_custom_call.1} parent=0 // pred_region
    _
  $region41: #{tpu_custom_call.1} parent=0 // pred_fallthru
    _
  // Predicated region
  $region42: #{tpu_custom_call.1} parent=0 // pred_check
    _
  $region43: #{tpu_custom_call.1} parent=0 // pred_check_branch
    %2419 = sbr.rel (0) target = $region45
  $region44: #{tpu_custom_call.1} parent=0 // pred_region
    _
  $region45: #{tpu_custom_call.1} parent=0 // pred_fallthru
    _

</llo_original>
